<compile_context>
chip_gen: v5e
topology: v5e:2x2
jax: 0.10.0
libtpu: 0.0.40
codegen_flags: <defaults>
</compile_context>

<pallas_src>
import functools
import numpy as np
import jax
import jax.numpy as jnp
from jax.experimental import pallas as pl
from jax.experimental.pallas import tpu as pltpu

# ---- configuration matching SelfAttention(channels=32, size=8) ----
CHANNELS = 32
SIZE = 8
SEQ = SIZE * SIZE          # 64
NUM_HEADS = 4              # nn.MultiheadAttention(channels, 4)
HEAD_DIM = CHANNELS // NUM_HEADS
LN_EPS = 1e-5
INV_SQRT_HD = 1.0 / float(np.sqrt(HEAD_DIM))
SQRT2 = 1.4142135623730951


def _layernorm(v, w, b):
    # one-pass variance (one fewer cross-lane reduction than mean((v-mu)^2))
    mu = jnp.mean(v, axis=-1, keepdims=True)
    var = jnp.mean(v * v, axis=-1, keepdims=True) - mu * mu
    return (v - mu) * jax.lax.rsqrt(var + LN_EPS) * w + b


def _gelu_exact(x):
    # PyTorch nn.GELU() default is the exact erf-based GELU.
    return 0.5 * x * (1.0 + jax.scipy.special.erf(x / SQRT2))


def self_attn_kernel(x_ref,
                     ln1w_ref, ln1b_ref,
                     wq_ref, bq_ref, wk_ref, bk_ref, wv_ref, bv_ref,
                     wo_ref, bo_ref,
                     ln2w_ref, ln2b_ref,
                     w1_ref, b1_ref, w2_ref, b2_ref,
                     o_ref, *, tb):
    """One grid step processes `tb` batch elements: x_ref is (tb*SEQ, C)."""
    x = x_ref[...]                                             # (M, C), M = tb*SEQ

    # --- self.ln(x) ---
    x_ln = _layernorm(x, ln1w_ref[...], ln1b_ref[...])

    # --- nn.MultiheadAttention(C, 4, batch_first=True) ---
    # q/k/v projection weights are pre-sliced per head in the wrapper
    # ((H, C, hd) / (H, 1, hd)); the 1/sqrt(hd) scale is folded into wq/bq.
    attn = jnp.zeros_like(x)                                   # (M, C) accumulator
    for h in range(NUM_HEADS):                                 # static unroll (4)
        qh = jnp.dot(x_ln, wq_ref[h], preferred_element_type=jnp.float32) + bq_ref[h]
        kh = jnp.dot(x_ln, wk_ref[h], preferred_element_type=jnp.float32) + bk_ref[h]
        vh = jnp.dot(x_ln, wv_ref[h], preferred_element_type=jnp.float32) + bv_ref[h]
        q3 = qh.reshape(tb, SEQ, HEAD_DIM)                     # leading-dim split only
        k3 = kh.reshape(tb, SEQ, HEAD_DIM)
        v3 = vh.reshape(tb, SEQ, HEAD_DIM)
        s = jnp.einsum('bqd,bkd->bqk', q3, k3,
                       preferred_element_type=jnp.float32)     # (tb, S, S)
        s = s - jnp.max(s, axis=-1, keepdims=True)             # stable softmax
        e = jnp.exp(s)
        denom = jnp.sum(e, axis=-1, keepdims=True)             # (tb, S, 1)
        ctx = jnp.einsum('bqk,bkd->bqd', e, v3,
                         preferred_element_type=jnp.float32)   # (tb, S, hd)
        ctx = ctx * pl.reciprocal(denom, approx=True)          # normalize after PV (EUP)
        # per-head slice of the out projection: no head concatenate needed
        attn = attn + jnp.dot(ctx.reshape(tb * SEQ, HEAD_DIM), wo_ref[h],
                              preferred_element_type=jnp.float32)
    attn = attn + bo_ref[...]

    # --- residual 1 ---
    hres = attn + x

    # --- self.ff_self: LayerNorm -> Linear -> GELU -> Linear, + residual ---
    h_ln = _layernorm(hres, ln2w_ref[...], ln2b_ref[...])
    f = jnp.dot(h_ln, w1_ref[...], preferred_element_type=jnp.float32) + b1_ref[...]
    f = _gelu_exact(f)
    f = jnp.dot(f, w2_ref[...], preferred_element_type=jnp.float32) + b2_ref[...]

    o_ref[...] = f + hres


def _prep_weights(p):
    """Pre-transpose / pre-slice all weights once (hoisted out of the kernel)."""
    C, H, hd = CHANNELS, NUM_HEADS, HEAD_DIM
    in_w, in_b = p['in_w'], p['in_b']                  # (3C, C), (3C,)
    wq_t = in_w[0 * C:1 * C].T * INV_SQRT_HD           # fold 1/sqrt(hd) into q
    wk_t = in_w[1 * C:2 * C].T
    wv_t = in_w[2 * C:3 * C].T
    bq = in_b[0 * C:1 * C] * INV_SQRT_HD
    bk = in_b[1 * C:2 * C]
    bv = in_b[2 * C:3 * C]

    def per_head(w_t):                                 # (C, C) -> (H, C, hd)
        return w_t.reshape(C, H, hd).transpose(1, 0, 2)

    weights = [
        p['ln1_w'].reshape(1, C), p['ln1_b'].reshape(1, C),
        per_head(wq_t), bq.reshape(H, 1, hd),
        per_head(wk_t), bk.reshape(H, 1, hd),
        per_head(wv_t), bv.reshape(H, 1, hd),
        p['out_w'].T.reshape(H, hd, C), p['out_b'].reshape(1, C),
        p['ln2_w'].reshape(1, C), p['ln2_b'].reshape(1, C),
        p['ff1_w'].T, p['ff1_b'].reshape(1, C),
        p['ff2_w'].T, p['ff2_b'].reshape(1, C),
    ]
    return [jnp.asarray(w, jnp.float32) for w in weights]


def self_attention_forward(x_nchw, params, batch_tile=None):
    """x_nchw: (B, C, size, size) float32 -> (B, C, size, size)."""
    B = x_nchw.shape[0]
    # TB batch elements per grid step (review: 32-256 for big B; VMEM-safe on
    # v5e's 16 MiB scoped default and v7x's 64 MiB physical).
    tb = batch_tile if batch_tile is not None else min(B, 64)
    grid_b = pl.cdiv(B, tb)
    b_pad = grid_b * tb

    x_tok = x_nchw.reshape(B, CHANNELS, SEQ).transpose(0, 2, 1)      # (B, S, C)
    x_2d = x_tok.reshape(B * SEQ, CHANNELS)                          # (B*S, C)
    if b_pad != B:
        x_2d = jnp.pad(x_2d, ((0, (b_pad - B) * SEQ), (0, 0)))

    weight_args = _prep_weights(params)

    x_spec = pl.BlockSpec((tb * SEQ, CHANNELS), lambda g: (g, 0))
    w_specs = [pl.BlockSpec(w.shape, lambda g, _n=w.ndim: (0,) * _n)
               for w in weight_args]
    out_spec = pl.BlockSpec((tb * SEQ, CHANNELS), lambda g: (g, 0))

    out_2d = pl.pallas_call(
        functools.partial(self_attn_kernel, tb=tb),
        out_shape=jax.ShapeDtypeStruct((b_pad * SEQ, CHANNELS), jnp.float32),
        grid=(grid_b,),
        in_specs=[x_spec] + w_specs,
        out_specs=out_spec,
        compiler_params=pltpu.CompilerParams(
            dimension_semantics=("parallel",)),    # shard batch tiles across TCs
    )(x_2d, *weight_args)

    out_2d = out_2d[:B * SEQ]
    return (out_2d.reshape(B, SEQ, CHANNELS)
            .transpose(0, 2, 1)
            .reshape(B, CHANNELS, SIZE, SIZE))


def reference_forward(x_nchw, p):
    """Pure-JAX reference replicating the PyTorch forward semantics."""
    B = x_nchw.shape[0]
    x = x_nchw.reshape(B, CHANNELS, SEQ).transpose(0, 2, 1)

    def ln(v, w, b):
        mu = v.mean(-1, keepdims=True)
        var = ((v - mu) ** 2).mean(-1, keepdims=True)
        return (v - mu) / jnp.sqrt(var + LN_EPS) * w + b

    x_ln = ln(x, p['ln1_w'], p['ln1_b'])
    qkv = x_ln @ p['in_w'].T + p['in_b']
    q, k, v = jnp.split(qkv, 3, axis=-1)

    def heads(t):
        return t.reshape(B, SEQ, NUM_HEADS, HEAD_DIM).transpose(0, 2, 1, 3)

    qh, kh, vh = heads(q), heads(k), heads(v)
    s = (qh @ kh.transpose(0, 1, 3, 2)) * INV_SQRT_HD
    a = jax.nn.softmax(s, axis=-1)
    ctx = (a @ vh).transpose(0, 2, 1, 3).reshape(B, SEQ, CHANNELS)
    attn = ctx @ p['out_w'].T + p['out_b']
    h = attn + x
    h_ln = ln(h, p['ln2_w'], p['ln2_b'])
    f = h_ln @ p['ff1_w'].T + p['ff1_b']
    f = 0.5 * f * (1.0 + jax.scipy.special.erf(f / SQRT2))
    f = f @ p['ff2_w'].T + p['ff2_b']
    out = f + h
    return out.transpose(0, 2, 1).reshape(B, CHANNELS, SIZE, SIZE)


def make_params(key):
    ks = jax.random.split(key, 8)
    s = 0.1
    return {
        # nn.LayerNorm([channels]) x2
        'ln1_w': jnp.ones((CHANNELS,), jnp.float32),
        'ln1_b': jnp.zeros((CHANNELS,), jnp.float32),
        'ln2_w': jnp.ones((CHANNELS,), jnp.float32),
        'ln2_b': jnp.zeros((CHANNELS,), jnp.float32),
        # nn.MultiheadAttention(channels, 4): in_proj (3C,C)+(3C,), out_proj (C,C)+(C,)
        'in_w':  s * jax.random.normal(ks[0], (3 * CHANNELS, CHANNELS), jnp.float32),
        'in_b':  s * jax.random.normal(ks[1], (3 * CHANNELS,), jnp.float32),
        'out_w': s * jax.random.normal(ks[2], (CHANNELS, CHANNELS), jnp.float32),
        'out_b': s * jax.random.normal(ks[3], (CHANNELS,), jnp.float32),
        # ff_self linears (C,C)+(C,) x2
        'ff1_w': s * jax.random.normal(ks[4], (CHANNELS, CHANNELS), jnp.float32),
        'ff1_b': s * jax.random.normal(ks[5], (CHANNELS,), jnp.float32),
        'ff2_w': s * jax.random.normal(ks[6], (CHANNELS, CHANNELS), jnp.float32),
        'ff2_b': s * jax.random.normal(ks[7], (CHANNELS,), jnp.float32),
    }


if __name__ == "__main__":
    key = jax.random.PRNGKey(0)
    k_x, k_p = jax.random.split(key)
    x = jax.random.normal(k_x, (2, CHANNELS, SIZE, SIZE), jnp.float32)  # NCHW
    params = make_params(k_p)

    out = self_attention_forward(x, params)
    out = jax.block_until_ready(out)

    ref = jax.block_until_ready(reference_forward(x, params))
    assert out.shape == (2, CHANNELS, SIZE, SIZE)
    # Tolerance relaxed from 2e-4 to 2e-3 solely because of the approximate EUP
    # reciprocal in the softmax normalization (review item); set approx=False in
    # self_attn_kernel to recover <=2e-4 agreement with the exact reference.
    np.testing.assert_allclose(np.asarray(out), np.asarray(ref), atol=2e-3, rtol=2e-3)

    print("KERNEL_OK")
</pallas_src>

<mosaic_0001>
module attributes {stable_mosaic.version = 11 : i64} {
  func.func @self_attn_kernel(%arg0: i32, %arg1: memref<128x32xf32, #tpu.memory_space<vmem>>, %arg2: memref<1x32xf32, #tpu.memory_space<vmem>>, %arg3: memref<1x32xf32, #tpu.memory_space<vmem>>, %arg4: memref<4x32x8xf32, #tpu.memory_space<vmem>>, %arg5: memref<4x1x8xf32, #tpu.memory_space<vmem>>, %arg6: memref<4x32x8xf32, #tpu.memory_space<vmem>>, %arg7: memref<4x1x8xf32, #tpu.memory_space<vmem>>, %arg8: memref<4x32x8xf32, #tpu.memory_space<vmem>>, %arg9: memref<4x1x8xf32, #tpu.memory_space<vmem>>, %arg10: memref<4x8x32xf32, #tpu.memory_space<vmem>>, %arg11: memref<1x32xf32, #tpu.memory_space<vmem>>, %arg12: memref<1x32xf32, #tpu.memory_space<vmem>>, %arg13: memref<1x32xf32, #tpu.memory_space<vmem>>, %arg14: memref<32x32xf32, #tpu.memory_space<vmem>>, %arg15: memref<1x32xf32, #tpu.memory_space<vmem>>, %arg16: memref<32x32xf32, #tpu.memory_space<vmem>>, %arg17: memref<1x32xf32, #tpu.memory_space<vmem>>, %arg18: memref<128x32xf32, #tpu.memory_space<vmem>>) attributes {dimension_semantics = [#tpu.dimension_semantics<parallel>], iteration_bounds = array<i64: 1>, scalar_prefetch = 0 : i64, scratch_operands = 0 : i64, tpu.core_type = #tpu.core_type<tc>, window_params = [{transform_indices = @transform_0, window_bounds = array<i64: 128, 32>}, {pipeline_mode = #tpu.pipeline_mode<synchronous>, transform_indices = @transform_1, window_bounds = array<i64: 1, 32>}, {pipeline_mode = #tpu.pipeline_mode<synchronous>, transform_indices = @transform_2, window_bounds = array<i64: 1, 32>}, {pipeline_mode = #tpu.pipeline_mode<synchronous>, transform_indices = @transform_3, window_bounds = array<i64: 4, 32, 8>}, {pipeline_mode = #tpu.pipeline_mode<synchronous>, transform_indices = @transform_4, window_bounds = array<i64: 4, 1, 8>}, {pipeline_mode = #tpu.pipeline_mode<synchronous>, transform_indices = @transform_5, window_bounds = array<i64: 4, 32, 8>}, {pipeline_mode = #tpu.pipeline_mode<synchronous>, transform_indices = @transform_6, window_bounds = array<i64: 4, 1, 8>}, {pipeline_mode = #tpu.pipeline_mode<synchronous>, transform_indices = @transform_7, window_bounds = array<i64: 4, 32, 8>}, {pipeline_mode = #tpu.pipeline_mode<synchronous>, transform_indices = @transform_8, window_bounds = array<i64: 4, 1, 8>}, {pipeline_mode = #tpu.pipeline_mode<synchronous>, transform_indices = @transform_9, window_bounds = array<i64: 4, 8, 32>}, {pipeline_mode = #tpu.pipeline_mode<synchronous>, transform_indices = @transform_10, window_bounds = array<i64: 1, 32>}, {pipeline_mode = #tpu.pipeline_mode<synchronous>, transform_indices = @transform_11, window_bounds = array<i64: 1, 32>}, {pipeline_mode = #tpu.pipeline_mode<synchronous>, transform_indices = @transform_12, window_bounds = array<i64: 1, 32>}, {pipeline_mode = #tpu.pipeline_mode<synchronous>, transform_indices = @transform_13, window_bounds = array<i64: 32, 32>}, {pipeline_mode = #tpu.pipeline_mode<synchronous>, transform_indices = @transform_14, window_bounds = array<i64: 1, 32>}, {pipeline_mode = #tpu.pipeline_mode<synchronous>, transform_indices = @transform_15, window_bounds = array<i64: 32, 32>}, {pipeline_mode = #tpu.pipeline_mode<synchronous>, transform_indices = @transform_16, window_bounds = array<i64: 1, 32>}, {transform_indices = @transform_17, window_bounds = array<i64: 128, 32>}]} {
    %c0 = arith.constant 0 : index
    %c0_0 = arith.constant 0 : index
    %0 = vector.load %arg1[%c0, %c0_0] : memref<128x32xf32, #tpu.memory_space<vmem>>, vector<128x32xf32>
    %c0_1 = arith.constant 0 : index
    %c0_2 = arith.constant 0 : index
    %1 = vector.load %arg2[%c0_1, %c0_2] : memref<1x32xf32, #tpu.memory_space<vmem>>, vector<1x32xf32>
    %c0_3 = arith.constant 0 : index
    %c0_4 = arith.constant 0 : index
    %2 = vector.load %arg3[%c0_3, %c0_4] : memref<1x32xf32, #tpu.memory_space<vmem>>, vector<1x32xf32>
    %cst = arith.constant dense<0.000000e+00> : vector<128xf32>
    %3 = vector.multi_reduction <add>, %0, %cst [1] : vector<128x32xf32> to vector<128xf32>
    %4 = vector.shape_cast %3 : vector<128xf32> to vector<128x1xf32>
    %cst_5 = arith.constant 3.200000e+01 : f32
    %5 = vector.broadcast %cst_5 : f32 to vector<128x1xf32>
    %6 = arith.divf %4, %5 : vector<128x1xf32>
    %7 = arith.mulf %0, %0 : vector<128x32xf32>
    %cst_6 = arith.constant dense<0.000000e+00> : vector<128xf32>
    %8 = vector.multi_reduction <add>, %7, %cst_6 [1] : vector<128x32xf32> to vector<128xf32>
    %9 = vector.shape_cast %8 : vector<128xf32> to vector<128x1xf32>
    %cst_7 = arith.constant 3.200000e+01 : f32
    %10 = vector.broadcast %cst_7 : f32 to vector<128x1xf32>
    %11 = arith.divf %9, %10 : vector<128x1xf32>
    %12 = arith.mulf %6, %6 : vector<128x1xf32>
    %13 = arith.subf %11, %12 : vector<128x1xf32>
    %14 = vector.broadcast %6 : vector<128x1xf32> to vector<128x32xf32>
    %15 = arith.subf %0, %14 : vector<128x32xf32>
    %cst_8 = arith.constant 9.99999974E-6 : f32
    %16 = vector.broadcast %cst_8 : f32 to vector<128x1xf32>
    %17 = arith.addf %13, %16 : vector<128x1xf32>
    %18 = math.rsqrt %17 : vector<128x1xf32>
    %19 = vector.broadcast %18 : vector<128x1xf32> to vector<128x32xf32>
    %20 = arith.mulf %15, %19 : vector<128x32xf32>
    %21 = vector.broadcast %1 : vector<1x32xf32> to vector<128x32xf32>
    %22 = arith.mulf %20, %21 : vector<128x32xf32>
    %23 = vector.broadcast %2 : vector<1x32xf32> to vector<128x32xf32>
    %24 = arith.addf %22, %23 : vector<128x32xf32>
    %cst_9 = arith.constant 0.000000e+00 : f32
    %25 = vector.broadcast %cst_9 : f32 to vector<128x32xf32>
    %c0_10 = arith.constant 0 : index
    %c0_11 = arith.constant 0 : index
    %c0_12 = arith.constant 0 : index
    %26 = vector.load %arg4[%c0_10, %c0_11, %c0_12] : memref<4x32x8xf32, #tpu.memory_space<vmem>>, vector<1x32x8xf32>
    %27 = vector.shape_cast %26 : vector<1x32x8xf32> to vector<32x8xf32>
    %cst_13 = arith.constant dense<0.000000e+00> : vector<128x8xf32>
    %28 = tpu.matmul %24, %27, %cst_13 {dimension_numbers = #tpu.dot_dimension_numbers<[1], [0], [0], [1], [0, 0, 1, 1], [], []>} : vector<128x32xf32>, vector<32x8xf32>, vector<128x8xf32> -> vector<128x8xf32>
    %c0_14 = arith.constant 0 : index
    %c0_15 = arith.constant 0 : index
    %c0_16 = arith.constant 0 : index
    %29 = vector.load %arg5[%c0_14, %c0_15, %c0_16] : memref<4x1x8xf32, #tpu.memory_space<vmem>>, vector<1x1x8xf32>
    %30 = vector.shape_cast %29 : vector<1x1x8xf32> to vector<1x8xf32>
    %31 = vector.broadcast %30 : vector<1x8xf32> to vector<128x8xf32>
    %32 = arith.addf %28, %31 : vector<128x8xf32>
    %c0_17 = arith.constant 0 : index
    %c0_18 = arith.constant 0 : index
    %c0_19 = arith.constant 0 : index
    %33 = vector.load %arg6[%c0_17, %c0_18, %c0_19] : memref<4x32x8xf32, #tpu.memory_space<vmem>>, vector<1x32x8xf32>
    %34 = vector.shape_cast %33 : vector<1x32x8xf32> to vector<32x8xf32>
    %cst_20 = arith.constant dense<0.000000e+00> : vector<128x8xf32>
    %35 = tpu.matmul %24, %34, %cst_20 {dimension_numbers = #tpu.dot_dimension_numbers<[1], [0], [0], [1], [0, 0, 1, 1], [], []>} : vector<128x32xf32>, vector<32x8xf32>, vector<128x8xf32> -> vector<128x8xf32>
    %c0_21 = arith.constant 0 : index
    %c0_22 = arith.constant 0 : index
    %c0_23 = arith.constant 0 : index
    %36 = vector.load %arg7[%c0_21, %c0_22, %c0_23] : memref<4x1x8xf32, #tpu.memory_space<vmem>>, vector<1x1x8xf32>
    %37 = vector.shape_cast %36 : vector<1x1x8xf32> to vector<1x8xf32>
    %38 = vector.broadcast %37 : vector<1x8xf32> to vector<128x8xf32>
    %39 = arith.addf %35, %38 : vector<128x8xf32>
    %c0_24 = arith.constant 0 : index
    %c0_25 = arith.constant 0 : index
    %c0_26 = arith.constant 0 : index
    %40 = vector.load %arg8[%c0_24, %c0_25, %c0_26] : memref<4x32x8xf32, #tpu.memory_space<vmem>>, vector<1x32x8xf32>
    %41 = vector.shape_cast %40 : vector<1x32x8xf32> to vector<32x8xf32>
    %cst_27 = arith.constant dense<0.000000e+00> : vector<128x8xf32>
    %42 = tpu.matmul %24, %41, %cst_27 {dimension_numbers = #tpu.dot_dimension_numbers<[1], [0], [0], [1], [0, 0, 1, 1], [], []>} : vector<128x32xf32>, vector<32x8xf32>, vector<128x8xf32> -> vector<128x8xf32>
    %c0_28 = arith.constant 0 : index
    %c0_29 = arith.constant 0 : index
    %c0_30 = arith.constant 0 : index
    %43 = vector.load %arg9[%c0_28, %c0_29, %c0_30] : memref<4x1x8xf32, #tpu.memory_space<vmem>>, vector<1x1x8xf32>
    %44 = vector.shape_cast %43 : vector<1x1x8xf32> to vector<1x8xf32>
    %45 = vector.broadcast %44 : vector<1x8xf32> to vector<128x8xf32>
    %46 = arith.addf %42, %45 : vector<128x8xf32>
    %47 = vector.shape_cast %32 : vector<128x8xf32> to vector<2x64x8xf32>
    %48 = vector.shape_cast %39 : vector<128x8xf32> to vector<2x64x8xf32>
    %49 = vector.shape_cast %46 : vector<128x8xf32> to vector<2x64x8xf32>
    "tpu.trace_start"() <{level = 10 : i32, message = "bqd,bkd->bqk"}> : () -> ()
    %cst_31 = arith.constant dense<0.000000e+00> : vector<2x64x64xf32>
    %50 = tpu.matmul %47, %48, %cst_31 {dimension_numbers = #tpu.dot_dimension_numbers<[2], [2], [1], [1], [0, 0, 0, 1, 1, 1], [0], [0]>} : vector<2x64x8xf32>, vector<2x64x8xf32>, vector<2x64x64xf32> -> vector<2x64x64xf32>
    "tpu.trace_stop"() : () -> ()
    %cst_32 = arith.constant dense<0xFF800000> : vector<2x64xf32>
    %51 = vector.multi_reduction <maximumf>, %50, %cst_32 [2] : vector<2x64x64xf32> to vector<2x64xf32>
    %52 = vector.shape_cast %51 : vector<2x64xf32> to vector<2x64x1xf32>
    %53 = vector.broadcast %52 : vector<2x64x1xf32> to vector<2x64x64xf32>
    %54 = arith.subf %50, %53 : vector<2x64x64xf32>
    %55 = math.exp %54 : vector<2x64x64xf32>
    %cst_33 = arith.constant dense<0.000000e+00> : vector<2x64xf32>
    %56 = vector.multi_reduction <add>, %55, %cst_33 [2] : vector<2x64x64xf32> to vector<2x64xf32>
    %57 = vector.shape_cast %56 : vector<2x64xf32> to vector<2x64x1xf32>
    "tpu.trace_start"() <{level = 10 : i32, message = "bqk,bkd->bqd"}> : () -> ()
    %cst_34 = arith.constant dense<0.000000e+00> : vector<2x64x8xf32>
    %58 = tpu.matmul %55, %49, %cst_34 {dimension_numbers = #tpu.dot_dimension_numbers<[2], [1], [1], [2], [0, 0, 0, 1, 1, 2], [0], [0]>} : vector<2x64x64xf32>, vector<2x64x8xf32>, vector<2x64x8xf32> -> vector<2x64x8xf32>
    "tpu.trace_stop"() : () -> ()
    %59 = tpu.reciprocal %57 {approx = true} : vector<2x64x1xf32> -> vector<2x64x1xf32>
    %60 = vector.broadcast %59 : vector<2x64x1xf32> to vector<2x64x8xf32>
    %61 = arith.mulf %58, %60 : vector<2x64x8xf32>
    %62 = vector.shape_cast %61 : vector<2x64x8xf32> to vector<128x8xf32>
    %c0_35 = arith.constant 0 : index
    %c0_36 = arith.constant 0 : index
    %c0_37 = arith.constant 0 : index
    %63 = vector.load %arg10[%c0_35, %c0_36, %c0_37] : memref<4x8x32xf32, #tpu.memory_space<vmem>>, vector<1x8x32xf32>
    %64 = vector.shape_cast %63 : vector<1x8x32xf32> to vector<8x32xf32>
    %cst_38 = arith.constant dense<0.000000e+00> : vector<128x32xf32>
    %65 = tpu.matmul %62, %64, %cst_38 {dimension_numbers = #tpu.dot_dimension_numbers<[1], [0], [0], [1], [0, 0, 1, 1], [], []>} : vector<128x8xf32>, vector<8x32xf32>, vector<128x32xf32> -> vector<128x32xf32>
    %66 = arith.addf %25, %65 : vector<128x32xf32>
    %c1 = arith.constant 1 : index
    %c0_39 = arith.constant 0 : index
    %c0_40 = arith.constant 0 : index
    %67 = vector.load %arg4[%c1, %c0_39, %c0_40] : memref<4x32x8xf32, #tpu.memory_space<vmem>>, vector<1x32x8xf32>
    %68 = vector.shape_cast %67 : vector<1x32x8xf32> to vector<32x8xf32>
    %cst_41 = arith.constant dense<0.000000e+00> : vector<128x8xf32>
    %69 = tpu.matmul %24, %68, %cst_41 {dimension_numbers = #tpu.dot_dimension_numbers<[1], [0], [0], [1], [0, 0, 1, 1], [], []>} : vector<128x32xf32>, vector<32x8xf32>, vector<128x8xf32> -> vector<128x8xf32>
    %c1_42 = arith.constant 1 : index
    %c0_43 = arith.constant 0 : index
    %c0_44 = arith.constant 0 : index
    %70 = vector.load %arg5[%c1_42, %c0_43, %c0_44] : memref<4x1x8xf32, #tpu.memory_space<vmem>>, vector<1x1x8xf32>
    %71 = vector.shape_cast %70 : vector<1x1x8xf32> to vector<1x8xf32>
    %72 = vector.broadcast %71 : vector<1x8xf32> to vector<128x8xf32>
    %73 = arith.addf %69, %72 : vector<128x8xf32>
    %c1_45 = arith.constant 1 : index
    %c0_46 = arith.constant 0 : index
    %c0_47 = arith.constant 0 : index
    %74 = vector.load %arg6[%c1_45, %c0_46, %c0_47] : memref<4x32x8xf32, #tpu.memory_space<vmem>>, vector<1x32x8xf32>
    %75 = vector.shape_cast %74 : vector<1x32x8xf32> to vector<32x8xf32>
    %cst_48 = arith.constant dense<0.000000e+00> : vector<128x8xf32>
    %76 = tpu.matmul %24, %75, %cst_48 {dimension_numbers = #tpu.dot_dimension_numbers<[1], [0], [0], [1], [0, 0, 1, 1], [], []>} : vector<128x32xf32>, vector<32x8xf32>, vector<128x8xf32> -> vector<128x8xf32>
    %c1_49 = arith.constant 1 : index
    %c0_50 = arith.constant 0 : index
    %c0_51 = arith.constant 0 : index
    %77 = vector.load %arg7[%c1_49, %c0_50, %c0_51] : memref<4x1x8xf32, #tpu.memory_space<vmem>>, vector<1x1x8xf32>
    %78 = vector.shape_cast %77 : vector<1x1x8xf32> to vector<1x8xf32>
    %79 = vector.broadcast %78 : vector<1x8xf32> to vector<128x8xf32>
    %80 = arith.addf %76, %79 : vector<128x8xf32>
    %c1_52 = arith.constant 1 : index
    %c0_53 = arith.constant 0 : index
    %c0_54 = arith.constant 0 : index
    %81 = vector.load %arg8[%c1_52, %c0_53, %c0_54] : memref<4x32x8xf32, #tpu.memory_space<vmem>>, vector<1x32x8xf32>
    %82 = vector.shape_cast %81 : vector<1x32x8xf32> to vector<32x8xf32>
    %cst_55 = arith.constant dense<0.000000e+00> : vector<128x8xf32>
    %83 = tpu.matmul %24, %82, %cst_55 {dimension_numbers = #tpu.dot_dimension_numbers<[1], [0], [0], [1], [0, 0, 1, 1], [], []>} : vector<128x32xf32>, vector<32x8xf32>, vector<128x8xf32> -> vector<128x8xf32>
    %c1_56 = arith.constant 1 : index
    %c0_57 = arith.constant 0 : index
    %c0_58 = arith.constant 0 : index
    %84 = vector.load %arg9[%c1_56, %c0_57, %c0_58] : memref<4x1x8xf32, #tpu.memory_space<vmem>>, vector<1x1x8xf32>
    %85 = vector.shape_cast %84 : vector<1x1x8xf32> to vector<1x8xf32>
    %86 = vector.broadcast %85 : vector<1x8xf32> to vector<128x8xf32>
    %87 = arith.addf %83, %86 : vector<128x8xf32>
    %88 = vector.shape_cast %73 : vector<128x8xf32> to vector<2x64x8xf32>
    %89 = vector.shape_cast %80 : vector<128x8xf32> to vector<2x64x8xf32>
    %90 = vector.shape_cast %87 : vector<128x8xf32> to vector<2x64x8xf32>
    "tpu.trace_start"() <{level = 10 : i32, message = "bqd,bkd->bqk"}> : () -> ()
    %cst_59 = arith.constant dense<0.000000e+00> : vector<2x64x64xf32>
    %91 = tpu.matmul %88, %89, %cst_59 {dimension_numbers = #tpu.dot_dimension_numbers<[2], [2], [1], [1], [0, 0, 0, 1, 1, 1], [0], [0]>} : vector<2x64x8xf32>, vector<2x64x8xf32>, vector<2x64x64xf32> -> vector<2x64x64xf32>
    "tpu.trace_stop"() : () -> ()
    %cst_60 = arith.constant dense<0xFF800000> : vector<2x64xf32>
    %92 = vector.multi_reduction <maximumf>, %91, %cst_60 [2] : vector<2x64x64xf32> to vector<2x64xf32>
    %93 = vector.shape_cast %92 : vector<2x64xf32> to vector<2x64x1xf32>
    %94 = vector.broadcast %93 : vector<2x64x1xf32> to vector<2x64x64xf32>
    %95 = arith.subf %91, %94 : vector<2x64x64xf32>
    %96 = math.exp %95 : vector<2x64x64xf32>
    %cst_61 = arith.constant dense<0.000000e+00> : vector<2x64xf32>
    %97 = vector.multi_reduction <add>, %96, %cst_61 [2] : vector<2x64x64xf32> to vector<2x64xf32>
    %98 = vector.shape_cast %97 : vector<2x64xf32> to vector<2x64x1xf32>
    "tpu.trace_start"() <{level = 10 : i32, message = "bqk,bkd->bqd"}> : () -> ()
    %cst_62 = arith.constant dense<0.000000e+00> : vector<2x64x8xf32>
    %99 = tpu.matmul %96, %90, %cst_62 {dimension_numbers = #tpu.dot_dimension_numbers<[2], [1], [1], [2], [0, 0, 0, 1, 1, 2], [0], [0]>} : vector<2x64x64xf32>, vector<2x64x8xf32>, vector<2x64x8xf32> -> vector<2x64x8xf32>
    "tpu.trace_stop"() : () -> ()
    %100 = tpu.reciprocal %98 {approx = true} : vector<2x64x1xf32> -> vector<2x64x1xf32>
    %101 = vector.broadcast %100 : vector<2x64x1xf32> to vector<2x64x8xf32>
    %102 = arith.mulf %99, %101 : vector<2x64x8xf32>
    %103 = vector.shape_cast %102 : vector<2x64x8xf32> to vector<128x8xf32>
    %c1_63 = arith.constant 1 : index
    %c0_64 = arith.constant 0 : index
    %c0_65 = arith.constant 0 : index
    %104 = vector.load %arg10[%c1_63, %c0_64, %c0_65] : memref<4x8x32xf32, #tpu.memory_space<vmem>>, vector<1x8x32xf32>
    %105 = vector.shape_cast %104 : vector<1x8x32xf32> to vector<8x32xf32>
    %cst_66 = arith.constant dense<0.000000e+00> : vector<128x32xf32>
    %106 = tpu.matmul %103, %105, %cst_66 {dimension_numbers = #tpu.dot_dimension_numbers<[1], [0], [0], [1], [0, 0, 1, 1], [], []>} : vector<128x8xf32>, vector<8x32xf32>, vector<128x32xf32> -> vector<128x32xf32>
    %107 = arith.addf %66, %106 : vector<128x32xf32>
    %c2 = arith.constant 2 : index
    %c0_67 = arith.constant 0 : index
    %c0_68 = arith.constant 0 : index
    %108 = vector.load %arg4[%c2, %c0_67, %c0_68] : memref<4x32x8xf32, #tpu.memory_space<vmem>>, vector<1x32x8xf32>
    %109 = vector.shape_cast %108 : vector<1x32x8xf32> to vector<32x8xf32>
    %cst_69 = arith.constant dense<0.000000e+00> : vector<128x8xf32>
    %110 = tpu.matmul %24, %109, %cst_69 {dimension_numbers = #tpu.dot_dimension_numbers<[1], [0], [0], [1], [0, 0, 1, 1], [], []>} : vector<128x32xf32>, vector<32x8xf32>, vector<128x8xf32> -> vector<128x8xf32>
    %c2_70 = arith.constant 2 : index
    %c0_71 = arith.constant 0 : index
    %c0_72 = arith.constant 0 : index
    %111 = vector.load %arg5[%c2_70, %c0_71, %c0_72] : memref<4x1x8xf32, #tpu.memory_space<vmem>>, vector<1x1x8xf32>
    %112 = vector.shape_cast %111 : vector<1x1x8xf32> to vector<1x8xf32>
    %113 = vector.broadcast %112 : vector<1x8xf32> to vector<128x8xf32>
    %114 = arith.addf %110, %113 : vector<128x8xf32>
    %c2_73 = arith.constant 2 : index
    %c0_74 = arith.constant 0 : index
    %c0_75 = arith.constant 0 : index
    %115 = vector.load %arg6[%c2_73, %c0_74, %c0_75] : memref<4x32x8xf32, #tpu.memory_space<vmem>>, vector<1x32x8xf32>
    %116 = vector.shape_cast %115 : vector<1x32x8xf32> to vector<32x8xf32>
    %cst_76 = arith.constant dense<0.000000e+00> : vector<128x8xf32>
    %117 = tpu.matmul %24, %116, %cst_76 {dimension_numbers = #tpu.dot_dimension_numbers<[1], [0], [0], [1], [0, 0, 1, 1], [], []>} : vector<128x32xf32>, vector<32x8xf32>, vector<128x8xf32> -> vector<128x8xf32>
    %c2_77 = arith.constant 2 : index
    %c0_78 = arith.constant 0 : index
    %c0_79 = arith.constant 0 : index
    %118 = vector.load %arg7[%c2_77, %c0_78, %c0_79] : memref<4x1x8xf32, #tpu.memory_space<vmem>>, vector<1x1x8xf32>
    %119 = vector.shape_cast %118 : vector<1x1x8xf32> to vector<1x8xf32>
    %120 = vector.broadcast %119 : vector<1x8xf32> to vector<128x8xf32>
    %121 = arith.addf %117, %120 : vector<128x8xf32>
    %c2_80 = arith.constant 2 : index
    %c0_81 = arith.constant 0 : index
    %c0_82 = arith.constant 0 : index
    %122 = vector.load %arg8[%c2_80, %c0_81, %c0_82] : memref<4x32x8xf32, #tpu.memory_space<vmem>>, vector<1x32x8xf32>
    %123 = vector.shape_cast %122 : vector<1x32x8xf32> to vector<32x8xf32>
    %cst_83 = arith.constant dense<0.000000e+00> : vector<128x8xf32>
    %124 = tpu.matmul %24, %123, %cst_83 {dimension_numbers = #tpu.dot_dimension_numbers<[1], [0], [0], [1], [0, 0, 1, 1], [], []>} : vector<128x32xf32>, vector<32x8xf32>, vector<128x8xf32> -> vector<128x8xf32>
    %c2_84 = arith.constant 2 : index
    %c0_85 = arith.constant 0 : index
    %c0_86 = arith.constant 0 : index
    %125 = vector.load %arg9[%c2_84, %c0_85, %c0_86] : memref<4x1x8xf32, #tpu.memory_space<vmem>>, vector<1x1x8xf32>
    %126 = vector.shape_cast %125 : vector<1x1x8xf32> to vector<1x8xf32>
    %127 = vector.broadcast %126 : vector<1x8xf32> to vector<128x8xf32>
    %128 = arith.addf %124, %127 : vector<128x8xf32>
    %129 = vector.shape_cast %114 : vector<128x8xf32> to vector<2x64x8xf32>
    %130 = vector.shape_cast %121 : vector<128x8xf32> to vector<2x64x8xf32>
    %131 = vector.shape_cast %128 : vector<128x8xf32> to vector<2x64x8xf32>
    "tpu.trace_start"() <{level = 10 : i32, message = "bqd,bkd->bqk"}> : () -> ()
    %cst_87 = arith.constant dense<0.000000e+00> : vector<2x64x64xf32>
    %132 = tpu.matmul %129, %130, %cst_87 {dimension_numbers = #tpu.dot_dimension_numbers<[2], [2], [1], [1], [0, 0, 0, 1, 1, 1], [0], [0]>} : vector<2x64x8xf32>, vector<2x64x8xf32>, vector<2x64x64xf32> -> vector<2x64x64xf32>
    "tpu.trace_stop"() : () -> ()
    %cst_88 = arith.constant dense<0xFF800000> : vector<2x64xf32>
    %133 = vector.multi_reduction <maximumf>, %132, %cst_88 [2] : vector<2x64x64xf32> to vector<2x64xf32>
    %134 = vector.shape_cast %133 : vector<2x64xf32> to vector<2x64x1xf32>
    %135 = vector.broadcast %134 : vector<2x64x1xf32> to vector<2x64x64xf32>
    %136 = arith.subf %132, %135 : vector<2x64x64xf32>
    %137 = math.exp %136 : vector<2x64x64xf32>
    %cst_89 = arith.constant dense<0.000000e+00> : vector<2x64xf32>
    %138 = vector.multi_reduction <add>, %137, %cst_89 [2] : vector<2x64x64xf32> to vector<2x64xf32>
    %139 = vector.shape_cast %138 : vector<2x64xf32> to vector<2x64x1xf32>
    "tpu.trace_start"() <{level = 10 : i32, message = "bqk,bkd->bqd"}> : () -> ()
    %cst_90 = arith.constant dense<0.000000e+00> : vector<2x64x8xf32>
    %140 = tpu.matmul %137, %131, %cst_90 {dimension_numbers = #tpu.dot_dimension_numbers<[2], [1], [1], [2], [0, 0, 0, 1, 1, 2], [0], [0]>} : vector<2x64x64xf32>, vector<2x64x8xf32>, vector<2x64x8xf32> -> vector<2x64x8xf32>
    "tpu.trace_stop"() : () -> ()
    %141 = tpu.reciprocal %139 {approx = true} : vector<2x64x1xf32> -> vector<2x64x1xf32>
    %142 = vector.broadcast %141 : vector<2x64x1xf32> to vector<2x64x8xf32>
    %143 = arith.mulf %140, %142 : vector<2x64x8xf32>
    %144 = vector.shape_cast %143 : vector<2x64x8xf32> to vector<128x8xf32>
    %c2_91 = arith.constant 2 : index
    %c0_92 = arith.constant 0 : index
    %c0_93 = arith.constant 0 : index
    %145 = vector.load %arg10[%c2_91, %c0_92, %c0_93] : memref<4x8x32xf32, #tpu.memory_space<vmem>>, vector<1x8x32xf32>
    %146 = vector.shape_cast %145 : vector<1x8x32xf32> to vector<8x32xf32>
    %cst_94 = arith.constant dense<0.000000e+00> : vector<128x32xf32>
    %147 = tpu.matmul %144, %146, %cst_94 {dimension_numbers = #tpu.dot_dimension_numbers<[1], [0], [0], [1], [0, 0, 1, 1], [], []>} : vector<128x8xf32>, vector<8x32xf32>, vector<128x32xf32> -> vector<128x32xf32>
    %148 = arith.addf %107, %147 : vector<128x32xf32>
    %c3 = arith.constant 3 : index
    %c0_95 = arith.constant 0 : index
    %c0_96 = arith.constant 0 : index
    %149 = vector.load %arg4[%c3, %c0_95, %c0_96] : memref<4x32x8xf32, #tpu.memory_space<vmem>>, vector<1x32x8xf32>
    %150 = vector.shape_cast %149 : vector<1x32x8xf32> to vector<32x8xf32>
    %cst_97 = arith.constant dense<0.000000e+00> : vector<128x8xf32>
    %151 = tpu.matmul %24, %150, %cst_97 {dimension_numbers = #tpu.dot_dimension_numbers<[1], [0], [0], [1], [0, 0, 1, 1], [], []>} : vector<128x32xf32>, vector<32x8xf32>, vector<128x8xf32> -> vector<128x8xf32>
    %c3_98 = arith.constant 3 : index
    %c0_99 = arith.constant 0 : index
    %c0_100 = arith.constant 0 : index
    %152 = vector.load %arg5[%c3_98, %c0_99, %c0_100] : memref<4x1x8xf32, #tpu.memory_space<vmem>>, vector<1x1x8xf32>
    %153 = vector.shape_cast %152 : vector<1x1x8xf32> to vector<1x8xf32>
    %154 = vector.broadcast %153 : vector<1x8xf32> to vector<128x8xf32>
    %155 = arith.addf %151, %154 : vector<128x8xf32>
    %c3_101 = arith.constant 3 : index
    %c0_102 = arith.constant 0 : index
    %c0_103 = arith.constant 0 : index
    %156 = vector.load %arg6[%c3_101, %c0_102, %c0_103] : memref<4x32x8xf32, #tpu.memory_space<vmem>>, vector<1x32x8xf32>
    %157 = vector.shape_cast %156 : vector<1x32x8xf32> to vector<32x8xf32>
    %cst_104 = arith.constant dense<0.000000e+00> : vector<128x8xf32>
    %158 = tpu.matmul %24, %157, %cst_104 {dimension_numbers = #tpu.dot_dimension_numbers<[1], [0], [0], [1], [0, 0, 1, 1], [], []>} : vector<128x32xf32>, vector<32x8xf32>, vector<128x8xf32> -> vector<128x8xf32>
    %c3_105 = arith.constant 3 : index
    %c0_106 = arith.constant 0 : index
    %c0_107 = arith.constant 0 : index
    %159 = vector.load %arg7[%c3_105, %c0_106, %c0_107] : memref<4x1x8xf32, #tpu.memory_space<vmem>>, vector<1x1x8xf32>
    %160 = vector.shape_cast %159 : vector<1x1x8xf32> to vector<1x8xf32>
    %161 = vector.broadcast %160 : vector<1x8xf32> to vector<128x8xf32>
    %162 = arith.addf %158, %161 : vector<128x8xf32>
    %c3_108 = arith.constant 3 : index
    %c0_109 = arith.constant 0 : index
    %c0_110 = arith.constant 0 : index
    %163 = vector.load %arg8[%c3_108, %c0_109, %c0_110] : memref<4x32x8xf32, #tpu.memory_space<vmem>>, vector<1x32x8xf32>
    %164 = vector.shape_cast %163 : vector<1x32x8xf32> to vector<32x8xf32>
    %cst_111 = arith.constant dense<0.000000e+00> : vector<128x8xf32>
    %165 = tpu.matmul %24, %164, %cst_111 {dimension_numbers = #tpu.dot_dimension_numbers<[1], [0], [0], [1], [0, 0, 1, 1], [], []>} : vector<128x32xf32>, vector<32x8xf32>, vector<128x8xf32> -> vector<128x8xf32>
    %c3_112 = arith.constant 3 : index
    %c0_113 = arith.constant 0 : index
    %c0_114 = arith.constant 0 : index
    %166 = vector.load %arg9[%c3_112, %c0_113, %c0_114] : memref<4x1x8xf32, #tpu.memory_space<vmem>>, vector<1x1x8xf32>
    %167 = vector.shape_cast %166 : vector<1x1x8xf32> to vector<1x8xf32>
    %168 = vector.broadcast %167 : vector<1x8xf32> to vector<128x8xf32>
    %169 = arith.addf %165, %168 : vector<128x8xf32>
    %170 = vector.shape_cast %155 : vector<128x8xf32> to vector<2x64x8xf32>
    %171 = vector.shape_cast %162 : vector<128x8xf32> to vector<2x64x8xf32>
    %172 = vector.shape_cast %169 : vector<128x8xf32> to vector<2x64x8xf32>
    "tpu.trace_start"() <{level = 10 : i32, message = "bqd,bkd->bqk"}> : () -> ()
    %cst_115 = arith.constant dense<0.000000e+00> : vector<2x64x64xf32>
    %173 = tpu.matmul %170, %171, %cst_115 {dimension_numbers = #tpu.dot_dimension_numbers<[2], [2], [1], [1], [0, 0, 0, 1, 1, 1], [0], [0]>} : vector<2x64x8xf32>, vector<2x64x8xf32>, vector<2x64x64xf32> -> vector<2x64x64xf32>
    "tpu.trace_stop"() : () -> ()
    %cst_116 = arith.constant dense<0xFF800000> : vector<2x64xf32>
    %174 = vector.multi_reduction <maximumf>, %173, %cst_116 [2] : vector<2x64x64xf32> to vector<2x64xf32>
    %175 = vector.shape_cast %174 : vector<2x64xf32> to vector<2x64x1xf32>
    %176 = vector.broadcast %175 : vector<2x64x1xf32> to vector<2x64x64xf32>
    %177 = arith.subf %173, %176 : vector<2x64x64xf32>
    %178 = math.exp %177 : vector<2x64x64xf32>
    %cst_117 = arith.constant dense<0.000000e+00> : vector<2x64xf32>
    %179 = vector.multi_reduction <add>, %178, %cst_117 [2] : vector<2x64x64xf32> to vector<2x64xf32>
    %180 = vector.shape_cast %179 : vector<2x64xf32> to vector<2x64x1xf32>
    "tpu.trace_start"() <{level = 10 : i32, message = "bqk,bkd->bqd"}> : () -> ()
    %cst_118 = arith.constant dense<0.000000e+00> : vector<2x64x8xf32>
    %181 = tpu.matmul %178, %172, %cst_118 {dimension_numbers = #tpu.dot_dimension_numbers<[2], [1], [1], [2], [0, 0, 0, 1, 1, 2], [0], [0]>} : vector<2x64x64xf32>, vector<2x64x8xf32>, vector<2x64x8xf32> -> vector<2x64x8xf32>
    "tpu.trace_stop"() : () -> ()
    %182 = tpu.reciprocal %180 {approx = true} : vector<2x64x1xf32> -> vector<2x64x1xf32>
    %183 = vector.broadcast %182 : vector<2x64x1xf32> to vector<2x64x8xf32>
    %184 = arith.mulf %181, %183 : vector<2x64x8xf32>
    %185 = vector.shape_cast %184 : vector<2x64x8xf32> to vector<128x8xf32>
    %c3_119 = arith.constant 3 : index
    %c0_120 = arith.constant 0 : index
    %c0_121 = arith.constant 0 : index
    %186 = vector.load %arg10[%c3_119, %c0_120, %c0_121] : memref<4x8x32xf32, #tpu.memory_space<vmem>>, vector<1x8x32xf32>
    %187 = vector.shape_cast %186 : vector<1x8x32xf32> to vector<8x32xf32>
    %cst_122 = arith.constant dense<0.000000e+00> : vector<128x32xf32>
    %188 = tpu.matmul %185, %187, %cst_122 {dimension_numbers = #tpu.dot_dimension_numbers<[1], [0], [0], [1], [0, 0, 1, 1], [], []>} : vector<128x8xf32>, vector<8x32xf32>, vector<128x32xf32> -> vector<128x32xf32>
    %189 = arith.addf %148, %188 : vector<128x32xf32>
    %c0_123 = arith.constant 0 : index
    %c0_124 = arith.constant 0 : index
    %190 = vector.load %arg11[%c0_123, %c0_124] : memref<1x32xf32, #tpu.memory_space<vmem>>, vector<1x32xf32>
    %191 = vector.broadcast %190 : vector<1x32xf32> to vector<128x32xf32>
    %192 = arith.addf %189, %191 : vector<128x32xf32>
    %193 = arith.addf %192, %0 : vector<128x32xf32>
    %c0_125 = arith.constant 0 : index
    %c0_126 = arith.constant 0 : index
    %194 = vector.load %arg12[%c0_125, %c0_126] : memref<1x32xf32, #tpu.memory_space<vmem>>, vector<1x32xf32>
    %c0_127 = arith.constant 0 : index
    %c0_128 = arith.constant 0 : index
    %195 = vector.load %arg13[%c0_127, %c0_128] : memref<1x32xf32, #tpu.memory_space<vmem>>, vector<1x32xf32>
    %cst_129 = arith.constant dense<0.000000e+00> : vector<128xf32>
    %196 = vector.multi_reduction <add>, %193, %cst_129 [1] : vector<128x32xf32> to vector<128xf32>
    %197 = vector.shape_cast %196 : vector<128xf32> to vector<128x1xf32>
    %cst_130 = arith.constant 3.200000e+01 : f32
    %198 = vector.broadcast %cst_130 : f32 to vector<128x1xf32>
    %199 = arith.divf %197, %198 : vector<128x1xf32>
    %200 = arith.mulf %193, %193 : vector<128x32xf32>
    %cst_131 = arith.constant dense<0.000000e+00> : vector<128xf32>
    %201 = vector.multi_reduction <add>, %200, %cst_131 [1] : vector<128x32xf32> to vector<128xf32>
    %202 = vector.shape_cast %201 : vector<128xf32> to vector<128x1xf32>
    %cst_132 = arith.constant 3.200000e+01 : f32
    %203 = vector.broadcast %cst_132 : f32 to vector<128x1xf32>
    %204 = arith.divf %202, %203 : vector<128x1xf32>
    %205 = arith.mulf %199, %199 : vector<128x1xf32>
    %206 = arith.subf %204, %205 : vector<128x1xf32>
    %207 = vector.broadcast %199 : vector<128x1xf32> to vector<128x32xf32>
    %208 = arith.subf %193, %207 : vector<128x32xf32>
    %cst_133 = arith.constant 9.99999974E-6 : f32
    %209 = vector.broadcast %cst_133 : f32 to vector<128x1xf32>
    %210 = arith.addf %206, %209 : vector<128x1xf32>
    %211 = math.rsqrt %210 : vector<128x1xf32>
    %212 = vector.broadcast %211 : vector<128x1xf32> to vector<128x32xf32>
    %213 = arith.mulf %208, %212 : vector<128x32xf32>
    %214 = vector.broadcast %194 : vector<1x32xf32> to vector<128x32xf32>
    %215 = arith.mulf %213, %214 : vector<128x32xf32>
    %216 = vector.broadcast %195 : vector<1x32xf32> to vector<128x32xf32>
    %217 = arith.addf %215, %216 : vector<128x32xf32>
    %c0_134 = arith.constant 0 : index
    %c0_135 = arith.constant 0 : index
    %218 = vector.load %arg14[%c0_134, %c0_135] : memref<32x32xf32, #tpu.memory_space<vmem>>, vector<32x32xf32>
    %cst_136 = arith.constant dense<0.000000e+00> : vector<128x32xf32>
    %219 = tpu.matmul %217, %218, %cst_136 {dimension_numbers = #tpu.dot_dimension_numbers<[1], [0], [0], [1], [0, 0, 1, 1], [], []>} : vector<128x32xf32>, vector<32x32xf32>, vector<128x32xf32> -> vector<128x32xf32>
    %c0_137 = arith.constant 0 : index
    %c0_138 = arith.constant 0 : index
    %220 = vector.load %arg15[%c0_137, %c0_138] : memref<1x32xf32, #tpu.memory_space<vmem>>, vector<1x32xf32>
    %221 = vector.broadcast %220 : vector<1x32xf32> to vector<128x32xf32>
    %222 = arith.addf %219, %221 : vector<128x32xf32>
    %cst_139 = arith.constant 5.000000e-01 : f32
    %223 = vector.broadcast %cst_139 : f32 to vector<128x32xf32>
    %224 = arith.mulf %223, %222 : vector<128x32xf32>
    %cst_140 = arith.constant 1.41421354 : f32
    %225 = vector.broadcast %cst_140 : f32 to vector<128x32xf32>
    %226 = arith.divf %222, %225 : vector<128x32xf32>
    %227 = math.erf %226 : vector<128x32xf32>
    %cst_141 = arith.constant 1.000000e+00 : f32
    %228 = vector.broadcast %cst_141 : f32 to vector<128x32xf32>
    %229 = arith.addf %228, %227 : vector<128x32xf32>
    %230 = arith.mulf %224, %229 : vector<128x32xf32>
    %c0_142 = arith.constant 0 : index
    %c0_143 = arith.constant 0 : index
    %231 = vector.load %arg16[%c0_142, %c0_143] : memref<32x32xf32, #tpu.memory_space<vmem>>, vector<32x32xf32>
    %cst_144 = arith.constant dense<0.000000e+00> : vector<128x32xf32>
    %232 = tpu.matmul %230, %231, %cst_144 {dimension_numbers = #tpu.dot_dimension_numbers<[1], [0], [0], [1], [0, 0, 1, 1], [], []>} : vector<128x32xf32>, vector<32x32xf32>, vector<128x32xf32> -> vector<128x32xf32>
    %c0_145 = arith.constant 0 : index
    %c0_146 = arith.constant 0 : index
    %233 = vector.load %arg17[%c0_145, %c0_146] : memref<1x32xf32, #tpu.memory_space<vmem>>, vector<1x32xf32>
    %234 = vector.broadcast %233 : vector<1x32xf32> to vector<128x32xf32>
    %235 = arith.addf %232, %234 : vector<128x32xf32>
    %236 = arith.addf %235, %193 : vector<128x32xf32>
    %c0_147 = arith.constant 0 : index
    %c0_148 = arith.constant 0 : index
    %237 = vector.load %arg18[%c0_147, %c0_148] : memref<128x32xf32, #tpu.memory_space<vmem>>, vector<128x32xf32>
    tpu.vector_store %arg18[%c0_147, %c0_148], %236 {strides = array<i32>} : memref<128x32xf32, #tpu.memory_space<vmem>>, vector<128x32xf32>,
    return
  }
  func.func @transform_0(%arg0: i32) -> (i32, i32) {
    %c0_i32 = arith.constant 0 : i32
    %c0_i32_0 = arith.constant 0 : i32
    return %arg0, %c0_i32 : i32, i32
  }
  func.func @transform_1(%arg0: i32) -> (i32, i32) {
    %c0_i32 = arith.constant 0 : i32
    %c0_i32_0 = arith.constant 0 : i32
    %c0_i32_1 = arith.constant 0 : i32
    return %c0_i32, %c0_i32_0 : i32, i32
  }
  func.func @transform_2(%arg0: i32) -> (i32, i32) {
    %c0_i32 = arith.constant 0 : i32
    %c0_i32_0 = arith.constant 0 : i32
    %c0_i32_1 = arith.constant 0 : i32
    return %c0_i32, %c0_i32_0 : i32, i32
  }
  func.func @transform_3(%arg0: i32) -> (i32, i32, i32) {
    %c0_i32 = arith.constant 0 : i32
    %c0_i32_0 = arith.constant 0 : i32
    %c0_i32_1 = arith.constant 0 : i32
    %c0_i32_2 = arith.constant 0 : i32
    return %c0_i32, %c0_i32_0, %c0_i32_1 : i32, i32, i32
  }
  func.func @transform_4(%arg0: i32) -> (i32, i32, i32) {
    %c0_i32 = arith.constant 0 : i32
    %c0_i32_0 = arith.constant 0 : i32
    %c0_i32_1 = arith.constant 0 : i32
    %c0_i32_2 = arith.constant 0 : i32
    return %c0_i32, %c0_i32_0, %c0_i32_1 : i32, i32, i32
  }
  func.func @transform_5(%arg0: i32) -> (i32, i32, i32) {
    %c0_i32 = arith.constant 0 : i32
    %c0_i32_0 = arith.constant 0 : i32
    %c0_i32_1 = arith.constant 0 : i32
    %c0_i32_2 = arith.constant 0 : i32
    return %c0_i32, %c0_i32_0, %c0_i32_1 : i32, i32, i32
  }
  func.func @transform_6(%arg0: i32) -> (i32, i32, i32) {
    %c0_i32 = arith.constant 0 : i32
    %c0_i32_0 = arith.constant 0 : i32
    %c0_i32_1 = arith.constant 0 : i32
    %c0_i32_2 = arith.constant 0 : i32
    return %c0_i32, %c0_i32_0, %c0_i32_1 : i32, i32, i32
  }
  func.func @transform_7(%arg0: i32) -> (i32, i32, i32) {
    %c0_i32 = arith.constant 0 : i32
    %c0_i32_0 = arith.constant 0 : i32
    %c0_i32_1 = arith.constant 0 : i32
    %c0_i32_2 = arith.constant 0 : i32
    return %c0_i32, %c0_i32_0, %c0_i32_1 : i32, i32, i32
  }
  func.func @transform_8(%arg0: i32) -> (i32, i32, i32) {
    %c0_i32 = arith.constant 0 : i32
    %c0_i32_0 = arith.constant 0 : i32
    %c0_i32_1 = arith.constant 0 : i32
    %c0_i32_2 = arith.constant 0 : i32
    return %c0_i32, %c0_i32_0, %c0_i32_1 : i32, i32, i32
  }
  func.func @transform_9(%arg0: i32) -> (i32, i32, i32) {
    %c0_i32 = arith.constant 0 : i32
    %c0_i32_0 = arith.constant 0 : i32
    %c0_i32_1 = arith.constant 0 : i32
    %c0_i32_2 = arith.constant 0 : i32
    return %c0_i32, %c0_i32_0, %c0_i32_1 : i32, i32, i32
  }
  func.func @transform_10(%arg0: i32) -> (i32, i32) {
    %c0_i32 = arith.constant 0 : i32
    %c0_i32_0 = arith.constant 0 : i32
    %c0_i32_1 = arith.constant 0 : i32
    return %c0_i32, %c0_i32_0 : i32, i32
  }
  func.func @transform_11(%arg0: i32) -> (i32, i32) {
    %c0_i32 = arith.constant 0 : i32
    %c0_i32_0 = arith.constant 0 : i32
    %c0_i32_1 = arith.constant 0 : i32
    return %c0_i32, %c0_i32_0 : i32, i32
  }
  func.func @transform_12(%arg0: i32) -> (i32, i32) {
    %c0_i32 = arith.constant 0 : i32
    %c0_i32_0 = arith.constant 0 : i32
    %c0_i32_1 = arith.constant 0 : i32
    return %c0_i32, %c0_i32_0 : i32, i32
  }
  func.func @transform_13(%arg0: i32) -> (i32, i32) {
    %c0_i32 = arith.constant 0 : i32
    %c0_i32_0 = arith.constant 0 : i32
    %c0_i32_1 = arith.constant 0 : i32
    return %c0_i32, %c0_i32_0 : i32, i32
  }
  func.func @transform_14(%arg0: i32) -> (i32, i32) {
    %c0_i32 = arith.constant 0 : i32
    %c0_i32_0 = arith.constant 0 : i32
    %c0_i32_1 = arith.constant 0 : i32
    return %c0_i32, %c0_i32_0 : i32, i32
  }
  func.func @transform_15(%arg0: i32) -> (i32, i32) {
    %c0_i32 = arith.constant 0 : i32
    %c0_i32_0 = arith.constant 0 : i32
    %c0_i32_1 = arith.constant 0 : i32
    return %c0_i32, %c0_i32_0 : i32, i32
  }
  func.func @transform_16(%arg0: i32) -> (i32, i32) {
    %c0_i32 = arith.constant 0 : i32
    %c0_i32_0 = arith.constant 0 : i32
    %c0_i32_1 = arith.constant 0 : i32
    return %c0_i32, %c0_i32_0 : i32, i32
  }
  func.func @transform_17(%arg0: i32) -> (i32, i32) {
    %c0_i32 = arith.constant 0 : i32
    %c0_i32_0 = arith.constant 0 : i32
    return %arg0, %c0_i32 : i32, i32
  }
}

</mosaic_0001>

<llo_original>
// kernel: tpu_custom_call.1
$region0: #{tpu_custom_call.1}
  #allocation0 [shape = 'u32[]', space=smem, size = 0x4, offset = 0x4, fixed_abs, tag = 'smem constant byte address 0x4 - core index']
  #allocation1 [shape = 'u32[72,128]{1,0:T(1,128)}', space=vmem, size = 0x9000, scoped, tag = 'internal scratch']
  %s0 = inlined_call_operand.vmem [shape: f32[128,32], index: 0, kind: input, shape index: {}]
  %s1 = inlined_call_operand.vmem [shape: f32[1,32], index: 1, kind: input, shape index: {}]
  %s2 = inlined_call_operand.vmem [shape: f32[1,32], index: 2, kind: input, shape index: {}]
  %s3 = inlined_call_operand.vmem [shape: f32[4,32,8], index: 3, kind: input, shape index: {}]
  %s4 = inlined_call_operand.vmem [shape: f32[4,1,8], index: 4, kind: input, shape index: {}]
  %s5 = inlined_call_operand.vmem [shape: f32[4,32,8], index: 5, kind: input, shape index: {}]
  %s6 = inlined_call_operand.vmem [shape: f32[4,1,8], index: 6, kind: input, shape index: {}]
  %s7 = inlined_call_operand.vmem [shape: f32[4,32,8], index: 7, kind: input, shape index: {}]
  %s8 = inlined_call_operand.vmem [shape: f32[4,1,8], index: 8, kind: input, shape index: {}]
  %s9 = inlined_call_operand.vmem [shape: f32[4,8,32], index: 9, kind: input, shape index: {}]
  %s10 = inlined_call_operand.vmem [shape: f32[1,32], index: 10, kind: input, shape index: {}]
  %s11 = inlined_call_operand.vmem [shape: f32[1,32], index: 11, kind: input, shape index: {}]
  %s12 = inlined_call_operand.vmem [shape: f32[1,32], index: 12, kind: input, shape index: {}]
  %s13 = inlined_call_operand.vmem [shape: f32[32,32], index: 13, kind: input, shape index: {}]
  %s14 = inlined_call_operand.vmem [shape: f32[1,32], index: 14, kind: input, shape index: {}]
  %s15 = inlined_call_operand.vmem [shape: f32[32,32], index: 15, kind: input, shape index: {}]
  %s16 = inlined_call_operand.vmem [shape: f32[1,32], index: 16, kind: input, shape index: {}]
  %s17 = inlined_call_operand.vmem [shape: f32[128,32], index: 17, kind: output, shape index: {}]
  %s18 = sld [smem:[#allocation0]]
  $region78: #{tpu_custom_call.1} parent=0
    _
  %s20 = ssub.s32 1, %s18
  %s21 = scalar_select 0, %s20, %s18
  // Predicated region
  $region2: #{tpu_custom_call.1} parent=0 // pred_check
    _
  $region3: #{tpu_custom_call.1} parent=0 // pred_check_branch
    %23 = sbr.rel (0) target = $region5
  $region4: #{tpu_custom_call.1} parent=0 // pred_region
    _
  $region5: #{tpu_custom_call.1} parent=0 // pred_fallthru
    _
  // Predicated region
  $region6: #{tpu_custom_call.1} parent=0 // pred_check
    _
  $region7: #{tpu_custom_call.1} parent=0 // pred_check_branch
    %25 = sbr.rel (0) target = $region9
  $region8: #{tpu_custom_call.1} parent=0 // pred_region
    _
  $region9: #{tpu_custom_call.1} parent=0 // pred_fallthru
    _
  // Predicated region
  $region10: #{tpu_custom_call.1} parent=0 // pred_check
    _
  $region11: #{tpu_custom_call.1} parent=0 // pred_check_branch
    %27 = sbr.rel (0) target = $region13
  $region12: #{tpu_custom_call.1} parent=0 // pred_region
    _
  $region13: #{tpu_custom_call.1} parent=0 // pred_fallthru
    _
  // Predicated region
  $region14: #{tpu_custom_call.1} parent=0 // pred_check
    _
  $region15: #{tpu_custom_call.1} parent=0 // pred_check_branch
    %29 = sbr.rel (0) target = $region17
  $region16: #{tpu_custom_call.1} parent=0 // pred_region
    _
  $region17: #{tpu_custom_call.1} parent=0 // pred_fallthru
    _
  // Predicated region
  $region18: #{tpu_custom_call.1} parent=0 // pred_check
    _
  $region19: #{tpu_custom_call.1} parent=0 // pred_check_branch
    %31 = sbr.rel (0) target = $region21
  $region20: #{tpu_custom_call.1} parent=0 // pred_region
    _
  $region21: #{tpu_custom_call.1} parent=0 // pred_fallthru
    _
  // Predicated region
  $region22: #{tpu_custom_call.1} parent=0 // pred_check
    _
  $region23: #{tpu_custom_call.1} parent=0 // pred_check_branch
    %33 = sbr.rel (0) target = $region25
  $region24: #{tpu_custom_call.1} parent=0 // pred_region
    _
  $region25: #{tpu_custom_call.1} parent=0 // pred_fallthru
    _
  // Predicated region
  $region26: #{tpu_custom_call.1} parent=0 // pred_check
    _
  $region27: #{tpu_custom_call.1} parent=0 // pred_check_branch
    %35 = sbr.rel (0) target = $region29
  $region28: #{tpu_custom_call.1} parent=0 // pred_region
    _
  $region29: #{tpu_custom_call.1} parent=0 // pred_fallthru
    _
  // Predicated region
  $region30: #{tpu_custom_call.1} parent=0 // pred_check
    _
  $region31: #{tpu_custom_call.1} parent=0 // pred_check_branch
    %37 = sbr.rel (0) target = $region33
  $region32: #{tpu_custom_call.1} parent=0 // pred_region
    _
  $region33: #{tpu_custom_call.1} parent=0 // pred_fallthru
    _
  // Predicated region
  $region34: #{tpu_custom_call.1} parent=0 // pred_check
    _
  $region35: #{tpu_custom_call.1} parent=0 // pred_check_branch
    %39 = sbr.rel (0) target = $region37
  $region36: #{tpu_custom_call.1} parent=0 // pred_region
    _
  $region37: #{tpu_custom_call.1} parent=0 // pred_fallthru
    _
  // Predicated region
  $region38: #{tpu_custom_call.1} parent=0 // pred_check
    _
  $region39: #{tpu_custom_call.1} parent=0 // pred_check_branch
    %41 = sbr.rel (0) target = $region41
  $region40: #{tpu_custom_call.1} parent=0 // pred_region
    _
  $region41: #{tpu_custom_call.1} parent=0 // pred_fallthru
    _
  // Predicated region
  $region42: #{tpu_custom_call.1} parent=0 // pred_check
    _
  $region43: #{tpu_custom_call.1} parent=0 // pred_check_branch
    %43 = sbr.rel (0) target = $region45
  $region44: #{tpu_custom_call.1} parent=0 // pred_region
    _
  $region45: #{tpu_custom_call.1} parent=0 // pred_fallthru
    _
  // Predicated region
  $region46: #{tpu_custom_call.1} parent=0 // pred_check
    _
  $region47: #{tpu_custom_call.1} parent=0 // pred_check_branch
    %45 = sbr.rel (0) target = $region49
  $region48: #{tpu_custom_call.1} parent=0 // pred_region
    _
  $region49: #{tpu_custom_call.1} parent=0 // pred_fallthru
    _
  // Predicated region
  $region50: #{tpu_custom_call.1} parent=0 // pred_check
    _
  $region51: #{tpu_custom_call.1} parent=0 // pred_check_branch
    %47 = sbr.rel (0) target = $region53
  $region52: #{tpu_custom_call.1} parent=0 // pred_region
    _
  $region53: #{tpu_custom_call.1} parent=0 // pred_fallthru
    _
  // Predicated region
  $region54: #{tpu_custom_call.1} parent=0 // pred_check
    _
  $region55: #{tpu_custom_call.1} parent=0 // pred_check_branch
    %49 = sbr.rel (0) target = $region57
  $region56: #{tpu_custom_call.1} parent=0 // pred_region
    _
  $region57: #{tpu_custom_call.1} parent=0 // pred_fallthru
    _
  // Predicated region
  $region58: #{tpu_custom_call.1} parent=0 // pred_check
    _
  $region59: #{tpu_custom_call.1} parent=0 // pred_check_branch
    %51 = sbr.rel (0) target = $region61
  $region60: #{tpu_custom_call.1} parent=0 // pred_region
    _
  $region61: #{tpu_custom_call.1} parent=0 // pred_fallthru
    _
  // Predicated region
  $region62: #{tpu_custom_call.1} parent=0 // pred_check
    _
  $region63: #{tpu_custom_call.1} parent=0 // pred_check_branch
    %53 = sbr.rel (0) target = $region65
  $region64: #{tpu_custom_call.1} parent=0 // pred_region
    _
  $region65: #{tpu_custom_call.1} parent=0 // pred_fallthru
    _
  // Predicated region
  $region66: #{tpu_custom_call.1} parent=0 // pred_check
    _
  $region67: #{tpu_custom_call.1} parent=0 // pred_check_branch
    %55 = sbr.rel (0) target = $region69
  $region68: #{tpu_custom_call.1} parent=0 // pred_region
    _
  $region69: #{tpu_custom_call.1} parent=0 // pred_fallthru
    _
  %v56 = vld [vmem:[%s0] sm:$0xff]
  %v57 = vld [vmem:[%s0 + $0x8] sm:$0xff]
  %v58 = vld [vmem:[%s0 + $0x10] sm:$0xff]
  %v59 = vld [vmem:[%s0 + $0x18] sm:$0xff]
  %v60 = vld [vmem:[%s0 + $0x20] sm:$0xff]
  %v61 = vld [vmem:[%s0 + $0x28] sm:$0xff]
  %v62 = vld [vmem:[%s0 + $0x30] sm:$0xff]
  %v63 = vld [vmem:[%s0 + $0x38] sm:$0xff]
  %v64 = vld [vmem:[%s0 + $0x40] sm:$0xff]
  %v65 = vld [vmem:[%s0 + $0x48] sm:$0xff]
  %v66 = vld [vmem:[%s0 + $0x50] sm:$0xff]
  %v67 = vld [vmem:[%s0 + $0x58] sm:$0xff]
  %v68 = vld [vmem:[%s0 + $0x60] sm:$0xff]
  %v69 = vld [vmem:[%s0 + $0x68] sm:$0xff]
  %v70 = vld [vmem:[%s0 + $0x70] sm:$0xff]
  %v71 = vld [vmem:[%s0 + $0x78] sm:$0xff]
  %v72 = vld [vmem:[%s1] sm:$0x1]
  %v73 = vld [vmem:[%s2] sm:$0x1]
  %vm74 = vcmask 261120
  %v75 = vsel %vm74, %v56, 0.0
  %76 = vadd.xlane.f32.xlu0 %v75
  %v77 = vpop.xlane.xlu0 %76
  %v78 = vsel %vm74, %v57, 0.0
  %79 = vadd.xlane.f32.xlu0 %v78
  %v80 = vpop.xlane.xlu0 %79
  %v81 = vsel %vm74, %v58, 0.0
  %82 = vadd.xlane.f32.xlu0 %v81
  %v83 = vpop.xlane.xlu0 %82
  %v84 = vsel %vm74, %v59, 0.0
  %85 = vadd.xlane.f32.xlu0 %v84
  %v86 = vpop.xlane.xlu0 %85
  %v87 = vsel %vm74, %v60, 0.0
  %88 = vadd.xlane.f32.xlu0 %v87
  %v89 = vpop.xlane.xlu0 %88
  %v90 = vsel %vm74, %v61, 0.0
  %91 = vadd.xlane.f32.xlu0 %v90
  %v92 = vpop.xlane.xlu0 %91
  %v93 = vsel %vm74, %v62, 0.0
  %94 = vadd.xlane.f32.xlu0 %v93
  %v95 = vpop.xlane.xlu0 %94
  %v96 = vsel %vm74, %v63, 0.0
  %97 = vadd.xlane.f32.xlu0 %v96
  %v98 = vpop.xlane.xlu0 %97
  %v99 = vsel %vm74, %v64, 0.0
  %100 = vadd.xlane.f32.xlu0 %v99
  %v101 = vpop.xlane.xlu0 %100
  %v102 = vsel %vm74, %v65, 0.0
  %103 = vadd.xlane.f32.xlu0 %v102
  %v104 = vpop.xlane.xlu0 %103
  %v105 = vsel %vm74, %v66, 0.0
  %106 = vadd.xlane.f32.xlu0 %v105
  %v107 = vpop.xlane.xlu0 %106
  %v108 = vsel %vm74, %v67, 0.0
  %109 = vadd.xlane.f32.xlu0 %v108
  %v110 = vpop.xlane.xlu0 %109
  %v111 = vsel %vm74, %v68, 0.0
  %112 = vadd.xlane.f32.xlu0 %v111
  %v113 = vpop.xlane.xlu0 %112
  %v114 = vsel %vm74, %v69, 0.0
  %115 = vadd.xlane.f32.xlu0 %v114
  %v116 = vpop.xlane.xlu0 %115
  %v117 = vsel %vm74, %v70, 0.0
  %118 = vadd.xlane.f32.xlu0 %v117
  %v119 = vpop.xlane.xlu0 %118
  %v120 = vsel %vm74, %v71, 0.0
  %121 = vadd.xlane.f32.xlu0 %v120
  %v122 = vpop.xlane.xlu0 %121
  %v123 = vrcp.pop 32.0
  %v124 = vmul.f32 32.0, %v123
  %v125 = vsub.f32 1.0, %v124
  %v126 = vmul.f32 %v123, %v125
  %v127 = vadd.f32 %v123, %v126
  %vm128 = vweird.f32 %v123
  %v129 = vsel %vm128, %v123, %v127
  %v130 = vmul.f32 %v77, %v129
  %v131 = vmul.f32 %v80, %v129
  %v132 = vmul.f32 %v83, %v129
  %v133 = vmul.f32 %v86, %v129
  %v134 = vmul.f32 %v89, %v129
  %v135 = vmul.f32 %v92, %v129
  %v136 = vmul.f32 %v95, %v129
  %v137 = vmul.f32 %v98, %v129
  %v138 = vmul.f32 %v101, %v129
  %v139 = vmul.f32 %v104, %v129
  %v140 = vmul.f32 %v107, %v129
  %v141 = vmul.f32 %v110, %v129
  %v142 = vmul.f32 %v113, %v129
  %v143 = vmul.f32 %v116, %v129
  %v144 = vmul.f32 %v119, %v129
  %v145 = vmul.f32 %v122, %v129
  %v146 = vmul.f32 %v56, %v56
  %v147 = vmul.f32 %v57, %v57
  %v148 = vmul.f32 %v58, %v58
  %v149 = vmul.f32 %v59, %v59
  %v150 = vmul.f32 %v60, %v60
  %v151 = vmul.f32 %v61, %v61
  %v152 = vmul.f32 %v62, %v62
  %v153 = vmul.f32 %v63, %v63
  %v154 = vmul.f32 %v64, %v64
  %v155 = vmul.f32 %v65, %v65
  %v156 = vmul.f32 %v66, %v66
  %v157 = vmul.f32 %v67, %v67
  %v158 = vmul.f32 %v68, %v68
  %v159 = vmul.f32 %v69, %v69
  %v160 = vmul.f32 %v70, %v70
  %v161 = vmul.f32 %v71, %v71
  %v162 = vsel %vm74, %v146, 0.0
  %163 = vadd.xlane.f32.xlu0 %v162
  %v164 = vpop.xlane.xlu0 %163
  %v165 = vsel %vm74, %v147, 0.0
  %166 = vadd.xlane.f32.xlu0 %v165
  %v167 = vpop.xlane.xlu0 %166
  %v168 = vsel %vm74, %v148, 0.0
  %169 = vadd.xlane.f32.xlu0 %v168
  %v170 = vpop.xlane.xlu0 %169
  %v171 = vsel %vm74, %v149, 0.0
  %172 = vadd.xlane.f32.xlu0 %v171
  %v173 = vpop.xlane.xlu0 %172
  %v174 = vsel %vm74, %v150, 0.0
  %175 = vadd.xlane.f32.xlu0 %v174
  %v176 = vpop.xlane.xlu0 %175
  %v177 = vsel %vm74, %v151, 0.0
  %178 = vadd.xlane.f32.xlu0 %v177
  %v179 = vpop.xlane.xlu0 %178
  %v180 = vsel %vm74, %v152, 0.0
  %181 = vadd.xlane.f32.xlu0 %v180
  %v182 = vpop.xlane.xlu0 %181
  %v183 = vsel %vm74, %v153, 0.0
  %184 = vadd.xlane.f32.xlu0 %v183
  %v185 = vpop.xlane.xlu0 %184
  %v186 = vsel %vm74, %v154, 0.0
  %187 = vadd.xlane.f32.xlu0 %v186
  %v188 = vpop.xlane.xlu0 %187
  %v189 = vsel %vm74, %v155, 0.0
  %190 = vadd.xlane.f32.xlu0 %v189
  %v191 = vpop.xlane.xlu0 %190
  %v192 = vsel %vm74, %v156, 0.0
  %193 = vadd.xlane.f32.xlu0 %v192
  %v194 = vpop.xlane.xlu0 %193
  %v195 = vsel %vm74, %v157, 0.0
  %196 = vadd.xlane.f32.xlu0 %v195
  %v197 = vpop.xlane.xlu0 %196
  %v198 = vsel %vm74, %v158, 0.0
  %199 = vadd.xlane.f32.xlu0 %v198
  %v200 = vpop.xlane.xlu0 %199
  %v201 = vsel %vm74, %v159, 0.0
  %202 = vadd.xlane.f32.xlu0 %v201
  %v203 = vpop.xlane.xlu0 %202
  %v204 = vsel %vm74, %v160, 0.0
  %205 = vadd.xlane.f32.xlu0 %v204
  %v206 = vpop.xlane.xlu0 %205
  %v207 = vsel %vm74, %v161, 0.0
  %208 = vadd.xlane.f32.xlu0 %v207
  %v209 = vpop.xlane.xlu0 %208
  %v210 = vmul.f32 %v164, %v129
  %v211 = vmul.f32 %v167, %v129
  %v212 = vmul.f32 %v170, %v129
  %v213 = vmul.f32 %v173, %v129
  %v214 = vmul.f32 %v176, %v129
  %v215 = vmul.f32 %v179, %v129
  %v216 = vmul.f32 %v182, %v129
  %v217 = vmul.f32 %v185, %v129
  %v218 = vmul.f32 %v188, %v129
  %v219 = vmul.f32 %v191, %v129
  %v220 = vmul.f32 %v194, %v129
  %v221 = vmul.f32 %v197, %v129
  %v222 = vmul.f32 %v200, %v129
  %v223 = vmul.f32 %v203, %v129
  %v224 = vmul.f32 %v206, %v129
  %v225 = vmul.f32 %v209, %v129
  %v226 = vmul.f32 %v130, %v130
  %v227 = vmul.f32 %v131, %v131
  %v228 = vmul.f32 %v132, %v132
  %v229 = vmul.f32 %v133, %v133
  %v230 = vmul.f32 %v134, %v134
  %v231 = vmul.f32 %v135, %v135
  %v232 = vmul.f32 %v136, %v136
  %v233 = vmul.f32 %v137, %v137
  %v234 = vmul.f32 %v138, %v138
  %v235 = vmul.f32 %v139, %v139
  %v236 = vmul.f32 %v140, %v140
  %v237 = vmul.f32 %v141, %v141
  %v238 = vmul.f32 %v142, %v142
  %v239 = vmul.f32 %v143, %v143
  %v240 = vmul.f32 %v144, %v144
  %v241 = vmul.f32 %v145, %v145
  %v242 = vsub.f32 %v210, %v226
  %v243 = vsub.f32 %v211, %v227
  %v244 = vsub.f32 %v212, %v228
  %v245 = vsub.f32 %v213, %v229
  %v246 = vsub.f32 %v214, %v230
  %v247 = vsub.f32 %v215, %v231
  %v248 = vsub.f32 %v216, %v232
  %v249 = vsub.f32 %v217, %v233
  %v250 = vsub.f32 %v218, %v234
  %v251 = vsub.f32 %v219, %v235
  %v252 = vsub.f32 %v220, %v236
  %v253 = vsub.f32 %v221, %v237
  %v254 = vsub.f32 %v222, %v238
  %v255 = vsub.f32 %v223, %v239
  %v256 = vsub.f32 %v224, %v240
  %v257 = vsub.f32 %v225, %v241
  %v258 = vsub.f32 %v56, %v130
  %v259 = vsub.f32 %v57, %v131
  %v260 = vsub.f32 %v58, %v132
  %v261 = vsub.f32 %v59, %v133
  %v262 = vsub.f32 %v60, %v134
  %v263 = vsub.f32 %v61, %v135
  %v264 = vsub.f32 %v62, %v136
  %v265 = vsub.f32 %v63, %v137
  %v266 = vsub.f32 %v64, %v138
  %v267 = vsub.f32 %v65, %v139
  %v268 = vsub.f32 %v66, %v140
  %v269 = vsub.f32 %v67, %v141
  %v270 = vsub.f32 %v68, %v142
  %v271 = vsub.f32 %v69, %v143
  %v272 = vsub.f32 %v70, %v144
  %v273 = vsub.f32 %v71, %v145
  %v274 = vadd.f32 %v242, 1e-05
  %v275 = vadd.f32 %v243, 1e-05
  %v276 = vadd.f32 %v244, 1e-05
  %v277 = vadd.f32 %v245, 1e-05
  %v278 = vadd.f32 %v246, 1e-05
  %v279 = vadd.f32 %v247, 1e-05
  %v280 = vadd.f32 %v248, 1e-05
  %v281 = vadd.f32 %v249, 1e-05
  %v282 = vadd.f32 %v250, 1e-05
  %v283 = vadd.f32 %v251, 1e-05
  %v284 = vadd.f32 %v252, 1e-05
  %v285 = vadd.f32 %v253, 1e-05
  %v286 = vadd.f32 %v254, 1e-05
  %v287 = vadd.f32 %v255, 1e-05
  %v288 = vadd.f32 %v256, 1e-05
  %v289 = vadd.f32 %v257, 1e-05
  %v290 = vrsqrt.pop %v274
  %v291 = vmul.f32 %v290, %v274
  %v292 = vmul.f32 %v291, %v290
  %v293 = vmul.f32 0.5, %v292
  %v294 = vsub.f32 1.5, %v293
  %v295 = vmul.f32 %v290, %v294
  %vm296 = vweird.f32 %v274
  %vm297 = vweird.f32 %v290
  %vm298 = vmor %vm296, %vm297
  %v299 = vsel %vm298, %v290, %v295
  %v300 = vrsqrt.pop %v275
  %v301 = vmul.f32 %v300, %v275
  %v302 = vmul.f32 %v301, %v300
  %v303 = vmul.f32 0.5, %v302
  %v304 = vsub.f32 1.5, %v303
  %v305 = vmul.f32 %v300, %v304
  %vm306 = vweird.f32 %v275
  %vm307 = vweird.f32 %v300
  %vm308 = vmor %vm306, %vm307
  %v309 = vsel %vm308, %v300, %v305
  %v310 = vrsqrt.pop %v276
  %v311 = vmul.f32 %v310, %v276
  %v312 = vmul.f32 %v311, %v310
  %v313 = vmul.f32 0.5, %v312
  %v314 = vsub.f32 1.5, %v313
  %v315 = vmul.f32 %v310, %v314
  %vm316 = vweird.f32 %v276
  %vm317 = vweird.f32 %v310
  %vm318 = vmor %vm316, %vm317
  %v319 = vsel %vm318, %v310, %v315
  %v320 = vrsqrt.pop %v277
  %v321 = vmul.f32 %v320, %v277
  %v322 = vmul.f32 %v321, %v320
  %v323 = vmul.f32 0.5, %v322
  %v324 = vsub.f32 1.5, %v323
  %v325 = vmul.f32 %v320, %v324
  %vm326 = vweird.f32 %v277
  %vm327 = vweird.f32 %v320
  %vm328 = vmor %vm326, %vm327
  %v329 = vsel %vm328, %v320, %v325
  %v330 = vrsqrt.pop %v278
  %v331 = vmul.f32 %v330, %v278
  %v332 = vmul.f32 %v331, %v330
  %v333 = vmul.f32 0.5, %v332
  %v334 = vsub.f32 1.5, %v333
  %v335 = vmul.f32 %v330, %v334
  %vm336 = vweird.f32 %v278
  %vm337 = vweird.f32 %v330
  %vm338 = vmor %vm336, %vm337
  %v339 = vsel %vm338, %v330, %v335
  %v340 = vrsqrt.pop %v279
  %v341 = vmul.f32 %v340, %v279
  %v342 = vmul.f32 %v341, %v340
  %v343 = vmul.f32 0.5, %v342
  %v344 = vsub.f32 1.5, %v343
  %v345 = vmul.f32 %v340, %v344
  %vm346 = vweird.f32 %v279
  %vm347 = vweird.f32 %v340
  %vm348 = vmor %vm346, %vm347
  %v349 = vsel %vm348, %v340, %v345
  %v350 = vrsqrt.pop %v280
  %v351 = vmul.f32 %v350, %v280
  %v352 = vmul.f32 %v351, %v350
  %v353 = vmul.f32 0.5, %v352
  %v354 = vsub.f32 1.5, %v353
  %v355 = vmul.f32 %v350, %v354
  %vm356 = vweird.f32 %v280
  %vm357 = vweird.f32 %v350
  %vm358 = vmor %vm356, %vm357
  %v359 = vsel %vm358, %v350, %v355
  %v360 = vrsqrt.pop %v281
  %v361 = vmul.f32 %v360, %v281
  %v362 = vmul.f32 %v361, %v360
  %v363 = vmul.f32 0.5, %v362
  %v364 = vsub.f32 1.5, %v363
  %v365 = vmul.f32 %v360, %v364
  %vm366 = vweird.f32 %v281
  %vm367 = vweird.f32 %v360
  %vm368 = vmor %vm366, %vm367
  %v369 = vsel %vm368, %v360, %v365
  %v370 = vrsqrt.pop %v282
  %v371 = vmul.f32 %v370, %v282
  %v372 = vmul.f32 %v371, %v370
  %v373 = vmul.f32 0.5, %v372
  %v374 = vsub.f32 1.5, %v373
  %v375 = vmul.f32 %v370, %v374
  %vm376 = vweird.f32 %v282
  %vm377 = vweird.f32 %v370
  %vm378 = vmor %vm376, %vm377
  %v379 = vsel %vm378, %v370, %v375
  %v380 = vrsqrt.pop %v283
  %v381 = vmul.f32 %v380, %v283
  %v382 = vmul.f32 %v381, %v380
  %v383 = vmul.f32 0.5, %v382
  %v384 = vsub.f32 1.5, %v383
  %v385 = vmul.f32 %v380, %v384
  %vm386 = vweird.f32 %v283
  %vm387 = vweird.f32 %v380
  %vm388 = vmor %vm386, %vm387
  %v389 = vsel %vm388, %v380, %v385
  %v390 = vrsqrt.pop %v284
  %v391 = vmul.f32 %v390, %v284
  %v392 = vmul.f32 %v391, %v390
  %v393 = vmul.f32 0.5, %v392
  %v394 = vsub.f32 1.5, %v393
  %v395 = vmul.f32 %v390, %v394
  %vm396 = vweird.f32 %v284
  %vm397 = vweird.f32 %v390
  %vm398 = vmor %vm396, %vm397
  %v399 = vsel %vm398, %v390, %v395
  %v400 = vrsqrt.pop %v285
  %v401 = vmul.f32 %v400, %v285
  %v402 = vmul.f32 %v401, %v400
  %v403 = vmul.f32 0.5, %v402
  %v404 = vsub.f32 1.5, %v403
  %v405 = vmul.f32 %v400, %v404
  %vm406 = vweird.f32 %v285
  %vm407 = vweird.f32 %v400
  %vm408 = vmor %vm406, %vm407
  %v409 = vsel %vm408, %v400, %v405
  %v410 = vrsqrt.pop %v286
  %v411 = vmul.f32 %v410, %v286
  %v412 = vmul.f32 %v411, %v410
  %v413 = vmul.f32 0.5, %v412
  %v414 = vsub.f32 1.5, %v413
  %v415 = vmul.f32 %v410, %v414
  %vm416 = vweird.f32 %v286
  %vm417 = vweird.f32 %v410
  %vm418 = vmor %vm416, %vm417
  %v419 = vsel %vm418, %v410, %v415
  %v420 = vrsqrt.pop %v287
  %v421 = vmul.f32 %v420, %v287
  %v422 = vmul.f32 %v421, %v420
  %v423 = vmul.f32 0.5, %v422
  %v424 = vsub.f32 1.5, %v423
  %v425 = vmul.f32 %v420, %v424
  %vm426 = vweird.f32 %v287
  %vm427 = vweird.f32 %v420
  %vm428 = vmor %vm426, %vm427
  %v429 = vsel %vm428, %v420, %v425
  %v430 = vrsqrt.pop %v288
  %v431 = vmul.f32 %v430, %v288
  %v432 = vmul.f32 %v431, %v430
  %v433 = vmul.f32 0.5, %v432
  %v434 = vsub.f32 1.5, %v433
  %v435 = vmul.f32 %v430, %v434
  %vm436 = vweird.f32 %v288
  %vm437 = vweird.f32 %v430
  %vm438 = vmor %vm436, %vm437
  %v439 = vsel %vm438, %v430, %v435
  %v440 = vrsqrt.pop %v289
  %v441 = vmul.f32 %v440, %v289
  %v442 = vmul.f32 %v441, %v440
  %v443 = vmul.f32 0.5, %v442
  %v444 = vsub.f32 1.5, %v443
  %v445 = vmul.f32 %v440, %v444
  %vm446 = vweird.f32 %v289
  %vm447 = vweird.f32 %v440
  %vm448 = vmor %vm446, %vm447
  %v449 = vsel %vm448, %v440, %v445
  %v450 = vmul.f32 %v258, %v299
  %v451 = vmul.f32 %v259, %v309
  %v452 = vmul.f32 %v260, %v319
  %v453 = vmul.f32 %v261, %v329
  %v454 = vmul.f32 %v262, %v339
  %v455 = vmul.f32 %v263, %v349
  %v456 = vmul.f32 %v264, %v359
  %v457 = vmul.f32 %v265, %v369
  %v458 = vmul.f32 %v266, %v379
  %v459 = vmul.f32 %v267, %v389
  %v460 = vmul.f32 %v268, %v399
  %v461 = vmul.f32 %v269, %v409
  %v462 = vmul.f32 %v270, %v419
  %v463 = vmul.f32 %v271, %v429
  %v464 = vmul.f32 %v272, %v439
  %v465 = vmul.f32 %v273, %v449
  %v467 = vperm.slane %v72, 0
  %v469 = vmul.f32 %v450, %v467
  %v470 = vmul.f32 %v451, %v467
  %v471 = vmul.f32 %v452, %v467
  %v472 = vmul.f32 %v453, %v467
  %v473 = vmul.f32 %v454, %v467
  %v474 = vmul.f32 %v455, %v467
  %v475 = vmul.f32 %v456, %v467
  %v476 = vmul.f32 %v457, %v467
  %v477 = vmul.f32 %v458, %v467
  %v478 = vmul.f32 %v459, %v467
  %v479 = vmul.f32 %v460, %v467
  %v480 = vmul.f32 %v461, %v467
  %v481 = vmul.f32 %v462, %v467
  %v482 = vmul.f32 %v463, %v467
  %v483 = vmul.f32 %v464, %v467
  %v484 = vmul.f32 %v465, %v467
  %v486 = vperm.slane %v73, 0
  %v488 = vadd.f32 %v469, %v486
  %v489 = vadd.f32 %v470, %v486
  %v490 = vadd.f32 %v471, %v486
  %v491 = vadd.f32 %v472, %v486
  %v492 = vadd.f32 %v473, %v486
  %v493 = vadd.f32 %v474, %v486
  %v494 = vadd.f32 %v475, %v486
  %v495 = vadd.f32 %v476, %v486
  %v496 = vadd.f32 %v477, %v486
  %v497 = vadd.f32 %v478, %v486
  %v498 = vadd.f32 %v479, %v486
  %v499 = vadd.f32 %v480, %v486
  %v500 = vadd.f32 %v481, %v486
  %v501 = vadd.f32 %v482, %v486
  %v502 = vadd.f32 %v483, %v486
  %v503 = vadd.f32 %v484, %v486
  %v504 = vld [vmem:[%s3] sm:$0xff]
  %v505 = vld [vmem:[%s3 + $0x8] sm:$0xff]
  %v506 = vld [vmem:[%s3 + $0x10] sm:$0xff]
  %v507 = vld [vmem:[%s3 + $0x18] sm:$0xff]
  %v508 = vld [vmem:[%s4] sm:$0x1]
  %v510 = vperm.slane %v508, 0
  %v513 = vsel %vm74, %v488, 0
  %v516 = vsel %vm74, %v489, 0
  %v519 = vsel %vm74, %v490, 0
  %v522 = vsel %vm74, %v491, 0
  %v525 = vsel %vm74, %v492, 0
  %v528 = vsel %vm74, %v493, 0
  %v531 = vsel %vm74, %v494, 0
  %v534 = vsel %vm74, %v495, 0
  %v537 = vsel %vm74, %v496, 0
  %v540 = vsel %vm74, %v497, 0
  %v543 = vsel %vm74, %v498, 0
  %v546 = vsel %vm74, %v499, 0
  %v549 = vsel %vm74, %v500, 0
  %v552 = vsel %vm74, %v501, 0
  %v555 = vsel %vm74, %v502, 0
  %v558 = vsel %vm74, %v503, 0
  %560 = vmatpush.msra.mxu0 0.0
  %561 = vmatpush.msra.mxu0 0.0
  %562 = vmatpush.msra.mxu0 0.0
  %563 = vmatpush.msra.mxu0 0.0
  %564 = vmatpush.msra.mxu0 0.0
  %565 = vmatpush.msra.mxu0 0.0
  %566 = vmatpush.msra.mxu0 0.0
  %567 = vmatpush.msra.mxu0 0.0
  %568 = vmatpush.msra.mxu0 0.0
  %569 = vmatpush.msra.mxu0 0.0
  %570 = vmatpush.msra.mxu0 0.0
  %571 = vmatpush.msra.mxu0 0.0
  %572 = vmatpush.msra.mxu0 %v507
  %573 = vmatpush.msra.mxu0 %v506
  %574 = vmatpush.msra.mxu0 %v505
  %575 = vmatpush.msra.mxu0 %v504
  %576 = vmatmul.f32.gmra.mxu0 %v513
  %v577 = vpop.f32.mrf.mxu0
  %v578 = vadd.f32 %v510, %v577
  %579 = vmatmul.f32.gmra.mxu0 %v516
  %v580 = vpop.f32.mrf.mxu0
  %v581 = vadd.f32 %v510, %v580
  %582 = vmatmul.f32.gmra.mxu0 %v519
  %v583 = vpop.f32.mrf.mxu0
  %v584 = vadd.f32 %v510, %v583
  %585 = vmatmul.f32.gmra.mxu0 %v522
  %v586 = vpop.f32.mrf.mxu0
  %v587 = vadd.f32 %v510, %v586
  %588 = vmatmul.f32.gmra.mxu0 %v525
  %v589 = vpop.f32.mrf.mxu0
  %v590 = vadd.f32 %v510, %v589
  %591 = vmatmul.f32.gmra.mxu0 %v528
  %v592 = vpop.f32.mrf.mxu0
  %v593 = vadd.f32 %v510, %v592
  %594 = vmatmul.f32.gmra.mxu0 %v531
  %v595 = vpop.f32.mrf.mxu0
  %v596 = vadd.f32 %v510, %v595
  %597 = vmatmul.f32.gmra.mxu0 %v534
  %v598 = vpop.f32.mrf.mxu0
  %v599 = vadd.f32 %v510, %v598
  %600 = vmatmul.f32.gmra.mxu0 %v537
  %v601 = vpop.f32.mrf.mxu0
  %v602 = vadd.f32 %v510, %v601
  %603 = vmatmul.f32.gmra.mxu0 %v540
  %v604 = vpop.f32.mrf.mxu0
  %v605 = vadd.f32 %v510, %v604
  %606 = vmatmul.f32.gmra.mxu0 %v543
  %v607 = vpop.f32.mrf.mxu0
  %v608 = vadd.f32 %v510, %v607
  %609 = vmatmul.f32.gmra.mxu0 %v546
  %v610 = vpop.f32.mrf.mxu0
  %v611 = vadd.f32 %v510, %v610
  %612 = vmatmul.f32.gmra.mxu0 %v549
  %v613 = vpop.f32.mrf.mxu0
  %v614 = vadd.f32 %v510, %v613
  %615 = vmatmul.f32.gmra.mxu0 %v552
  %v616 = vpop.f32.mrf.mxu0
  %v617 = vadd.f32 %v510, %v616
  %618 = vmatmul.f32.gmra.mxu0 %v555
  %v619 = vpop.f32.mrf.mxu0
  %v620 = vadd.f32 %v510, %v619
  %621 = vmatmul.f32.gmra.mxu0 %v558
  %v622 = vpop.f32.mrf.mxu0
  %v623 = vadd.f32 %v510, %v622
  %624 = vdwg.mxu0
  %v625 = vld [vmem:[%s5] sm:$0xff]
  %v626 = vld [vmem:[%s5 + $0x8] sm:$0xff]
  %v627 = vld [vmem:[%s5 + $0x10] sm:$0xff]
  %v628 = vld [vmem:[%s5 + $0x18] sm:$0xff]
  %v629 = vld [vmem:[%s6] sm:$0x1]
  %v631 = vperm.slane %v629, 0
  %633 = vmatpush.msra.mxu0 0.0
  %634 = vmatpush.msra.mxu0 0.0
  %635 = vmatpush.msra.mxu0 0.0
  %636 = vmatpush.msra.mxu0 0.0
  %637 = vmatpush.msra.mxu0 0.0
  %638 = vmatpush.msra.mxu0 0.0
  %639 = vmatpush.msra.mxu0 0.0
  %640 = vmatpush.msra.mxu0 0.0
  %641 = vmatpush.msra.mxu0 0.0
  %642 = vmatpush.msra.mxu0 0.0
  %643 = vmatpush.msra.mxu0 0.0
  %644 = vmatpush.msra.mxu0 0.0
  %645 = vmatpush.msra.mxu0 %v628
  %646 = vmatpush.msra.mxu0 %v627
  %647 = vmatpush.msra.mxu0 %v626
  %648 = vmatpush.msra.mxu0 %v625
  %649 = vmatmul.f32.gmra.mxu0 %v513
  %v650 = vpop.f32.mrf.mxu0
  %v651 = vadd.f32 %v631, %v650
  %652 = vmatmul.f32.gmra.mxu0 %v516
  %v653 = vpop.f32.mrf.mxu0
  %v654 = vadd.f32 %v631, %v653
  %655 = vmatmul.f32.gmra.mxu0 %v519
  %v656 = vpop.f32.mrf.mxu0
  %v657 = vadd.f32 %v631, %v656
  %658 = vmatmul.f32.gmra.mxu0 %v522
  %v659 = vpop.f32.mrf.mxu0
  %v660 = vadd.f32 %v631, %v659
  %661 = vmatmul.f32.gmra.mxu0 %v525
  %v662 = vpop.f32.mrf.mxu0
  %v663 = vadd.f32 %v631, %v662
  %664 = vmatmul.f32.gmra.mxu0 %v528
  %v665 = vpop.f32.mrf.mxu0
  %v666 = vadd.f32 %v631, %v665
  %667 = vmatmul.f32.gmra.mxu0 %v531
  %v668 = vpop.f32.mrf.mxu0
  %v669 = vadd.f32 %v631, %v668
  %670 = vmatmul.f32.gmra.mxu0 %v534
  %v671 = vpop.f32.mrf.mxu0
  %v672 = vadd.f32 %v631, %v671
  %673 = vmatmul.f32.gmra.mxu0 %v537
  %v674 = vpop.f32.mrf.mxu0
  %v675 = vadd.f32 %v631, %v674
  %676 = vmatmul.f32.gmra.mxu0 %v540
  %v677 = vpop.f32.mrf.mxu0
  %v678 = vadd.f32 %v631, %v677
  %679 = vmatmul.f32.gmra.mxu0 %v543
  %v680 = vpop.f32.mrf.mxu0
  %v681 = vadd.f32 %v631, %v680
  %682 = vmatmul.f32.gmra.mxu0 %v546
  %v683 = vpop.f32.mrf.mxu0
  %v684 = vadd.f32 %v631, %v683
  %685 = vmatmul.f32.gmra.mxu0 %v549
  %v686 = vpop.f32.mrf.mxu0
  %v687 = vadd.f32 %v631, %v686
  %688 = vmatmul.f32.gmra.mxu0 %v552
  %v689 = vpop.f32.mrf.mxu0
  %v690 = vadd.f32 %v631, %v689
  %691 = vmatmul.f32.gmra.mxu0 %v555
  %v692 = vpop.f32.mrf.mxu0
  %v693 = vadd.f32 %v631, %v692
  %694 = vmatmul.f32.gmra.mxu0 %v558
  %v695 = vpop.f32.mrf.mxu0
  %v696 = vadd.f32 %v631, %v695
  %697 = vdwg.mxu0
  %v698 = vld [vmem:[%s7] sm:$0xff]
  %v699 = vld [vmem:[%s7 + $0x8] sm:$0xff]
  %v700 = vld [vmem:[%s7 + $0x10] sm:$0xff]
  %v701 = vld [vmem:[%s7 + $0x18] sm:$0xff]
  %v702 = vld [vmem:[%s8] sm:$0x1]
  %v704 = vperm.slane %v702, 0
  %706 = vmatpush.msra.mxu0 0.0
  %707 = vmatpush.msra.mxu0 0.0
  %708 = vmatpush.msra.mxu0 0.0
  %709 = vmatpush.msra.mxu0 0.0
  %710 = vmatpush.msra.mxu0 0.0
  %711 = vmatpush.msra.mxu0 0.0
  %712 = vmatpush.msra.mxu0 0.0
  %713 = vmatpush.msra.mxu0 0.0
  %714 = vmatpush.msra.mxu0 0.0
  %715 = vmatpush.msra.mxu0 0.0
  %716 = vmatpush.msra.mxu0 0.0
  %717 = vmatpush.msra.mxu0 0.0
  %718 = vmatpush.msra.mxu0 %v701
  %719 = vmatpush.msra.mxu0 %v700
  %720 = vmatpush.msra.mxu0 %v699
  %721 = vmatpush.msra.mxu0 %v698
  %722 = vmatmul.f32.gmra.mxu0 %v513
  %v723 = vpop.f32.mrf.mxu0
  %v724 = vadd.f32 %v704, %v723
  %725 = vmatmul.f32.gmra.mxu0 %v516
  %v726 = vpop.f32.mrf.mxu0
  %v727 = vadd.f32 %v704, %v726
  %728 = vmatmul.f32.gmra.mxu0 %v519
  %v729 = vpop.f32.mrf.mxu0
  %v730 = vadd.f32 %v704, %v729
  %731 = vmatmul.f32.gmra.mxu0 %v522
  %v732 = vpop.f32.mrf.mxu0
  %v733 = vadd.f32 %v704, %v732
  %734 = vmatmul.f32.gmra.mxu0 %v525
  %v735 = vpop.f32.mrf.mxu0
  %v736 = vadd.f32 %v704, %v735
  %737 = vmatmul.f32.gmra.mxu0 %v528
  %v738 = vpop.f32.mrf.mxu0
  %v739 = vadd.f32 %v704, %v738
  %740 = vmatmul.f32.gmra.mxu0 %v531
  %v741 = vpop.f32.mrf.mxu0
  %v742 = vadd.f32 %v704, %v741
  %743 = vmatmul.f32.gmra.mxu0 %v534
  %v744 = vpop.f32.mrf.mxu0
  %v745 = vadd.f32 %v704, %v744
  %746 = vmatmul.f32.gmra.mxu0 %v537
  %v747 = vpop.f32.mrf.mxu0
  %v748 = vadd.f32 %v704, %v747
  %749 = vmatmul.f32.gmra.mxu0 %v540
  %v750 = vpop.f32.mrf.mxu0
  %v751 = vadd.f32 %v704, %v750
  %752 = vmatmul.f32.gmra.mxu0 %v543
  %v753 = vpop.f32.mrf.mxu0
  %v754 = vadd.f32 %v704, %v753
  %755 = vmatmul.f32.gmra.mxu0 %v546
  %v756 = vpop.f32.mrf.mxu0
  %v757 = vadd.f32 %v704, %v756
  %758 = vmatmul.f32.gmra.mxu0 %v549
  %v759 = vpop.f32.mrf.mxu0
  %v760 = vadd.f32 %v704, %v759
  %761 = vmatmul.f32.gmra.mxu0 %v552
  %v762 = vpop.f32.mrf.mxu0
  %v763 = vadd.f32 %v704, %v762
  %764 = vmatmul.f32.gmra.mxu0 %v555
  %v765 = vpop.f32.mrf.mxu0
  %v766 = vadd.f32 %v704, %v765
  %767 = vmatmul.f32.gmra.mxu0 %v558
  %v768 = vpop.f32.mrf.mxu0
  %v769 = vadd.f32 %v704, %v768
  %770 = vdwg.mxu0
  %vm771 = vcmask 64512
  %v773 = vsel %vm771, %v578, 0
  %v776 = vsel %vm771, %v581, 0
  %v779 = vsel %vm771, %v584, 0
  %v782 = vsel %vm771, %v587, 0
  %v785 = vsel %vm771, %v590, 0
  %v788 = vsel %vm771, %v593, 0
  %v791 = vsel %vm771, %v596, 0
  %v794 = vsel %vm771, %v599, 0
  %v797 = vsel %vm771, %v651, 0
  %v800 = vsel %vm771, %v654, 0
  %v803 = vsel %vm771, %v657, 0
  %v806 = vsel %vm771, %v660, 0
  %v809 = vsel %vm771, %v663, 0
  %v812 = vsel %vm771, %v666, 0
  %v815 = vsel %vm771, %v669, 0
  %v818 = vsel %vm771, %v672, 0
  %820 = vmatpush.xpose.msra.mxu0 0.0
  %821 = vmatpush.xpose.msra.mxu0 0.0
  %822 = vmatpush.xpose.msra.mxu0 0.0
  %823 = vmatpush.xpose.msra.mxu0 0.0
  %824 = vmatpush.xpose.msra.mxu0 0.0
  %825 = vmatpush.xpose.msra.mxu0 0.0
  %826 = vmatpush.xpose.msra.mxu0 0.0
  %827 = vmatpush.xpose.msra.mxu0 0.0
  %828 = vmatpush.xpose.msra.mxu0 %v818
  %829 = vmatpush.xpose.msra.mxu0 %v815
  %830 = vmatpush.xpose.msra.mxu0 %v812
  %831 = vmatpush.xpose.msra.mxu0 %v809
  %832 = vmatpush.xpose.msra.mxu0 %v806
  %833 = vmatpush.xpose.msra.mxu0 %v803
  %834 = vmatpush.xpose.msra.mxu0 %v800
  %835 = vmatpush.xpose.msra.mxu0 %v797
  %836 = vmatmul.f32.gmra.mxu0 %v773
  %v837 = vpop.f32.mrf.mxu0
  %v838 = vadd.f32 0.0, %v837
  %839 = vmatmul.f32.gmra.mxu0 %v776
  %v840 = vpop.f32.mrf.mxu0
  %v841 = vadd.f32 0.0, %v840
  %842 = vmatmul.f32.gmra.mxu0 %v779
  %v843 = vpop.f32.mrf.mxu0
  %v844 = vadd.f32 0.0, %v843
  %845 = vmatmul.f32.gmra.mxu0 %v782
  %v846 = vpop.f32.mrf.mxu0
  %v847 = vadd.f32 0.0, %v846
  %848 = vmatmul.f32.gmra.mxu0 %v785
  %v849 = vpop.f32.mrf.mxu0
  %v850 = vadd.f32 0.0, %v849
  %851 = vmatmul.f32.gmra.mxu0 %v788
  %v852 = vpop.f32.mrf.mxu0
  %v853 = vadd.f32 0.0, %v852
  %854 = vmatmul.f32.gmra.mxu0 %v791
  %v855 = vpop.f32.mrf.mxu0
  %v856 = vadd.f32 0.0, %v855
  %857 = vmatmul.f32.gmra.mxu0 %v794
  %v858 = vpop.f32.mrf.mxu0
  %v859 = vadd.f32 0.0, %v858
  %860 = vdwg.mxu0
  %v862 = vsel %vm771, %v602, 0
  %v865 = vsel %vm771, %v605, 0
  %v868 = vsel %vm771, %v608, 0
  %v871 = vsel %vm771, %v611, 0
  %v874 = vsel %vm771, %v614, 0
  %v877 = vsel %vm771, %v617, 0
  %v880 = vsel %vm771, %v620, 0
  %v883 = vsel %vm771, %v623, 0
  %v886 = vsel %vm771, %v675, 0
  %v889 = vsel %vm771, %v678, 0
  %v892 = vsel %vm771, %v681, 0
  %v895 = vsel %vm771, %v684, 0
  %v898 = vsel %vm771, %v687, 0
  %v901 = vsel %vm771, %v690, 0
  %v904 = vsel %vm771, %v693, 0
  %v907 = vsel %vm771, %v696, 0
  %909 = vmatpush.xpose.msra.mxu0 0.0
  %910 = vmatpush.xpose.msra.mxu0 0.0
  %911 = vmatpush.xpose.msra.mxu0 0.0
  %912 = vmatpush.xpose.msra.mxu0 0.0
  %913 = vmatpush.xpose.msra.mxu0 0.0
  %914 = vmatpush.xpose.msra.mxu0 0.0
  %915 = vmatpush.xpose.msra.mxu0 0.0
  %916 = vmatpush.xpose.msra.mxu0 0.0
  %917 = vmatpush.xpose.msra.mxu0 %v907
  %918 = vmatpush.xpose.msra.mxu0 %v904
  %919 = vmatpush.xpose.msra.mxu0 %v901
  %920 = vmatpush.xpose.msra.mxu0 %v898
  %921 = vmatpush.xpose.msra.mxu0 %v895
  %922 = vmatpush.xpose.msra.mxu0 %v892
  %923 = vmatpush.xpose.msra.mxu0 %v889
  %924 = vmatpush.xpose.msra.mxu0 %v886
  %925 = vmatmul.f32.gmra.mxu0 %v862
  %v926 = vpop.f32.mrf.mxu0
  %v927 = vadd.f32 0.0, %v926
  %928 = vmatmul.f32.gmra.mxu0 %v865
  %v929 = vpop.f32.mrf.mxu0
  %v930 = vadd.f32 0.0, %v929
  %931 = vmatmul.f32.gmra.mxu0 %v868
  %v932 = vpop.f32.mrf.mxu0
  %v933 = vadd.f32 0.0, %v932
  %934 = vmatmul.f32.gmra.mxu0 %v871
  %v935 = vpop.f32.mrf.mxu0
  %v936 = vadd.f32 0.0, %v935
  %937 = vmatmul.f32.gmra.mxu0 %v874
  %v938 = vpop.f32.mrf.mxu0
  %v939 = vadd.f32 0.0, %v938
  %940 = vmatmul.f32.gmra.mxu0 %v877
  %v941 = vpop.f32.mrf.mxu0
  %v942 = vadd.f32 0.0, %v941
  %943 = vmatmul.f32.gmra.mxu0 %v880
  %v944 = vpop.f32.mrf.mxu0
  %v945 = vadd.f32 0.0, %v944
  %946 = vmatmul.f32.gmra.mxu0 %v883
  %v947 = vpop.f32.mrf.mxu0
  %v948 = vadd.f32 0.0, %v947
  %949 = vdwg.mxu0
  %vm950 = vcmask 523264
  %v951 = vsel %vm950, %v838, -inf
  %952 = vmax.xlane.f32.xlu0 %v951
  %v953 = vpop.xlane.xlu0 %952
  %v954 = vsel %vm950, %v841, -inf
  %955 = vmax.xlane.f32.xlu0 %v954
  %v956 = vpop.xlane.xlu0 %955
  %v957 = vsel %vm950, %v844, -inf
  %958 = vmax.xlane.f32.xlu0 %v957
  %v959 = vpop.xlane.xlu0 %958
  %v960 = vsel %vm950, %v847, -inf
  %961 = vmax.xlane.f32.xlu0 %v960
  %v962 = vpop.xlane.xlu0 %961
  %v963 = vsel %vm950, %v850, -inf
  %964 = vmax.xlane.f32.xlu0 %v963
  %v965 = vpop.xlane.xlu0 %964
  %v966 = vsel %vm950, %v853, -inf
  %967 = vmax.xlane.f32.xlu0 %v966
  %v968 = vpop.xlane.xlu0 %967
  %v969 = vsel %vm950, %v856, -inf
  %970 = vmax.xlane.f32.xlu0 %v969
  %v971 = vpop.xlane.xlu0 %970
  %v972 = vsel %vm950, %v859, -inf
  %973 = vmax.xlane.f32.xlu0 %v972
  %v974 = vpop.xlane.xlu0 %973
  %v975 = vsel %vm950, %v927, -inf
  %976 = vmax.xlane.f32.xlu0 %v975
  %v977 = vpop.xlane.xlu0 %976
  %v978 = vsel %vm950, %v930, -inf
  %979 = vmax.xlane.f32.xlu0 %v978
  %v980 = vpop.xlane.xlu0 %979
  %v981 = vsel %vm950, %v933, -inf
  %982 = vmax.xlane.f32.xlu0 %v981
  %v983 = vpop.xlane.xlu0 %982
  %v984 = vsel %vm950, %v936, -inf
  %985 = vmax.xlane.f32.xlu0 %v984
  %v986 = vpop.xlane.xlu0 %985
  %v987 = vsel %vm950, %v939, -inf
  %988 = vmax.xlane.f32.xlu0 %v987
  %v989 = vpop.xlane.xlu0 %988
  %v990 = vsel %vm950, %v942, -inf
  %991 = vmax.xlane.f32.xlu0 %v990
  %v992 = vpop.xlane.xlu0 %991
  %v993 = vsel %vm950, %v945, -inf
  %994 = vmax.xlane.f32.xlu0 %v993
  %v995 = vpop.xlane.xlu0 %994
  %v996 = vsel %vm950, %v948, -inf
  %997 = vmax.xlane.f32.xlu0 %v996
  %v998 = vpop.xlane.xlu0 %997
  %v999 = vsub.f32 %v838, %v953
  %v1000 = vsub.f32 %v841, %v956
  %v1001 = vsub.f32 %v844, %v959
  %v1002 = vsub.f32 %v847, %v962
  %v1003 = vsub.f32 %v850, %v965
  %v1004 = vsub.f32 %v853, %v968
  %v1005 = vsub.f32 %v856, %v971
  %v1006 = vsub.f32 %v859, %v974
  %v1007 = vsub.f32 %v927, %v977
  %v1008 = vsub.f32 %v930, %v980
  %v1009 = vsub.f32 %v933, %v983
  %v1010 = vsub.f32 %v936, %v986
  %v1011 = vsub.f32 %v939, %v989
  %v1012 = vsub.f32 %v942, %v992
  %v1013 = vsub.f32 %v945, %v995
  %v1014 = vsub.f32 %v948, %v998
  %v1015 = vmul.f32 %v999, 1.442695
  %v1016 = vpow.pop %v1015
  %v1017 = vmul.f32 %v1000, 1.442695
  %v1018 = vpow.pop %v1017
  %v1019 = vmul.f32 %v1001, 1.442695
  %v1020 = vpow.pop %v1019
  %v1021 = vmul.f32 %v1002, 1.442695
  %v1022 = vpow.pop %v1021
  %v1023 = vmul.f32 %v1003, 1.442695
  %v1024 = vpow.pop %v1023
  %v1025 = vmul.f32 %v1004, 1.442695
  %v1026 = vpow.pop %v1025
  %v1027 = vmul.f32 %v1005, 1.442695
  %v1028 = vpow.pop %v1027
  %v1029 = vmul.f32 %v1006, 1.442695
  %v1030 = vpow.pop %v1029
  %v1031 = vmul.f32 %v1007, 1.442695
  %v1032 = vpow.pop %v1031
  %v1033 = vmul.f32 %v1008, 1.442695
  %v1034 = vpow.pop %v1033
  %v1035 = vmul.f32 %v1009, 1.442695
  %v1036 = vpow.pop %v1035
  %v1037 = vmul.f32 %v1010, 1.442695
  %v1038 = vpow.pop %v1037
  %v1039 = vmul.f32 %v1011, 1.442695
  %v1040 = vpow.pop %v1039
  %v1041 = vmul.f32 %v1012, 1.442695
  %v1042 = vpow.pop %v1041
  %v1043 = vmul.f32 %v1013, 1.442695
  %v1044 = vpow.pop %v1043
  %v1045 = vmul.f32 %v1014, 1.442695
  %v1046 = vpow.pop %v1045
  %v1047 = vsel %vm950, %v1016, 0.0
  %1048 = vadd.xlane.f32.xlu0 %v1047
  %v1049 = vpop.xlane.xlu0 %1048
  %v1050 = vsel %vm950, %v1018, 0.0
  %1051 = vadd.xlane.f32.xlu0 %v1050
  %v1052 = vpop.xlane.xlu0 %1051
  %v1053 = vsel %vm950, %v1020, 0.0
  %1054 = vadd.xlane.f32.xlu0 %v1053
  %v1055 = vpop.xlane.xlu0 %1054
  %v1056 = vsel %vm950, %v1022, 0.0
  %1057 = vadd.xlane.f32.xlu0 %v1056
  %v1058 = vpop.xlane.xlu0 %1057
  %v1059 = vsel %vm950, %v1024, 0.0
  %1060 = vadd.xlane.f32.xlu0 %v1059
  %v1061 = vpop.xlane.xlu0 %1060
  %v1062 = vsel %vm950, %v1026, 0.0
  %1063 = vadd.xlane.f32.xlu0 %v1062
  %v1064 = vpop.xlane.xlu0 %1063
  %v1065 = vsel %vm950, %v1028, 0.0
  %1066 = vadd.xlane.f32.xlu0 %v1065
  %v1067 = vpop.xlane.xlu0 %1066
  %v1068 = vsel %vm950, %v1030, 0.0
  %1069 = vadd.xlane.f32.xlu0 %v1068
  %v1070 = vpop.xlane.xlu0 %1069
  %v1071 = vsel %vm950, %v1032, 0.0
  %1072 = vadd.xlane.f32.xlu0 %v1071
  %v1073 = vpop.xlane.xlu0 %1072
  %v1074 = vsel %vm950, %v1034, 0.0
  %1075 = vadd.xlane.f32.xlu0 %v1074
  %v1076 = vpop.xlane.xlu0 %1075
  %v1077 = vsel %vm950, %v1036, 0.0
  %1078 = vadd.xlane.f32.xlu0 %v1077
  %v1079 = vpop.xlane.xlu0 %1078
  %v1080 = vsel %vm950, %v1038, 0.0
  %1081 = vadd.xlane.f32.xlu0 %v1080
  %v1082 = vpop.xlane.xlu0 %1081
  %v1083 = vsel %vm950, %v1040, 0.0
  %1084 = vadd.xlane.f32.xlu0 %v1083
  %v1085 = vpop.xlane.xlu0 %1084
  %v1086 = vsel %vm950, %v1042, 0.0
  %1087 = vadd.xlane.f32.xlu0 %v1086
  %v1088 = vpop.xlane.xlu0 %1087
  %v1089 = vsel %vm950, %v1044, 0.0
  %1090 = vadd.xlane.f32.xlu0 %v1089
  %v1091 = vpop.xlane.xlu0 %1090
  %v1092 = vsel %vm950, %v1046, 0.0
  %1093 = vadd.xlane.f32.xlu0 %v1092
  %v1094 = vpop.xlane.xlu0 %1093
  %v1096 = vsel %vm950, %v1016, 0
  %v1099 = vsel %vm950, %v1018, 0
  %v1102 = vsel %vm950, %v1020, 0
  %v1105 = vsel %vm950, %v1022, 0
  %v1108 = vsel %vm950, %v1024, 0
  %v1111 = vsel %vm950, %v1026, 0
  %v1114 = vsel %vm950, %v1028, 0
  %v1117 = vsel %vm950, %v1030, 0
  %1119 = vmatpush.msra.mxu0 0.0
  %1120 = vmatpush.msra.mxu0 0.0
  %1121 = vmatpush.msra.mxu0 0.0
  %1122 = vmatpush.msra.mxu0 0.0
  %1123 = vmatpush.msra.mxu0 0.0
  %1124 = vmatpush.msra.mxu0 0.0
  %1125 = vmatpush.msra.mxu0 0.0
  %1126 = vmatpush.msra.mxu0 0.0
  %1127 = vmatpush.msra.mxu0 %v745
  %1128 = vmatpush.msra.mxu0 %v742
  %1129 = vmatpush.msra.mxu0 %v739
  %1130 = vmatpush.msra.mxu0 %v736
  %1131 = vmatpush.msra.mxu0 %v733
  %1132 = vmatpush.msra.mxu0 %v730
  %1133 = vmatpush.msra.mxu0 %v727
  %1134 = vmatpush.msra.mxu0 %v724
  %1135 = vmatmul.f32.gmra.mxu0 %v1096
  %v1136 = vpop.f32.mrf.mxu0
  %v1137 = vadd.f32 0.0, %v1136
  %1138 = vmatmul.f32.gmra.mxu0 %v1099
  %v1139 = vpop.f32.mrf.mxu0
  %v1140 = vadd.f32 0.0, %v1139
  %1141 = vmatmul.f32.gmra.mxu0 %v1102
  %v1142 = vpop.f32.mrf.mxu0
  %v1143 = vadd.f32 0.0, %v1142
  %1144 = vmatmul.f32.gmra.mxu0 %v1105
  %v1145 = vpop.f32.mrf.mxu0
  %v1146 = vadd.f32 0.0, %v1145
  %1147 = vmatmul.f32.gmra.mxu0 %v1108
  %v1148 = vpop.f32.mrf.mxu0
  %v1149 = vadd.f32 0.0, %v1148
  %1150 = vmatmul.f32.gmra.mxu0 %v1111
  %v1151 = vpop.f32.mrf.mxu0
  %v1152 = vadd.f32 0.0, %v1151
  %1153 = vmatmul.f32.gmra.mxu0 %v1114
  %v1154 = vpop.f32.mrf.mxu0
  %v1155 = vadd.f32 0.0, %v1154
  %1156 = vmatmul.f32.gmra.mxu0 %v1117
  %v1157 = vpop.f32.mrf.mxu0
  %v1158 = vadd.f32 0.0, %v1157
  %1159 = vdwg.mxu0
  %v1161 = vsel %vm950, %v1032, 0
  %v1164 = vsel %vm950, %v1034, 0
  %v1167 = vsel %vm950, %v1036, 0
  %v1170 = vsel %vm950, %v1038, 0
  %v1173 = vsel %vm950, %v1040, 0
  %v1176 = vsel %vm950, %v1042, 0
  %v1179 = vsel %vm950, %v1044, 0
  %v1182 = vsel %vm950, %v1046, 0
  %1184 = vmatpush.msra.mxu0 0.0
  %1185 = vmatpush.msra.mxu0 0.0
  %1186 = vmatpush.msra.mxu0 0.0
  %1187 = vmatpush.msra.mxu0 0.0
  %1188 = vmatpush.msra.mxu0 0.0
  %1189 = vmatpush.msra.mxu0 0.0
  %1190 = vmatpush.msra.mxu0 0.0
  %1191 = vmatpush.msra.mxu0 0.0
  %1192 = vmatpush.msra.mxu0 %v769
  %1193 = vmatpush.msra.mxu0 %v766
  %1194 = vmatpush.msra.mxu0 %v763
  %1195 = vmatpush.msra.mxu0 %v760
  %1196 = vmatpush.msra.mxu0 %v757
  %1197 = vmatpush.msra.mxu0 %v754
  %1198 = vmatpush.msra.mxu0 %v751
  %1199 = vmatpush.msra.mxu0 %v748
  %1200 = vmatmul.f32.gmra.mxu0 %v1161
  %v1201 = vpop.f32.mrf.mxu0
  %v1202 = vadd.f32 0.0, %v1201
  %1203 = vmatmul.f32.gmra.mxu0 %v1164
  %v1204 = vpop.f32.mrf.mxu0
  %v1205 = vadd.f32 0.0, %v1204
  %1206 = vmatmul.f32.gmra.mxu0 %v1167
  %v1207 = vpop.f32.mrf.mxu0
  %v1208 = vadd.f32 0.0, %v1207
  %1209 = vmatmul.f32.gmra.mxu0 %v1170
  %v1210 = vpop.f32.mrf.mxu0
  %v1211 = vadd.f32 0.0, %v1210
  %1212 = vmatmul.f32.gmra.mxu0 %v1173
  %v1213 = vpop.f32.mrf.mxu0
  %v1214 = vadd.f32 0.0, %v1213
  %1215 = vmatmul.f32.gmra.mxu0 %v1176
  %v1216 = vpop.f32.mrf.mxu0
  %v1217 = vadd.f32 0.0, %v1216
  %1218 = vmatmul.f32.gmra.mxu0 %v1179
  %v1219 = vpop.f32.mrf.mxu0
  %v1220 = vadd.f32 0.0, %v1219
  %1221 = vmatmul.f32.gmra.mxu0 %v1182
  %v1222 = vpop.f32.mrf.mxu0
  %v1223 = vadd.f32 0.0, %v1222
  %1224 = vdwg.mxu0
  %v1225 = vrcp.pop %v1049
  %v1226 = vrcp.pop %v1052
  %v1227 = vrcp.pop %v1055
  %v1228 = vrcp.pop %v1058
  %v1229 = vrcp.pop %v1061
  %v1230 = vrcp.pop %v1064
  %v1231 = vrcp.pop %v1067
  %v1232 = vrcp.pop %v1070
  %v1233 = vrcp.pop %v1073
  %v1234 = vrcp.pop %v1076
  %v1235 = vrcp.pop %v1079
  %v1236 = vrcp.pop %v1082
  %v1237 = vrcp.pop %v1085
  %v1238 = vrcp.pop %v1088
  %v1239 = vrcp.pop %v1091
  %v1240 = vrcp.pop %v1094
  %v1241 = vmul.f32 %v1137, %v1225
  %v1242 = vmul.f32 %v1140, %v1226
  %v1243 = vmul.f32 %v1143, %v1227
  %v1244 = vmul.f32 %v1146, %v1228
  %v1245 = vmul.f32 %v1149, %v1229
  %v1246 = vmul.f32 %v1152, %v1230
  %v1247 = vmul.f32 %v1155, %v1231
  %v1248 = vmul.f32 %v1158, %v1232
  %v1249 = vmul.f32 %v1202, %v1233
  %v1250 = vmul.f32 %v1205, %v1234
  %v1251 = vmul.f32 %v1208, %v1235
  %v1252 = vmul.f32 %v1211, %v1236
  %v1253 = vmul.f32 %v1214, %v1237
  %v1254 = vmul.f32 %v1217, %v1238
  %v1255 = vmul.f32 %v1220, %v1239
  %v1256 = vmul.f32 %v1223, %v1240
  %v1257 = vld [vmem:[%s9] sm:$0xff]
  %s1258 = scalar_lea.vmem %s3, 32
  %v1259 = vld [vmem:[%s1258] sm:$0xff]
  %v1260 = vld [vmem:[%s1258 + $0x8] sm:$0xff]
  %v1261 = vld [vmem:[%s1258 + $0x10] sm:$0xff]
  %v1262 = vld [vmem:[%s1258 + $0x18] sm:$0xff]
  %s1263 = scalar_lea.vmem %s4, 1
  %v1264 = vld [vmem:[%s1263] sm:$0x1]
  %v1266 = vperm.slane %v1264, 0
  %1268 = vmatpush.msra.mxu0 0.0
  %1269 = vmatpush.msra.mxu0 0.0
  %1270 = vmatpush.msra.mxu0 0.0
  %1271 = vmatpush.msra.mxu0 0.0
  %1272 = vmatpush.msra.mxu0 0.0
  %1273 = vmatpush.msra.mxu0 0.0
  %1274 = vmatpush.msra.mxu0 0.0
  %1275 = vmatpush.msra.mxu0 0.0
  %1276 = vmatpush.msra.mxu0 0.0
  %1277 = vmatpush.msra.mxu0 0.0
  %1278 = vmatpush.msra.mxu0 0.0
  %1279 = vmatpush.msra.mxu0 0.0
  %1280 = vmatpush.msra.mxu0 %v1262
  %1281 = vmatpush.msra.mxu0 %v1261
  %1282 = vmatpush.msra.mxu0 %v1260
  %1283 = vmatpush.msra.mxu0 %v1259
  %1284 = vmatmul.f32.gmra.mxu0 %v513
  %v1285 = vpop.f32.mrf.mxu0
  %v1286 = vadd.f32 %v1266, %v1285
  %1287 = vmatmul.f32.gmra.mxu0 %v516
  %v1288 = vpop.f32.mrf.mxu0
  %v1289 = vadd.f32 %v1266, %v1288
  %1290 = vmatmul.f32.gmra.mxu0 %v519
  %v1291 = vpop.f32.mrf.mxu0
  %v1292 = vadd.f32 %v1266, %v1291
  %1293 = vmatmul.f32.gmra.mxu0 %v522
  %v1294 = vpop.f32.mrf.mxu0
  %v1295 = vadd.f32 %v1266, %v1294
  %1296 = vmatmul.f32.gmra.mxu0 %v525
  %v1297 = vpop.f32.mrf.mxu0
  %v1298 = vadd.f32 %v1266, %v1297
  %1299 = vmatmul.f32.gmra.mxu0 %v528
  %v1300 = vpop.f32.mrf.mxu0
  %v1301 = vadd.f32 %v1266, %v1300
  %1302 = vmatmul.f32.gmra.mxu0 %v531
  %v1303 = vpop.f32.mrf.mxu0
  %v1304 = vadd.f32 %v1266, %v1303
  %1305 = vmatmul.f32.gmra.mxu0 %v534
  %v1306 = vpop.f32.mrf.mxu0
  %v1307 = vadd.f32 %v1266, %v1306
  %1308 = vmatmul.f32.gmra.mxu0 %v537
  %v1309 = vpop.f32.mrf.mxu0
  %v1310 = vadd.f32 %v1266, %v1309
  %1311 = vmatmul.f32.gmra.mxu0 %v540
  %v1312 = vpop.f32.mrf.mxu0
  %v1313 = vadd.f32 %v1266, %v1312
  %1314 = vmatmul.f32.gmra.mxu0 %v543
  %v1315 = vpop.f32.mrf.mxu0
  %v1316 = vadd.f32 %v1266, %v1315
  %1317 = vmatmul.f32.gmra.mxu0 %v546
  %v1318 = vpop.f32.mrf.mxu0
  %v1319 = vadd.f32 %v1266, %v1318
  %1320 = vmatmul.f32.gmra.mxu0 %v549
  %v1321 = vpop.f32.mrf.mxu0
  %v1322 = vadd.f32 %v1266, %v1321
  %1323 = vmatmul.f32.gmra.mxu0 %v552
  %v1324 = vpop.f32.mrf.mxu0
  %v1325 = vadd.f32 %v1266, %v1324
  %1326 = vmatmul.f32.gmra.mxu0 %v555
  %v1327 = vpop.f32.mrf.mxu0
  %v1328 = vadd.f32 %v1266, %v1327
  %1329 = vmatmul.f32.gmra.mxu0 %v558
  %v1330 = vpop.f32.mrf.mxu0
  %v1331 = vadd.f32 %v1266, %v1330
  %1332 = vdwg.mxu0
  %s1333 = scalar_lea.vmem %s5, 32
  %v1334 = vld [vmem:[%s1333] sm:$0xff]
  %v1335 = vld [vmem:[%s1333 + $0x8] sm:$0xff]
  %v1336 = vld [vmem:[%s1333 + $0x10] sm:$0xff]
  %v1337 = vld [vmem:[%s1333 + $0x18] sm:$0xff]
  %s1338 = scalar_lea.vmem %s6, 1
  %v1339 = vld [vmem:[%s1338] sm:$0x1]
  %v1341 = vperm.slane %v1339, 0
  %1343 = vmatpush.msra.mxu0 0.0
  %1344 = vmatpush.msra.mxu0 0.0
  %1345 = vmatpush.msra.mxu0 0.0
  %1346 = vmatpush.msra.mxu0 0.0
  %1347 = vmatpush.msra.mxu0 0.0
  %1348 = vmatpush.msra.mxu0 0.0
  %1349 = vmatpush.msra.mxu0 0.0
  %1350 = vmatpush.msra.mxu0 0.0
  %1351 = vmatpush.msra.mxu0 0.0
  %1352 = vmatpush.msra.mxu0 0.0
  %1353 = vmatpush.msra.mxu0 0.0
  %1354 = vmatpush.msra.mxu0 0.0
  %1355 = vmatpush.msra.mxu0 %v1337
  %1356 = vmatpush.msra.mxu0 %v1336
  %1357 = vmatpush.msra.mxu0 %v1335
  %1358 = vmatpush.msra.mxu0 %v1334
  %1359 = vmatmul.f32.gmra.mxu0 %v513
  %v1360 = vpop.f32.mrf.mxu0
  %v1361 = vadd.f32 %v1341, %v1360
  %1362 = vmatmul.f32.gmra.mxu0 %v516
  %v1363 = vpop.f32.mrf.mxu0
  %v1364 = vadd.f32 %v1341, %v1363
  %1365 = vmatmul.f32.gmra.mxu0 %v519
  %v1366 = vpop.f32.mrf.mxu0
  %v1367 = vadd.f32 %v1341, %v1366
  %1368 = vmatmul.f32.gmra.mxu0 %v522
  %v1369 = vpop.f32.mrf.mxu0
  %v1370 = vadd.f32 %v1341, %v1369
  %1371 = vmatmul.f32.gmra.mxu0 %v525
  %v1372 = vpop.f32.mrf.mxu0
  %v1373 = vadd.f32 %v1341, %v1372
  %1374 = vmatmul.f32.gmra.mxu0 %v528
  %v1375 = vpop.f32.mrf.mxu0
  %v1376 = vadd.f32 %v1341, %v1375
  %1377 = vmatmul.f32.gmra.mxu0 %v531
  %v1378 = vpop.f32.mrf.mxu0
  %v1379 = vadd.f32 %v1341, %v1378
  %1380 = vmatmul.f32.gmra.mxu0 %v534
  %v1381 = vpop.f32.mrf.mxu0
  %v1382 = vadd.f32 %v1341, %v1381
  %1383 = vmatmul.f32.gmra.mxu0 %v537
  %v1384 = vpop.f32.mrf.mxu0
  %v1385 = vadd.f32 %v1341, %v1384
  %1386 = vmatmul.f32.gmra.mxu0 %v540
  %v1387 = vpop.f32.mrf.mxu0
  %v1388 = vadd.f32 %v1341, %v1387
  %1389 = vmatmul.f32.gmra.mxu0 %v543
  %v1390 = vpop.f32.mrf.mxu0
  %v1391 = vadd.f32 %v1341, %v1390
  %1392 = vmatmul.f32.gmra.mxu0 %v546
  %v1393 = vpop.f32.mrf.mxu0
  %v1394 = vadd.f32 %v1341, %v1393
  %1395 = vmatmul.f32.gmra.mxu0 %v549
  %v1396 = vpop.f32.mrf.mxu0
  %v1397 = vadd.f32 %v1341, %v1396
  %1398 = vmatmul.f32.gmra.mxu0 %v552
  %v1399 = vpop.f32.mrf.mxu0
  %v1400 = vadd.f32 %v1341, %v1399
  %1401 = vmatmul.f32.gmra.mxu0 %v555
  %v1402 = vpop.f32.mrf.mxu0
  %v1403 = vadd.f32 %v1341, %v1402
  %1404 = vmatmul.f32.gmra.mxu0 %v558
  %v1405 = vpop.f32.mrf.mxu0
  %v1406 = vadd.f32 %v1341, %v1405
  %1407 = vdwg.mxu0
  %s1408 = scalar_lea.vmem %s7, 32
  %v1409 = vld [vmem:[%s1408] sm:$0xff]
  %v1410 = vld [vmem:[%s1408 + $0x8] sm:$0xff]
  %v1411 = vld [vmem:[%s1408 + $0x10] sm:$0xff]
  %v1412 = vld [vmem:[%s1408 + $0x18] sm:$0xff]
  %s1413 = scalar_lea.vmem %s8, 1
  %v1414 = vld [vmem:[%s1413] sm:$0x1]
  %v1416 = vperm.slane %v1414, 0
  %1418 = vmatpush.msra.mxu0 0.0
  %1419 = vmatpush.msra.mxu0 0.0
  %1420 = vmatpush.msra.mxu0 0.0
  %1421 = vmatpush.msra.mxu0 0.0
  %1422 = vmatpush.msra.mxu0 0.0
  %1423 = vmatpush.msra.mxu0 0.0
  %1424 = vmatpush.msra.mxu0 0.0
  %1425 = vmatpush.msra.mxu0 0.0
  %1426 = vmatpush.msra.mxu0 0.0
  %1427 = vmatpush.msra.mxu0 0.0
  %1428 = vmatpush.msra.mxu0 0.0
  %1429 = vmatpush.msra.mxu0 0.0
  %1430 = vmatpush.msra.mxu0 %v1412
  %1431 = vmatpush.msra.mxu0 %v1411
  %1432 = vmatpush.msra.mxu0 %v1410
  %1433 = vmatpush.msra.mxu0 %v1409
  %1434 = vmatmul.f32.gmra.mxu0 %v513
  %v1435 = vpop.f32.mrf.mxu0
  %v1436 = vadd.f32 %v1416, %v1435
  %1437 = vmatmul.f32.gmra.mxu0 %v516
  %v1438 = vpop.f32.mrf.mxu0
  %v1439 = vadd.f32 %v1416, %v1438
  %1440 = vmatmul.f32.gmra.mxu0 %v519
  %v1441 = vpop.f32.mrf.mxu0
  %v1442 = vadd.f32 %v1416, %v1441
  %1443 = vmatmul.f32.gmra.mxu0 %v522
  %v1444 = vpop.f32.mrf.mxu0
  %v1445 = vadd.f32 %v1416, %v1444
  %1446 = vmatmul.f32.gmra.mxu0 %v525
  %v1447 = vpop.f32.mrf.mxu0
  %v1448 = vadd.f32 %v1416, %v1447
  %1449 = vmatmul.f32.gmra.mxu0 %v528
  %v1450 = vpop.f32.mrf.mxu0
  %v1451 = vadd.f32 %v1416, %v1450
  %1452 = vmatmul.f32.gmra.mxu0 %v531
  %v1453 = vpop.f32.mrf.mxu0
  %v1454 = vadd.f32 %v1416, %v1453
  %1455 = vmatmul.f32.gmra.mxu0 %v534
  %v1456 = vpop.f32.mrf.mxu0
  %v1457 = vadd.f32 %v1416, %v1456
  %1458 = vmatmul.f32.gmra.mxu0 %v537
  %v1459 = vpop.f32.mrf.mxu0
  %v1460 = vadd.f32 %v1416, %v1459
  %1461 = vmatmul.f32.gmra.mxu0 %v540
  %v1462 = vpop.f32.mrf.mxu0
  %v1463 = vadd.f32 %v1416, %v1462
  %1464 = vmatmul.f32.gmra.mxu0 %v543
  %v1465 = vpop.f32.mrf.mxu0
  %v1466 = vadd.f32 %v1416, %v1465
  %1467 = vmatmul.f32.gmra.mxu0 %v546
  %v1468 = vpop.f32.mrf.mxu0
  %v1469 = vadd.f32 %v1416, %v1468
  %1470 = vmatmul.f32.gmra.mxu0 %v549
  %v1471 = vpop.f32.mrf.mxu0
  %v1472 = vadd.f32 %v1416, %v1471
  %1473 = vmatmul.f32.gmra.mxu0 %v552
  %v1474 = vpop.f32.mrf.mxu0
  %v1475 = vadd.f32 %v1416, %v1474
  %1476 = vmatmul.f32.gmra.mxu0 %v555
  %v1477 = vpop.f32.mrf.mxu0
  %v1478 = vadd.f32 %v1416, %v1477
  %1479 = vmatmul.f32.gmra.mxu0 %v558
  %v1480 = vpop.f32.mrf.mxu0
  %v1481 = vadd.f32 %v1416, %v1480
  %1482 = vdwg.mxu0
  %v1484 = vsel %vm771, %v1286, 0
  %v1487 = vsel %vm771, %v1289, 0
  %v1490 = vsel %vm771, %v1292, 0
  %v1493 = vsel %vm771, %v1295, 0
  %v1496 = vsel %vm771, %v1298, 0
  %v1499 = vsel %vm771, %v1301, 0
  %v1502 = vsel %vm771, %v1304, 0
  %v1505 = vsel %vm771, %v1307, 0
  %v1508 = vsel %vm771, %v1361, 0
  %v1511 = vsel %vm771, %v1364, 0
  %v1514 = vsel %vm771, %v1367, 0
  %v1517 = vsel %vm771, %v1370, 0
  %v1520 = vsel %vm771, %v1373, 0
  %v1523 = vsel %vm771, %v1376, 0
  %v1526 = vsel %vm771, %v1379, 0
  %v1529 = vsel %vm771, %v1382, 0
  %1531 = vmatpush.xpose.msra.mxu0 0.0
  %1532 = vmatpush.xpose.msra.mxu0 0.0
  %1533 = vmatpush.xpose.msra.mxu0 0.0
  %1534 = vmatpush.xpose.msra.mxu0 0.0
  %1535 = vmatpush.xpose.msra.mxu0 0.0
  %1536 = vmatpush.xpose.msra.mxu0 0.0
  %1537 = vmatpush.xpose.msra.mxu0 0.0
  %1538 = vmatpush.xpose.msra.mxu0 0.0
  %1539 = vmatpush.xpose.msra.mxu0 %v1529
  %1540 = vmatpush.xpose.msra.mxu0 %v1526
  %1541 = vmatpush.xpose.msra.mxu0 %v1523
  %1542 = vmatpush.xpose.msra.mxu0 %v1520
  %1543 = vmatpush.xpose.msra.mxu0 %v1517
  %1544 = vmatpush.xpose.msra.mxu0 %v1514
  %1545 = vmatpush.xpose.msra.mxu0 %v1511
  %1546 = vmatpush.xpose.msra.mxu0 %v1508
  %1547 = vmatmul.f32.gmra.mxu0 %v1484
  %v1548 = vpop.f32.mrf.mxu0
  %v1549 = vadd.f32 0.0, %v1548
  %1550 = vmatmul.f32.gmra.mxu0 %v1487
  %v1551 = vpop.f32.mrf.mxu0
  %v1552 = vadd.f32 0.0, %v1551
  %1553 = vmatmul.f32.gmra.mxu0 %v1490
  %v1554 = vpop.f32.mrf.mxu0
  %v1555 = vadd.f32 0.0, %v1554
  %1556 = vmatmul.f32.gmra.mxu0 %v1493
  %v1557 = vpop.f32.mrf.mxu0
  %v1558 = vadd.f32 0.0, %v1557
  %1559 = vmatmul.f32.gmra.mxu0 %v1496
  %v1560 = vpop.f32.mrf.mxu0
  %v1561 = vadd.f32 0.0, %v1560
  %1562 = vmatmul.f32.gmra.mxu0 %v1499
  %v1563 = vpop.f32.mrf.mxu0
  %v1564 = vadd.f32 0.0, %v1563
  %1565 = vmatmul.f32.gmra.mxu0 %v1502
  %v1566 = vpop.f32.mrf.mxu0
  %v1567 = vadd.f32 0.0, %v1566
  %1568 = vmatmul.f32.gmra.mxu0 %v1505
  %v1569 = vpop.f32.mrf.mxu0
  %v1570 = vadd.f32 0.0, %v1569
  %1571 = vdwg.mxu0
  %v1573 = vsel %vm771, %v1310, 0
  %v1576 = vsel %vm771, %v1313, 0
  %v1579 = vsel %vm771, %v1316, 0
  %v1582 = vsel %vm771, %v1319, 0
  %v1585 = vsel %vm771, %v1322, 0
  %v1588 = vsel %vm771, %v1325, 0
  %v1591 = vsel %vm771, %v1328, 0
  %v1594 = vsel %vm771, %v1331, 0
  %v1597 = vsel %vm771, %v1385, 0
  %v1600 = vsel %vm771, %v1388, 0
  %v1603 = vsel %vm771, %v1391, 0
  %v1606 = vsel %vm771, %v1394, 0
  %v1609 = vsel %vm771, %v1397, 0
  %v1612 = vsel %vm771, %v1400, 0
  %v1615 = vsel %vm771, %v1403, 0
  %v1618 = vsel %vm771, %v1406, 0
  %1620 = vmatpush.xpose.msra.mxu0 0.0
  %1621 = vmatpush.xpose.msra.mxu0 0.0
  %1622 = vmatpush.xpose.msra.mxu0 0.0
  %1623 = vmatpush.xpose.msra.mxu0 0.0
  %1624 = vmatpush.xpose.msra.mxu0 0.0
  %1625 = vmatpush.xpose.msra.mxu0 0.0
  %1626 = vmatpush.xpose.msra.mxu0 0.0
  %1627 = vmatpush.xpose.msra.mxu0 0.0
  %1628 = vmatpush.xpose.msra.mxu0 %v1618
  %1629 = vmatpush.xpose.msra.mxu0 %v1615
  %1630 = vmatpush.xpose.msra.mxu0 %v1612
  %1631 = vmatpush.xpose.msra.mxu0 %v1609
  %1632 = vmatpush.xpose.msra.mxu0 %v1606
  %1633 = vmatpush.xpose.msra.mxu0 %v1603
  %1634 = vmatpush.xpose.msra.mxu0 %v1600
  %1635 = vmatpush.xpose.msra.mxu0 %v1597
  %1636 = vmatmul.f32.gmra.mxu0 %v1573
  %v1637 = vpop.f32.mrf.mxu0
  %v1638 = vadd.f32 0.0, %v1637
  %1639 = vmatmul.f32.gmra.mxu0 %v1576
  %v1640 = vpop.f32.mrf.mxu0
  %v1641 = vadd.f32 0.0, %v1640
  %1642 = vmatmul.f32.gmra.mxu0 %v1579
  %v1643 = vpop.f32.mrf.mxu0
  %v1644 = vadd.f32 0.0, %v1643
  %1645 = vmatmul.f32.gmra.mxu0 %v1582
  %v1646 = vpop.f32.mrf.mxu0
  %v1647 = vadd.f32 0.0, %v1646
  %1648 = vmatmul.f32.gmra.mxu0 %v1585
  %v1649 = vpop.f32.mrf.mxu0
  %v1650 = vadd.f32 0.0, %v1649
  %1651 = vmatmul.f32.gmra.mxu0 %v1588
  %v1652 = vpop.f32.mrf.mxu0
  %v1653 = vadd.f32 0.0, %v1652
  %1654 = vmatmul.f32.gmra.mxu0 %v1591
  %v1655 = vpop.f32.mrf.mxu0
  %v1656 = vadd.f32 0.0, %v1655
  %1657 = vmatmul.f32.gmra.mxu0 %v1594
  %v1658 = vpop.f32.mrf.mxu0
  %v1659 = vadd.f32 0.0, %v1658
  %1660 = vdwg.mxu0
  %v1661 = vsel %vm950, %v1549, -inf
  %1662 = vmax.xlane.f32.xlu0 %v1661
  %v1663 = vpop.xlane.xlu0 %1662
  %v1664 = vsel %vm950, %v1552, -inf
  %1665 = vmax.xlane.f32.xlu0 %v1664
  %v1666 = vpop.xlane.xlu0 %1665
  %v1667 = vsel %vm950, %v1555, -inf
  %1668 = vmax.xlane.f32.xlu0 %v1667
  %v1669 = vpop.xlane.xlu0 %1668
  %v1670 = vsel %vm950, %v1558, -inf
  %1671 = vmax.xlane.f32.xlu0 %v1670
  %v1672 = vpop.xlane.xlu0 %1671
  %v1673 = vsel %vm950, %v1561, -inf
  %1674 = vmax.xlane.f32.xlu0 %v1673
  %v1675 = vpop.xlane.xlu0 %1674
  %v1676 = vsel %vm950, %v1564, -inf
  %1677 = vmax.xlane.f32.xlu0 %v1676
  %v1678 = vpop.xlane.xlu0 %1677
  %v1679 = vsel %vm950, %v1567, -inf
  %1680 = vmax.xlane.f32.xlu0 %v1679
  %v1681 = vpop.xlane.xlu0 %1680
  %v1682 = vsel %vm950, %v1570, -inf
  %1683 = vmax.xlane.f32.xlu0 %v1682
  %v1684 = vpop.xlane.xlu0 %1683
  %v1685 = vsel %vm950, %v1638, -inf
  %1686 = vmax.xlane.f32.xlu0 %v1685
  %v1687 = vpop.xlane.xlu0 %1686
  %v1688 = vsel %vm950, %v1641, -inf
  %1689 = vmax.xlane.f32.xlu0 %v1688
  %v1690 = vpop.xlane.xlu0 %1689
  %v1691 = vsel %vm950, %v1644, -inf
  %1692 = vmax.xlane.f32.xlu0 %v1691
  %v1693 = vpop.xlane.xlu0 %1692
  %v1694 = vsel %vm950, %v1647, -inf
  %1695 = vmax.xlane.f32.xlu0 %v1694
  %v1696 = vpop.xlane.xlu0 %1695
  %v1697 = vsel %vm950, %v1650, -inf
  %1698 = vmax.xlane.f32.xlu0 %v1697
  %v1699 = vpop.xlane.xlu0 %1698
  %v1700 = vsel %vm950, %v1653, -inf
  %1701 = vmax.xlane.f32.xlu0 %v1700
  %v1702 = vpop.xlane.xlu0 %1701
  %v1703 = vsel %vm950, %v1656, -inf
  %1704 = vmax.xlane.f32.xlu0 %v1703
  %v1705 = vpop.xlane.xlu0 %1704
  %v1706 = vsel %vm950, %v1659, -inf
  %1707 = vmax.xlane.f32.xlu0 %v1706
  %v1708 = vpop.xlane.xlu0 %1707
  %v1709 = vsub.f32 %v1549, %v1663
  %v1710 = vsub.f32 %v1552, %v1666
  %v1711 = vsub.f32 %v1555, %v1669
  %v1712 = vsub.f32 %v1558, %v1672
  %v1713 = vsub.f32 %v1561, %v1675
  %v1714 = vsub.f32 %v1564, %v1678
  %v1715 = vsub.f32 %v1567, %v1681
  %v1716 = vsub.f32 %v1570, %v1684
  %v1717 = vsub.f32 %v1638, %v1687
  %v1718 = vsub.f32 %v1641, %v1690
  %v1719 = vsub.f32 %v1644, %v1693
  %v1720 = vsub.f32 %v1647, %v1696
  %v1721 = vsub.f32 %v1650, %v1699
  %v1722 = vsub.f32 %v1653, %v1702
  %v1723 = vsub.f32 %v1656, %v1705
  %v1724 = vsub.f32 %v1659, %v1708
  %v1725 = vmul.f32 %v1709, 1.442695
  %v1726 = vpow.pop %v1725
  %v1727 = vmul.f32 %v1710, 1.442695
  %v1728 = vpow.pop %v1727
  %v1729 = vmul.f32 %v1711, 1.442695
  %v1730 = vpow.pop %v1729
  %v1731 = vmul.f32 %v1712, 1.442695
  %v1732 = vpow.pop %v1731
  %v1733 = vmul.f32 %v1713, 1.442695
  %v1734 = vpow.pop %v1733
  %v1735 = vmul.f32 %v1714, 1.442695
  %v1736 = vpow.pop %v1735
  %v1737 = vmul.f32 %v1715, 1.442695
  %v1738 = vpow.pop %v1737
  %v1739 = vmul.f32 %v1716, 1.442695
  %v1740 = vpow.pop %v1739
  %v1741 = vmul.f32 %v1717, 1.442695
  %v1742 = vpow.pop %v1741
  %v1743 = vmul.f32 %v1718, 1.442695
  %v1744 = vpow.pop %v1743
  %v1745 = vmul.f32 %v1719, 1.442695
  %v1746 = vpow.pop %v1745
  %v1747 = vmul.f32 %v1720, 1.442695
  %v1748 = vpow.pop %v1747
  %v1749 = vmul.f32 %v1721, 1.442695
  %v1750 = vpow.pop %v1749
  %v1751 = vmul.f32 %v1722, 1.442695
  %v1752 = vpow.pop %v1751
  %v1753 = vmul.f32 %v1723, 1.442695
  %v1754 = vpow.pop %v1753
  %v1755 = vmul.f32 %v1724, 1.442695
  %v1756 = vpow.pop %v1755
  %v1757 = vsel %vm950, %v1726, 0.0
  %1758 = vadd.xlane.f32.xlu0 %v1757
  %v1759 = vpop.xlane.xlu0 %1758
  %v1760 = vsel %vm950, %v1728, 0.0
  %1761 = vadd.xlane.f32.xlu0 %v1760
  %v1762 = vpop.xlane.xlu0 %1761
  %v1763 = vsel %vm950, %v1730, 0.0
  %1764 = vadd.xlane.f32.xlu0 %v1763
  %v1765 = vpop.xlane.xlu0 %1764
  %v1766 = vsel %vm950, %v1732, 0.0
  %1767 = vadd.xlane.f32.xlu0 %v1766
  %v1768 = vpop.xlane.xlu0 %1767
  %v1769 = vsel %vm950, %v1734, 0.0
  %1770 = vadd.xlane.f32.xlu0 %v1769
  %v1771 = vpop.xlane.xlu0 %1770
  %v1772 = vsel %vm950, %v1736, 0.0
  %1773 = vadd.xlane.f32.xlu0 %v1772
  %v1774 = vpop.xlane.xlu0 %1773
  %v1775 = vsel %vm950, %v1738, 0.0
  %1776 = vadd.xlane.f32.xlu0 %v1775
  %v1777 = vpop.xlane.xlu0 %1776
  %v1778 = vsel %vm950, %v1740, 0.0
  %1779 = vadd.xlane.f32.xlu0 %v1778
  %v1780 = vpop.xlane.xlu0 %1779
  %v1781 = vsel %vm950, %v1742, 0.0
  %1782 = vadd.xlane.f32.xlu0 %v1781
  %v1783 = vpop.xlane.xlu0 %1782
  %v1784 = vsel %vm950, %v1744, 0.0
  %1785 = vadd.xlane.f32.xlu0 %v1784
  %v1786 = vpop.xlane.xlu0 %1785
  %v1787 = vsel %vm950, %v1746, 0.0
  %1788 = vadd.xlane.f32.xlu0 %v1787
  %v1789 = vpop.xlane.xlu0 %1788
  %v1790 = vsel %vm950, %v1748, 0.0
  %1791 = vadd.xlane.f32.xlu0 %v1790
  %v1792 = vpop.xlane.xlu0 %1791
  %v1793 = vsel %vm950, %v1750, 0.0
  %1794 = vadd.xlane.f32.xlu0 %v1793
  %v1795 = vpop.xlane.xlu0 %1794
  %v1796 = vsel %vm950, %v1752, 0.0
  %1797 = vadd.xlane.f32.xlu0 %v1796
  %v1798 = vpop.xlane.xlu0 %1797
  %v1799 = vsel %vm950, %v1754, 0.0
  %1800 = vadd.xlane.f32.xlu0 %v1799
  %v1801 = vpop.xlane.xlu0 %1800
  %v1802 = vsel %vm950, %v1756, 0.0
  %1803 = vadd.xlane.f32.xlu0 %v1802
  %v1804 = vpop.xlane.xlu0 %1803
  %v1806 = vsel %vm950, %v1726, 0
  %v1809 = vsel %vm950, %v1728, 0
  %v1812 = vsel %vm950, %v1730, 0
  %v1815 = vsel %vm950, %v1732, 0
  %v1818 = vsel %vm950, %v1734, 0
  %v1821 = vsel %vm950, %v1736, 0
  %v1824 = vsel %vm950, %v1738, 0
  %v1827 = vsel %vm950, %v1740, 0
  %1829 = vmatpush.msra.mxu0 0.0
  %1830 = vmatpush.msra.mxu0 0.0
  %1831 = vmatpush.msra.mxu0 0.0
  %1832 = vmatpush.msra.mxu0 0.0
  %1833 = vmatpush.msra.mxu0 0.0
  %1834 = vmatpush.msra.mxu0 0.0
  %1835 = vmatpush.msra.mxu0 0.0
  %1836 = vmatpush.msra.mxu0 0.0
  %1837 = vmatpush.msra.mxu0 %v1457
  %1838 = vmatpush.msra.mxu0 %v1454
  %1839 = vmatpush.msra.mxu0 %v1451
  %1840 = vmatpush.msra.mxu0 %v1448
  %1841 = vmatpush.msra.mxu0 %v1445
  %1842 = vmatpush.msra.mxu0 %v1442
  %1843 = vmatpush.msra.mxu0 %v1439
  %1844 = vmatpush.msra.mxu0 %v1436
  %1845 = vmatmul.f32.gmra.mxu0 %v1806
  %v1846 = vpop.f32.mrf.mxu0
  %v1847 = vadd.f32 0.0, %v1846
  %1848 = vmatmul.f32.gmra.mxu0 %v1809
  %v1849 = vpop.f32.mrf.mxu0
  %v1850 = vadd.f32 0.0, %v1849
  %1851 = vmatmul.f32.gmra.mxu0 %v1812
  %v1852 = vpop.f32.mrf.mxu0
  %v1853 = vadd.f32 0.0, %v1852
  %1854 = vmatmul.f32.gmra.mxu0 %v1815
  %v1855 = vpop.f32.mrf.mxu0
  %v1856 = vadd.f32 0.0, %v1855
  %1857 = vmatmul.f32.gmra.mxu0 %v1818
  %v1858 = vpop.f32.mrf.mxu0
  %v1859 = vadd.f32 0.0, %v1858
  %1860 = vmatmul.f32.gmra.mxu0 %v1821
  %v1861 = vpop.f32.mrf.mxu0
  %v1862 = vadd.f32 0.0, %v1861
  %1863 = vmatmul.f32.gmra.mxu0 %v1824
  %v1864 = vpop.f32.mrf.mxu0
  %v1865 = vadd.f32 0.0, %v1864
  %1866 = vmatmul.f32.gmra.mxu0 %v1827
  %v1867 = vpop.f32.mrf.mxu0
  %v1868 = vadd.f32 0.0, %v1867
  %1869 = vdwg.mxu0
  %v1871 = vsel %vm950, %v1742, 0
  %v1874 = vsel %vm950, %v1744, 0
  %v1877 = vsel %vm950, %v1746, 0
  %v1880 = vsel %vm950, %v1748, 0
  %v1883 = vsel %vm950, %v1750, 0
  %v1886 = vsel %vm950, %v1752, 0
  %v1889 = vsel %vm950, %v1754, 0
  %v1892 = vsel %vm950, %v1756, 0
  %1894 = vmatpush.msra.mxu0 0.0
  %1895 = vmatpush.msra.mxu0 0.0
  %1896 = vmatpush.msra.mxu0 0.0
  %1897 = vmatpush.msra.mxu0 0.0
  %1898 = vmatpush.msra.mxu0 0.0
  %1899 = vmatpush.msra.mxu0 0.0
  %1900 = vmatpush.msra.mxu0 0.0
  %1901 = vmatpush.msra.mxu0 0.0
  %1902 = vmatpush.msra.mxu0 %v1481
  %1903 = vmatpush.msra.mxu0 %v1478
  %1904 = vmatpush.msra.mxu0 %v1475
  %1905 = vmatpush.msra.mxu0 %v1472
  %1906 = vmatpush.msra.mxu0 %v1469
  %1907 = vmatpush.msra.mxu0 %v1466
  %1908 = vmatpush.msra.mxu0 %v1463
  %1909 = vmatpush.msra.mxu0 %v1460
  %1910 = vmatmul.f32.gmra.mxu0 %v1871
  %v1911 = vpop.f32.mrf.mxu0
  %v1912 = vadd.f32 0.0, %v1911
  %1913 = vmatmul.f32.gmra.mxu0 %v1874
  %v1914 = vpop.f32.mrf.mxu0
  %v1915 = vadd.f32 0.0, %v1914
  %1916 = vmatmul.f32.gmra.mxu0 %v1877
  %v1917 = vpop.f32.mrf.mxu0
  %v1918 = vadd.f32 0.0, %v1917
  %1919 = vmatmul.f32.gmra.mxu0 %v1880
  %v1920 = vpop.f32.mrf.mxu0
  %v1921 = vadd.f32 0.0, %v1920
  %1922 = vmatmul.f32.gmra.mxu0 %v1883
  %v1923 = vpop.f32.mrf.mxu0
  %v1924 = vadd.f32 0.0, %v1923
  %1925 = vmatmul.f32.gmra.mxu0 %v1886
  %v1926 = vpop.f32.mrf.mxu0
  %v1927 = vadd.f32 0.0, %v1926
  %1928 = vmatmul.f32.gmra.mxu0 %v1889
  %v1929 = vpop.f32.mrf.mxu0
  %v1930 = vadd.f32 0.0, %v1929
  %1931 = vmatmul.f32.gmra.mxu0 %v1892
  %v1932 = vpop.f32.mrf.mxu0
  %v1933 = vadd.f32 0.0, %v1932
  %1934 = vdwg.mxu0
  %v1935 = vrcp.pop %v1759
  %v1936 = vrcp.pop %v1762
  %v1937 = vrcp.pop %v1765
  %v1938 = vrcp.pop %v1768
  %v1939 = vrcp.pop %v1771
  %v1940 = vrcp.pop %v1774
  %v1941 = vrcp.pop %v1777
  %v1942 = vrcp.pop %v1780
  %v1943 = vrcp.pop %v1783
  %v1944 = vrcp.pop %v1786
  %v1945 = vrcp.pop %v1789
  %v1946 = vrcp.pop %v1792
  %v1947 = vrcp.pop %v1795
  %v1948 = vrcp.pop %v1798
  %v1949 = vrcp.pop %v1801
  %v1950 = vrcp.pop %v1804
  %v1951 = vmul.f32 %v1847, %v1935
  %v1952 = vmul.f32 %v1850, %v1936
  %v1953 = vmul.f32 %v1853, %v1937
  %v1954 = vmul.f32 %v1856, %v1938
  %v1955 = vmul.f32 %v1859, %v1939
  %v1956 = vmul.f32 %v1862, %v1940
  %v1957 = vmul.f32 %v1865, %v1941
  %v1958 = vmul.f32 %v1868, %v1942
  %v1959 = vmul.f32 %v1912, %v1943
  %v1960 = vmul.f32 %v1915, %v1944
  %v1961 = vmul.f32 %v1918, %v1945
  %v1962 = vmul.f32 %v1921, %v1946
  %v1963 = vmul.f32 %v1924, %v1947
  %v1964 = vmul.f32 %v1927, %v1948
  %v1965 = vmul.f32 %v1930, %v1949
  %v1966 = vmul.f32 %v1933, %v1950
  %s1967 = scalar_lea.vmem %s9, 8
  %v1968 = vld [vmem:[%s1967] sm:$0xff]
  %v1970 = vsel %vm771, %v1951, 0
  %v1973 = vsel %vm771, %v1952, 0
  %v1976 = vsel %vm771, %v1953, 0
  %v1979 = vsel %vm771, %v1954, 0
  %v1982 = vsel %vm771, %v1955, 0
  %v1985 = vsel %vm771, %v1956, 0
  %v1988 = vsel %vm771, %v1957, 0
  %v1991 = vsel %vm771, %v1958, 0
  %v1994 = vsel %vm771, %v1959, 0
  %v1997 = vsel %vm771, %v1960, 0
  %v2000 = vsel %vm771, %v1961, 0
  %v2003 = vsel %vm771, %v1962, 0
  %v2006 = vsel %vm771, %v1963, 0
  %v2009 = vsel %vm771, %v1964, 0
  %v2012 = vsel %vm771, %v1965, 0
  %v2015 = vsel %vm771, %v1966, 0
  %2017 = vmatpush.msra.mxu0 0.0
  %2018 = vmatpush.msra.mxu0 0.0
  %2019 = vmatpush.msra.mxu0 0.0
  %2020 = vmatpush.msra.mxu0 0.0
  %2021 = vmatpush.msra.mxu0 0.0
  %2022 = vmatpush.msra.mxu0 0.0
  %2023 = vmatpush.msra.mxu0 0.0
  %2024 = vmatpush.msra.mxu0 0.0
  %2025 = vmatpush.msra.mxu0 0.0
  %2026 = vmatpush.msra.mxu0 0.0
  %2027 = vmatpush.msra.mxu0 0.0
  %2028 = vmatpush.msra.mxu0 0.0
  %2029 = vmatpush.msra.mxu0 0.0
  %2030 = vmatpush.msra.mxu0 0.0
  %2031 = vmatpush.msra.mxu0 0.0
  %2032 = vmatpush.msra.mxu0 %v1968
  %2033 = vmatmul.f32.gmra.mxu0 %v1970
  %v2034 = vpop.f32.mrf.mxu0
  %v2035 = vadd.f32 0.0, %v2034
  %2036 = vmatmul.f32.gmra.mxu0 %v1973
  %v2037 = vpop.f32.mrf.mxu0
  %v2038 = vadd.f32 0.0, %v2037
  %2039 = vmatmul.f32.gmra.mxu0 %v1976
  %v2040 = vpop.f32.mrf.mxu0
  %v2041 = vadd.f32 0.0, %v2040
  %2042 = vmatmul.f32.gmra.mxu0 %v1979
  %v2043 = vpop.f32.mrf.mxu0
  %v2044 = vadd.f32 0.0, %v2043
  %2045 = vmatmul.f32.gmra.mxu0 %v1982
  %v2046 = vpop.f32.mrf.mxu0
  %v2047 = vadd.f32 0.0, %v2046
  %2048 = vmatmul.f32.gmra.mxu0 %v1985
  %v2049 = vpop.f32.mrf.mxu0
  %v2050 = vadd.f32 0.0, %v2049
  %2051 = vmatmul.f32.gmra.mxu0 %v1988
  %v2052 = vpop.f32.mrf.mxu0
  %v2053 = vadd.f32 0.0, %v2052
  %2054 = vmatmul.f32.gmra.mxu0 %v1991
  %v2055 = vpop.f32.mrf.mxu0
  %v2056 = vadd.f32 0.0, %v2055
  %2057 = vmatmul.f32.gmra.mxu0 %v1994
  %v2058 = vpop.f32.mrf.mxu0
  %v2059 = vadd.f32 0.0, %v2058
  %2060 = vmatmul.f32.gmra.mxu0 %v1997
  %v2061 = vpop.f32.mrf.mxu0
  %v2062 = vadd.f32 0.0, %v2061
  %2063 = vmatmul.f32.gmra.mxu0 %v2000
  %v2064 = vpop.f32.mrf.mxu0
  %v2065 = vadd.f32 0.0, %v2064
  %2066 = vmatmul.f32.gmra.mxu0 %v2003
  %v2067 = vpop.f32.mrf.mxu0
  %v2068 = vadd.f32 0.0, %v2067
  %2069 = vmatmul.f32.gmra.mxu0 %v2006
  %v2070 = vpop.f32.mrf.mxu0
  %v2071 = vadd.f32 0.0, %v2070
  %2072 = vmatmul.f32.gmra.mxu0 %v2009
  %v2073 = vpop.f32.mrf.mxu0
  %v2074 = vadd.f32 0.0, %v2073
  %2075 = vmatmul.f32.gmra.mxu0 %v2012
  %v2076 = vpop.f32.mrf.mxu0
  %v2077 = vadd.f32 0.0, %v2076
  %2078 = vmatmul.f32.gmra.mxu0 %v2015
  %v2079 = vpop.f32.mrf.mxu0
  %v2080 = vadd.f32 0.0, %v2079
  %2081 = vdwg.mxu0
  %v2083 = vsel %vm771, %v1241, 0
  %v2086 = vsel %vm771, %v1242, 0
  %v2089 = vsel %vm771, %v1243, 0
  %v2092 = vsel %vm771, %v1244, 0
  %v2095 = vsel %vm771, %v1245, 0
  %v2098 = vsel %vm771, %v1246, 0
  %v2101 = vsel %vm771, %v1247, 0
  %v2104 = vsel %vm771, %v1248, 0
  %v2107 = vsel %vm771, %v1249, 0
  %v2110 = vsel %vm771, %v1250, 0
  %v2113 = vsel %vm771, %v1251, 0
  %v2116 = vsel %vm771, %v1252, 0
  %v2119 = vsel %vm771, %v1253, 0
  %v2122 = vsel %vm771, %v1254, 0
  %v2125 = vsel %vm771, %v1255, 0
  %v2128 = vsel %vm771, %v1256, 0
  %2130 = vmatpush.msra.mxu0 0.0
  %2131 = vmatpush.msra.mxu0 0.0
  %2132 = vmatpush.msra.mxu0 0.0
  %2133 = vmatpush.msra.mxu0 0.0
  %2134 = vmatpush.msra.mxu0 0.0
  %2135 = vmatpush.msra.mxu0 0.0
  %2136 = vmatpush.msra.mxu0 0.0
  %2137 = vmatpush.msra.mxu0 0.0
  %2138 = vmatpush.msra.mxu0 0.0
  %2139 = vmatpush.msra.mxu0 0.0
  %2140 = vmatpush.msra.mxu0 0.0
  %2141 = vmatpush.msra.mxu0 0.0
  %2142 = vmatpush.msra.mxu0 0.0
  %2143 = vmatpush.msra.mxu0 0.0
  %2144 = vmatpush.msra.mxu0 0.0
  %2145 = vmatpush.msra.mxu0 %v1257
  %2146 = vmatmul.f32.gmra.mxu0 %v2083
  %v2147 = vpop.f32.mrf.mxu0
  %v2148 = vadd.f32 %v2035, %v2147
  %2149 = vmatmul.f32.gmra.mxu0 %v2086
  %v2150 = vpop.f32.mrf.mxu0
  %v2151 = vadd.f32 %v2038, %v2150
  %2152 = vmatmul.f32.gmra.mxu0 %v2089
  %v2153 = vpop.f32.mrf.mxu0
  %v2154 = vadd.f32 %v2041, %v2153
  %2155 = vmatmul.f32.gmra.mxu0 %v2092
  %v2156 = vpop.f32.mrf.mxu0
  %v2157 = vadd.f32 %v2044, %v2156
  %2158 = vmatmul.f32.gmra.mxu0 %v2095
  %v2159 = vpop.f32.mrf.mxu0
  %v2160 = vadd.f32 %v2047, %v2159
  %2161 = vmatmul.f32.gmra.mxu0 %v2098
  %v2162 = vpop.f32.mrf.mxu0
  %v2163 = vadd.f32 %v2050, %v2162
  %2164 = vmatmul.f32.gmra.mxu0 %v2101
  %v2165 = vpop.f32.mrf.mxu0
  %v2166 = vadd.f32 %v2053, %v2165
  %2167 = vmatmul.f32.gmra.mxu0 %v2104
  %v2168 = vpop.f32.mrf.mxu0
  %v2169 = vadd.f32 %v2056, %v2168
  %2170 = vmatmul.f32.gmra.mxu0 %v2107
  %v2171 = vpop.f32.mrf.mxu0
  %v2172 = vadd.f32 %v2059, %v2171
  %2173 = vmatmul.f32.gmra.mxu0 %v2110
  %v2174 = vpop.f32.mrf.mxu0
  %v2175 = vadd.f32 %v2062, %v2174
  %2176 = vmatmul.f32.gmra.mxu0 %v2113
  %v2177 = vpop.f32.mrf.mxu0
  %v2178 = vadd.f32 %v2065, %v2177
  %2179 = vmatmul.f32.gmra.mxu0 %v2116
  %v2180 = vpop.f32.mrf.mxu0
  %v2181 = vadd.f32 %v2068, %v2180
  %2182 = vmatmul.f32.gmra.mxu0 %v2119
  %v2183 = vpop.f32.mrf.mxu0
  %v2184 = vadd.f32 %v2071, %v2183
  %2185 = vmatmul.f32.gmra.mxu0 %v2122
  %v2186 = vpop.f32.mrf.mxu0
  %v2187 = vadd.f32 %v2074, %v2186
  %2188 = vmatmul.f32.gmra.mxu0 %v2125
  %v2189 = vpop.f32.mrf.mxu0
  %v2190 = vadd.f32 %v2077, %v2189
  %2191 = vmatmul.f32.gmra.mxu0 %v2128
  %v2192 = vpop.f32.mrf.mxu0
  %v2193 = vadd.f32 %v2080, %v2192
  %2194 = vdwg.mxu0
  %s2195 = scalar_lea.vmem %s3, 64
  %v2196 = vld [vmem:[%s2195] sm:$0xff]
  %v2197 = vld [vmem:[%s2195 + $0x8] sm:$0xff]
  %v2198 = vld [vmem:[%s2195 + $0x10] sm:$0xff]
  %v2199 = vld [vmem:[%s2195 + $0x18] sm:$0xff]
  %s2200 = scalar_lea.vmem %s4, 2
  %v2201 = vld [vmem:[%s2200] sm:$0x1]
  %v2203 = vperm.slane %v2201, 0
  %2205 = vmatpush.msra.mxu0 0.0
  %2206 = vmatpush.msra.mxu0 0.0
  %2207 = vmatpush.msra.mxu0 0.0
  %2208 = vmatpush.msra.mxu0 0.0
  %2209 = vmatpush.msra.mxu0 0.0
  %2210 = vmatpush.msra.mxu0 0.0
  %2211 = vmatpush.msra.mxu0 0.0
  %2212 = vmatpush.msra.mxu0 0.0
  %2213 = vmatpush.msra.mxu0 0.0
  %2214 = vmatpush.msra.mxu0 0.0
  %2215 = vmatpush.msra.mxu0 0.0
  %2216 = vmatpush.msra.mxu0 0.0
  %2217 = vmatpush.msra.mxu0 %v2199
  %2218 = vmatpush.msra.mxu0 %v2198
  %2219 = vmatpush.msra.mxu0 %v2197
  %2220 = vmatpush.msra.mxu0 %v2196
  %2221 = vmatmul.f32.gmra.mxu0 %v513
  %v2222 = vpop.f32.mrf.mxu0
  %v2223 = vadd.f32 %v2203, %v2222
  %2224 = vmatmul.f32.gmra.mxu0 %v516
  %v2225 = vpop.f32.mrf.mxu0
  %v2226 = vadd.f32 %v2203, %v2225
  %2227 = vmatmul.f32.gmra.mxu0 %v519
  %v2228 = vpop.f32.mrf.mxu0
  %v2229 = vadd.f32 %v2203, %v2228
  %2230 = vmatmul.f32.gmra.mxu0 %v522
  %v2231 = vpop.f32.mrf.mxu0
  %v2232 = vadd.f32 %v2203, %v2231
  %2233 = vmatmul.f32.gmra.mxu0 %v525
  %v2234 = vpop.f32.mrf.mxu0
  %v2235 = vadd.f32 %v2203, %v2234
  %2236 = vmatmul.f32.gmra.mxu0 %v528
  %v2237 = vpop.f32.mrf.mxu0
  %v2238 = vadd.f32 %v2203, %v2237
  %2239 = vmatmul.f32.gmra.mxu0 %v531
  %v2240 = vpop.f32.mrf.mxu0
  %v2241 = vadd.f32 %v2203, %v2240
  %2242 = vmatmul.f32.gmra.mxu0 %v534
  %v2243 = vpop.f32.mrf.mxu0
  %v2244 = vadd.f32 %v2203, %v2243
  %2245 = vmatmul.f32.gmra.mxu0 %v537
  %v2246 = vpop.f32.mrf.mxu0
  %v2247 = vadd.f32 %v2203, %v2246
  %2248 = vmatmul.f32.gmra.mxu0 %v540
  %v2249 = vpop.f32.mrf.mxu0
  %v2250 = vadd.f32 %v2203, %v2249
  %2251 = vmatmul.f32.gmra.mxu0 %v543
  %v2252 = vpop.f32.mrf.mxu0
  %v2253 = vadd.f32 %v2203, %v2252
  %2254 = vmatmul.f32.gmra.mxu0 %v546
  %v2255 = vpop.f32.mrf.mxu0
  %v2256 = vadd.f32 %v2203, %v2255
  %2257 = vmatmul.f32.gmra.mxu0 %v549
  %v2258 = vpop.f32.mrf.mxu0
  %v2259 = vadd.f32 %v2203, %v2258
  %2260 = vmatmul.f32.gmra.mxu0 %v552
  %v2261 = vpop.f32.mrf.mxu0
  %v2262 = vadd.f32 %v2203, %v2261
  %2263 = vmatmul.f32.gmra.mxu0 %v555
  %v2264 = vpop.f32.mrf.mxu0
  %v2265 = vadd.f32 %v2203, %v2264
  %2266 = vmatmul.f32.gmra.mxu0 %v558
  %v2267 = vpop.f32.mrf.mxu0
  %v2268 = vadd.f32 %v2203, %v2267
  %2269 = vdwg.mxu0
  %s2270 = scalar_lea.vmem %s5, 64
  %v2271 = vld [vmem:[%s2270] sm:$0xff]
  %v2272 = vld [vmem:[%s2270 + $0x8] sm:$0xff]
  %v2273 = vld [vmem:[%s2270 + $0x10] sm:$0xff]
  %v2274 = vld [vmem:[%s2270 + $0x18] sm:$0xff]
  %s2275 = scalar_lea.vmem %s6, 2
  %v2276 = vld [vmem:[%s2275] sm:$0x1]
  %v2278 = vperm.slane %v2276, 0
  %2280 = vmatpush.msra.mxu0 0.0
  %2281 = vmatpush.msra.mxu0 0.0
  %2282 = vmatpush.msra.mxu0 0.0
  %2283 = vmatpush.msra.mxu0 0.0
  %2284 = vmatpush.msra.mxu0 0.0
  %2285 = vmatpush.msra.mxu0 0.0
  %2286 = vmatpush.msra.mxu0 0.0
  %2287 = vmatpush.msra.mxu0 0.0
  %2288 = vmatpush.msra.mxu0 0.0
  %2289 = vmatpush.msra.mxu0 0.0
  %2290 = vmatpush.msra.mxu0 0.0
  %2291 = vmatpush.msra.mxu0 0.0
  %2292 = vmatpush.msra.mxu0 %v2274
  %2293 = vmatpush.msra.mxu0 %v2273
  %2294 = vmatpush.msra.mxu0 %v2272
  %2295 = vmatpush.msra.mxu0 %v2271
  %2296 = vmatmul.f32.gmra.mxu0 %v513
  %v2297 = vpop.f32.mrf.mxu0
  %v2298 = vadd.f32 %v2278, %v2297
  %2299 = vmatmul.f32.gmra.mxu0 %v516
  %v2300 = vpop.f32.mrf.mxu0
  %v2301 = vadd.f32 %v2278, %v2300
  %2302 = vmatmul.f32.gmra.mxu0 %v519
  %v2303 = vpop.f32.mrf.mxu0
  %v2304 = vadd.f32 %v2278, %v2303
  %2305 = vmatmul.f32.gmra.mxu0 %v522
  %v2306 = vpop.f32.mrf.mxu0
  %v2307 = vadd.f32 %v2278, %v2306
  %2308 = vmatmul.f32.gmra.mxu0 %v525
  %v2309 = vpop.f32.mrf.mxu0
  %v2310 = vadd.f32 %v2278, %v2309
  %2311 = vmatmul.f32.gmra.mxu0 %v528
  %v2312 = vpop.f32.mrf.mxu0
  %v2313 = vadd.f32 %v2278, %v2312
  %2314 = vmatmul.f32.gmra.mxu0 %v531
  %v2315 = vpop.f32.mrf.mxu0
  %v2316 = vadd.f32 %v2278, %v2315
  %2317 = vmatmul.f32.gmra.mxu0 %v534
  %v2318 = vpop.f32.mrf.mxu0
  %v2319 = vadd.f32 %v2278, %v2318
  %2320 = vmatmul.f32.gmra.mxu0 %v537
  %v2321 = vpop.f32.mrf.mxu0
  %v2322 = vadd.f32 %v2278, %v2321
  %2323 = vmatmul.f32.gmra.mxu0 %v540
  %v2324 = vpop.f32.mrf.mxu0
  %v2325 = vadd.f32 %v2278, %v2324
  %2326 = vmatmul.f32.gmra.mxu0 %v543
  %v2327 = vpop.f32.mrf.mxu0
  %v2328 = vadd.f32 %v2278, %v2327
  %2329 = vmatmul.f32.gmra.mxu0 %v546
  %v2330 = vpop.f32.mrf.mxu0
  %v2331 = vadd.f32 %v2278, %v2330
  %2332 = vmatmul.f32.gmra.mxu0 %v549
  %v2333 = vpop.f32.mrf.mxu0
  %v2334 = vadd.f32 %v2278, %v2333
  %2335 = vmatmul.f32.gmra.mxu0 %v552
  %v2336 = vpop.f32.mrf.mxu0
  %v2337 = vadd.f32 %v2278, %v2336
  %2338 = vmatmul.f32.gmra.mxu0 %v555
  %v2339 = vpop.f32.mrf.mxu0
  %v2340 = vadd.f32 %v2278, %v2339
  %2341 = vmatmul.f32.gmra.mxu0 %v558
  %v2342 = vpop.f32.mrf.mxu0
  %v2343 = vadd.f32 %v2278, %v2342
  %2344 = vdwg.mxu0
  %s2345 = scalar_lea.vmem %s7, 64
  %v2346 = vld [vmem:[%s2345] sm:$0xff]
  %v2347 = vld [vmem:[%s2345 + $0x8] sm:$0xff]
  %v2348 = vld [vmem:[%s2345 + $0x10] sm:$0xff]
  %v2349 = vld [vmem:[%s2345 + $0x18] sm:$0xff]
  %s2350 = scalar_lea.vmem %s8, 2
  %v2351 = vld [vmem:[%s2350] sm:$0x1]
  %v2353 = vperm.slane %v2351, 0
  %2355 = vmatpush.msra.mxu0 0.0
  %2356 = vmatpush.msra.mxu0 0.0
  %2357 = vmatpush.msra.mxu0 0.0
  %2358 = vmatpush.msra.mxu0 0.0
  %2359 = vmatpush.msra.mxu0 0.0
  %2360 = vmatpush.msra.mxu0 0.0
  %2361 = vmatpush.msra.mxu0 0.0
  %2362 = vmatpush.msra.mxu0 0.0
  %2363 = vmatpush.msra.mxu0 0.0
  %2364 = vmatpush.msra.mxu0 0.0
  %2365 = vmatpush.msra.mxu0 0.0
  %2366 = vmatpush.msra.mxu0 0.0
  %2367 = vmatpush.msra.mxu0 %v2349
  %2368 = vmatpush.msra.mxu0 %v2348
  %2369 = vmatpush.msra.mxu0 %v2347
  %2370 = vmatpush.msra.mxu0 %v2346
  %2371 = vmatmul.f32.gmra.mxu0 %v513
  %v2372 = vpop.f32.mrf.mxu0
  %v2373 = vadd.f32 %v2353, %v2372
  %2374 = vmatmul.f32.gmra.mxu0 %v516
  %v2375 = vpop.f32.mrf.mxu0
  %v2376 = vadd.f32 %v2353, %v2375
  %2377 = vmatmul.f32.gmra.mxu0 %v519
  %v2378 = vpop.f32.mrf.mxu0
  %v2379 = vadd.f32 %v2353, %v2378
  %2380 = vmatmul.f32.gmra.mxu0 %v522
  %v2381 = vpop.f32.mrf.mxu0
  %v2382 = vadd.f32 %v2353, %v2381
  %2383 = vmatmul.f32.gmra.mxu0 %v525
  %v2384 = vpop.f32.mrf.mxu0
  %v2385 = vadd.f32 %v2353, %v2384
  %2386 = vmatmul.f32.gmra.mxu0 %v528
  %v2387 = vpop.f32.mrf.mxu0
  %v2388 = vadd.f32 %v2353, %v2387
  %2389 = vmatmul.f32.gmra.mxu0 %v531
  %v2390 = vpop.f32.mrf.mxu0
  %v2391 = vadd.f32 %v2353, %v2390
  %2392 = vmatmul.f32.gmra.mxu0 %v534
  %v2393 = vpop.f32.mrf.mxu0
  %v2394 = vadd.f32 %v2353, %v2393
  %2395 = vmatmul.f32.gmra.mxu0 %v537
  %v2396 = vpop.f32.mrf.mxu0
  %v2397 = vadd.f32 %v2353, %v2396
  %2398 = vmatmul.f32.gmra.mxu0 %v540
  %v2399 = vpop.f32.mrf.mxu0
  %v2400 = vadd.f32 %v2353, %v2399
  %2401 = vmatmul.f32.gmra.mxu0 %v543
  %v2402 = vpop.f32.mrf.mxu0
  %v2403 = vadd.f32 %v2353, %v2402
  %2404 = vmatmul.f32.gmra.mxu0 %v546
  %v2405 = vpop.f32.mrf.mxu0
  %v2406 = vadd.f32 %v2353, %v2405
  %2407 = vmatmul.f32.gmra.mxu0 %v549
  %v2408 = vpop.f32.mrf.mxu0
  %v2409 = vadd.f32 %v2353, %v2408
  %2410 = vmatmul.f32.gmra.mxu0 %v552
  %v2411 = vpop.f32.mrf.mxu0
  %v2412 = vadd.f32 %v2353, %v2411
  %2413 = vmatmul.f32.gmra.mxu0 %v555
  %v2414 = vpop.f32.mrf.mxu0
  %v2415 = vadd.f32 %v2353, %v2414
  %2416 = vmatmul.f32.gmra.mxu0 %v558
  %v2417 = vpop.f32.mrf.mxu0
  %v2418 = vadd.f32 %v2353, %v2417
  %2419 = vdwg.mxu0
  %v2421 = vsel %vm771, %v2223, 0
  %v2424 = vsel %vm771, %v2226, 0
  %v2427 = vsel %vm771, %v2229, 0
  %v2430 = vsel %vm771, %v2232, 0
  %v2433 = vsel %vm771, %v2235, 0
  %v2436 = vsel %vm771, %v2238, 0
  %v2439 = vsel %vm771, %v2241, 0
  %v2442 = vsel %vm771, %v2244, 0
  %v2445 = vsel %vm771, %v2298, 0
  %v2448 = vsel %vm771, %v2301, 0
  %v2451 = vsel %vm771, %v2304, 0
  %v2454 = vsel %vm771, %v2307, 0
  %v2457 = vsel %vm771, %v2310, 0
  %v2460 = vsel %vm771, %v2313, 0
  %v2463 = vsel %vm771, %v2316, 0
  %v2466 = vsel %vm771, %v2319, 0
  %2468 = vmatpush.xpose.msra.mxu0 0.0
  %2469 = vmatpush.xpose.msra.mxu0 0.0
  %2470 = vmatpush.xpose.msra.mxu0 0.0
  %2471 = vmatpush.xpose.msra.mxu0 0.0
  %2472 = vmatpush.xpose.msra.mxu0 0.0
  %2473 = vmatpush.xpose.msra.mxu0 0.0
  %2474 = vmatpush.xpose.msra.mxu0 0.0
  %2475 = vmatpush.xpose.msra.mxu0 0.0
  %2476 = vmatpush.xpose.msra.mxu0 %v2466
  %2477 = vmatpush.xpose.msra.mxu0 %v2463
  %2478 = vmatpush.xpose.msra.mxu0 %v2460
  %2479 = vmatpush.xpose.msra.mxu0 %v2457
  %2480 = vmatpush.xpose.msra.mxu0 %v2454
  %2481 = vmatpush.xpose.msra.mxu0 %v2451
  %2482 = vmatpush.xpose.msra.mxu0 %v2448
  %2483 = vmatpush.xpose.msra.mxu0 %v2445
  %2484 = vmatmul.f32.gmra.mxu0 %v2421
  %v2485 = vpop.f32.mrf.mxu0
  %v2486 = vadd.f32 0.0, %v2485
  %2487 = vmatmul.f32.gmra.mxu0 %v2424
  %v2488 = vpop.f32.mrf.mxu0
  %v2489 = vadd.f32 0.0, %v2488
  %2490 = vmatmul.f32.gmra.mxu0 %v2427
  %v2491 = vpop.f32.mrf.mxu0
  %v2492 = vadd.f32 0.0, %v2491
  %2493 = vmatmul.f32.gmra.mxu0 %v2430
  %v2494 = vpop.f32.mrf.mxu0
  %v2495 = vadd.f32 0.0, %v2494
  %2496 = vmatmul.f32.gmra.mxu0 %v2433
  %v2497 = vpop.f32.mrf.mxu0
  %v2498 = vadd.f32 0.0, %v2497
  %2499 = vmatmul.f32.gmra.mxu0 %v2436
  %v2500 = vpop.f32.mrf.mxu0
  %v2501 = vadd.f32 0.0, %v2500
  %2502 = vmatmul.f32.gmra.mxu0 %v2439
  %v2503 = vpop.f32.mrf.mxu0
  %v2504 = vadd.f32 0.0, %v2503
  %2505 = vmatmul.f32.gmra.mxu0 %v2442
  %v2506 = vpop.f32.mrf.mxu0
  %v2507 = vadd.f32 0.0, %v2506
  %2508 = vdwg.mxu0
  %v2510 = vsel %vm771, %v2247, 0
  %v2513 = vsel %vm771, %v2250, 0
  %v2516 = vsel %vm771, %v2253, 0
  %v2519 = vsel %vm771, %v2256, 0
  %v2522 = vsel %vm771, %v2259, 0
  %v2525 = vsel %vm771, %v2262, 0
  %v2528 = vsel %vm771, %v2265, 0
  %v2531 = vsel %vm771, %v2268, 0
  %v2534 = vsel %vm771, %v2322, 0
  %v2537 = vsel %vm771, %v2325, 0
  %v2540 = vsel %vm771, %v2328, 0
  %v2543 = vsel %vm771, %v2331, 0
  %v2546 = vsel %vm771, %v2334, 0
  %v2549 = vsel %vm771, %v2337, 0
  %v2552 = vsel %vm771, %v2340, 0
  %v2555 = vsel %vm771, %v2343, 0
  %2557 = vmatpush.xpose.msra.mxu0 0.0
  %2558 = vmatpush.xpose.msra.mxu0 0.0
  %2559 = vmatpush.xpose.msra.mxu0 0.0
  %2560 = vmatpush.xpose.msra.mxu0 0.0
  %2561 = vmatpush.xpose.msra.mxu0 0.0
  %2562 = vmatpush.xpose.msra.mxu0 0.0
  %2563 = vmatpush.xpose.msra.mxu0 0.0
  %2564 = vmatpush.xpose.msra.mxu0 0.0
  %2565 = vmatpush.xpose.msra.mxu0 %v2555
  %2566 = vmatpush.xpose.msra.mxu0 %v2552
  %2567 = vmatpush.xpose.msra.mxu0 %v2549
  %2568 = vmatpush.xpose.msra.mxu0 %v2546
  %2569 = vmatpush.xpose.msra.mxu0 %v2543
  %2570 = vmatpush.xpose.msra.mxu0 %v2540
  %2571 = vmatpush.xpose.msra.mxu0 %v2537
  %2572 = vmatpush.xpose.msra.mxu0 %v2534
  %2573 = vmatmul.f32.gmra.mxu0 %v2510
  %v2574 = vpop.f32.mrf.mxu0
  %v2575 = vadd.f32 0.0, %v2574
  %2576 = vmatmul.f32.gmra.mxu0 %v2513
  %v2577 = vpop.f32.mrf.mxu0
  %v2578 = vadd.f32 0.0, %v2577
  %2579 = vmatmul.f32.gmra.mxu0 %v2516
  %v2580 = vpop.f32.mrf.mxu0
  %v2581 = vadd.f32 0.0, %v2580
  %2582 = vmatmul.f32.gmra.mxu0 %v2519
  %v2583 = vpop.f32.mrf.mxu0
  %v2584 = vadd.f32 0.0, %v2583
  %2585 = vmatmul.f32.gmra.mxu0 %v2522
  %v2586 = vpop.f32.mrf.mxu0
  %v2587 = vadd.f32 0.0, %v2586
  %2588 = vmatmul.f32.gmra.mxu0 %v2525
  %v2589 = vpop.f32.mrf.mxu0
  %v2590 = vadd.f32 0.0, %v2589
  %2591 = vmatmul.f32.gmra.mxu0 %v2528
  %v2592 = vpop.f32.mrf.mxu0
  %v2593 = vadd.f32 0.0, %v2592
  %2594 = vmatmul.f32.gmra.mxu0 %v2531
  %v2595 = vpop.f32.mrf.mxu0
  %v2596 = vadd.f32 0.0, %v2595
  %2597 = vdwg.mxu0
  %v2598 = vsel %vm950, %v2486, -inf
  %2599 = vmax.xlane.f32.xlu0 %v2598
  %v2600 = vpop.xlane.xlu0 %2599
  %v2601 = vsel %vm950, %v2489, -inf
  %2602 = vmax.xlane.f32.xlu0 %v2601
  %v2603 = vpop.xlane.xlu0 %2602
  %v2604 = vsel %vm950, %v2492, -inf
  %2605 = vmax.xlane.f32.xlu0 %v2604
  %v2606 = vpop.xlane.xlu0 %2605
  %v2607 = vsel %vm950, %v2495, -inf
  %2608 = vmax.xlane.f32.xlu0 %v2607
  %v2609 = vpop.xlane.xlu0 %2608
  %v2610 = vsel %vm950, %v2498, -inf
  %2611 = vmax.xlane.f32.xlu0 %v2610
  %v2612 = vpop.xlane.xlu0 %2611
  %v2613 = vsel %vm950, %v2501, -inf
  %2614 = vmax.xlane.f32.xlu0 %v2613
  %v2615 = vpop.xlane.xlu0 %2614
  %v2616 = vsel %vm950, %v2504, -inf
  %2617 = vmax.xlane.f32.xlu0 %v2616
  %v2618 = vpop.xlane.xlu0 %2617
  %v2619 = vsel %vm950, %v2507, -inf
  %2620 = vmax.xlane.f32.xlu0 %v2619
  %v2621 = vpop.xlane.xlu0 %2620
  %v2622 = vsel %vm950, %v2575, -inf
  %2623 = vmax.xlane.f32.xlu0 %v2622
  %v2624 = vpop.xlane.xlu0 %2623
  %v2625 = vsel %vm950, %v2578, -inf
  %2626 = vmax.xlane.f32.xlu0 %v2625
  %v2627 = vpop.xlane.xlu0 %2626
  %v2628 = vsel %vm950, %v2581, -inf
  %2629 = vmax.xlane.f32.xlu0 %v2628
  %v2630 = vpop.xlane.xlu0 %2629
  %v2631 = vsel %vm950, %v2584, -inf
  %2632 = vmax.xlane.f32.xlu0 %v2631
  %v2633 = vpop.xlane.xlu0 %2632
  %v2634 = vsel %vm950, %v2587, -inf
  %2635 = vmax.xlane.f32.xlu0 %v2634
  %v2636 = vpop.xlane.xlu0 %2635
  %v2637 = vsel %vm950, %v2590, -inf
  %2638 = vmax.xlane.f32.xlu0 %v2637
  %v2639 = vpop.xlane.xlu0 %2638
  %v2640 = vsel %vm950, %v2593, -inf
  %2641 = vmax.xlane.f32.xlu0 %v2640
  %v2642 = vpop.xlane.xlu0 %2641
  %v2643 = vsel %vm950, %v2596, -inf
  %2644 = vmax.xlane.f32.xlu0 %v2643
  %v2645 = vpop.xlane.xlu0 %2644
  %v2646 = vsub.f32 %v2486, %v2600
  %v2647 = vsub.f32 %v2489, %v2603
  %v2648 = vsub.f32 %v2492, %v2606
  %v2649 = vsub.f32 %v2495, %v2609
  %v2650 = vsub.f32 %v2498, %v2612
  %v2651 = vsub.f32 %v2501, %v2615
  %v2652 = vsub.f32 %v2504, %v2618
  %v2653 = vsub.f32 %v2507, %v2621
  %v2654 = vsub.f32 %v2575, %v2624
  %v2655 = vsub.f32 %v2578, %v2627
  %v2656 = vsub.f32 %v2581, %v2630
  %v2657 = vsub.f32 %v2584, %v2633
  %v2658 = vsub.f32 %v2587, %v2636
  %v2659 = vsub.f32 %v2590, %v2639
  %v2660 = vsub.f32 %v2593, %v2642
  %v2661 = vsub.f32 %v2596, %v2645
  %v2662 = vmul.f32 %v2646, 1.442695
  %v2663 = vpow.pop %v2662
  %v2664 = vmul.f32 %v2647, 1.442695
  %v2665 = vpow.pop %v2664
  %v2666 = vmul.f32 %v2648, 1.442695
  %v2667 = vpow.pop %v2666
  %v2668 = vmul.f32 %v2649, 1.442695
  %v2669 = vpow.pop %v2668
  %v2670 = vmul.f32 %v2650, 1.442695
  %v2671 = vpow.pop %v2670
  %v2672 = vmul.f32 %v2651, 1.442695
  %v2673 = vpow.pop %v2672
  %v2674 = vmul.f32 %v2652, 1.442695
  %v2675 = vpow.pop %v2674
  %v2676 = vmul.f32 %v2653, 1.442695
  %v2677 = vpow.pop %v2676
  %v2678 = vmul.f32 %v2654, 1.442695
  %v2679 = vpow.pop %v2678
  %v2680 = vmul.f32 %v2655, 1.442695
  %v2681 = vpow.pop %v2680
  %v2682 = vmul.f32 %v2656, 1.442695
  %v2683 = vpow.pop %v2682
  %v2684 = vmul.f32 %v2657, 1.442695
  %v2685 = vpow.pop %v2684
  %v2686 = vmul.f32 %v2658, 1.442695
  %v2687 = vpow.pop %v2686
  %v2688 = vmul.f32 %v2659, 1.442695
  %v2689 = vpow.pop %v2688
  %v2690 = vmul.f32 %v2660, 1.442695
  %v2691 = vpow.pop %v2690
  %v2692 = vmul.f32 %v2661, 1.442695
  %v2693 = vpow.pop %v2692
  %v2694 = vsel %vm950, %v2663, 0.0
  %2695 = vadd.xlane.f32.xlu0 %v2694
  %v2696 = vpop.xlane.xlu0 %2695
  %v2697 = vsel %vm950, %v2665, 0.0
  %2698 = vadd.xlane.f32.xlu0 %v2697
  %v2699 = vpop.xlane.xlu0 %2698
  %v2700 = vsel %vm950, %v2667, 0.0
  %2701 = vadd.xlane.f32.xlu0 %v2700
  %v2702 = vpop.xlane.xlu0 %2701
  %v2703 = vsel %vm950, %v2669, 0.0
  %2704 = vadd.xlane.f32.xlu0 %v2703
  %v2705 = vpop.xlane.xlu0 %2704
  %v2706 = vsel %vm950, %v2671, 0.0
  %2707 = vadd.xlane.f32.xlu0 %v2706
  %v2708 = vpop.xlane.xlu0 %2707
  %v2709 = vsel %vm950, %v2673, 0.0
  %2710 = vadd.xlane.f32.xlu0 %v2709
  %v2711 = vpop.xlane.xlu0 %2710
  %v2712 = vsel %vm950, %v2675, 0.0
  %2713 = vadd.xlane.f32.xlu0 %v2712
  %v2714 = vpop.xlane.xlu0 %2713
  %v2715 = vsel %vm950, %v2677, 0.0
  %2716 = vadd.xlane.f32.xlu0 %v2715
  %v2717 = vpop.xlane.xlu0 %2716
  %v2718 = vsel %vm950, %v2679, 0.0
  %2719 = vadd.xlane.f32.xlu0 %v2718
  %v2720 = vpop.xlane.xlu0 %2719
  %v2721 = vsel %vm950, %v2681, 0.0
  %2722 = vadd.xlane.f32.xlu0 %v2721
  %v2723 = vpop.xlane.xlu0 %2722
  %v2724 = vsel %vm950, %v2683, 0.0
  %2725 = vadd.xlane.f32.xlu0 %v2724
  %v2726 = vpop.xlane.xlu0 %2725
  %v2727 = vsel %vm950, %v2685, 0.0
  %2728 = vadd.xlane.f32.xlu0 %v2727
  %v2729 = vpop.xlane.xlu0 %2728
  %v2730 = vsel %vm950, %v2687, 0.0
  %2731 = vadd.xlane.f32.xlu0 %v2730
  %v2732 = vpop.xlane.xlu0 %2731
  %v2733 = vsel %vm950, %v2689, 0.0
  %2734 = vadd.xlane.f32.xlu0 %v2733
  %v2735 = vpop.xlane.xlu0 %2734
  %v2736 = vsel %vm950, %v2691, 0.0
  %2737 = vadd.xlane.f32.xlu0 %v2736
  %v2738 = vpop.xlane.xlu0 %2737
  %v2739 = vsel %vm950, %v2693, 0.0
  %2740 = vadd.xlane.f32.xlu0 %v2739
  %v2741 = vpop.xlane.xlu0 %2740
  %v2743 = vsel %vm950, %v2663, 0
  %v2746 = vsel %vm950, %v2665, 0
  %v2749 = vsel %vm950, %v2667, 0
  %v2752 = vsel %vm950, %v2669, 0
  %v2755 = vsel %vm950, %v2671, 0
  %v2758 = vsel %vm950, %v2673, 0
  %v2761 = vsel %vm950, %v2675, 0
  %v2764 = vsel %vm950, %v2677, 0
  %2766 = vmatpush.msra.mxu0 0.0
  %2767 = vmatpush.msra.mxu0 0.0
  %2768 = vmatpush.msra.mxu0 0.0
  %2769 = vmatpush.msra.mxu0 0.0
  %2770 = vmatpush.msra.mxu0 0.0
  %2771 = vmatpush.msra.mxu0 0.0
  %2772 = vmatpush.msra.mxu0 0.0
  %2773 = vmatpush.msra.mxu0 0.0
  %2774 = vmatpush.msra.mxu0 %v2394
  %2775 = vmatpush.msra.mxu0 %v2391
  %2776 = vmatpush.msra.mxu0 %v2388
  %2777 = vmatpush.msra.mxu0 %v2385
  %2778 = vmatpush.msra.mxu0 %v2382
  %2779 = vmatpush.msra.mxu0 %v2379
  %2780 = vmatpush.msra.mxu0 %v2376
  %2781 = vmatpush.msra.mxu0 %v2373
  %2782 = vmatmul.f32.gmra.mxu0 %v2743
  %v2783 = vpop.f32.mrf.mxu0
  %v2784 = vadd.f32 0.0, %v2783
  %2785 = vmatmul.f32.gmra.mxu0 %v2746
  %v2786 = vpop.f32.mrf.mxu0
  %v2787 = vadd.f32 0.0, %v2786
  %2788 = vmatmul.f32.gmra.mxu0 %v2749
  %v2789 = vpop.f32.mrf.mxu0
  %v2790 = vadd.f32 0.0, %v2789
  %2791 = vmatmul.f32.gmra.mxu0 %v2752
  %v2792 = vpop.f32.mrf.mxu0
  %v2793 = vadd.f32 0.0, %v2792
  %2794 = vmatmul.f32.gmra.mxu0 %v2755
  %v2795 = vpop.f32.mrf.mxu0
  %v2796 = vadd.f32 0.0, %v2795
  %2797 = vmatmul.f32.gmra.mxu0 %v2758
  %v2798 = vpop.f32.mrf.mxu0
  %v2799 = vadd.f32 0.0, %v2798
  %2800 = vmatmul.f32.gmra.mxu0 %v2761
  %v2801 = vpop.f32.mrf.mxu0
  %v2802 = vadd.f32 0.0, %v2801
  %2803 = vmatmul.f32.gmra.mxu0 %v2764
  %v2804 = vpop.f32.mrf.mxu0
  %v2805 = vadd.f32 0.0, %v2804
  %2806 = vdwg.mxu0
  %v2808 = vsel %vm950, %v2679, 0
  %v2811 = vsel %vm950, %v2681, 0
  %v2814 = vsel %vm950, %v2683, 0
  %v2817 = vsel %vm950, %v2685, 0
  %v2820 = vsel %vm950, %v2687, 0
  %v2823 = vsel %vm950, %v2689, 0
  %v2826 = vsel %vm950, %v2691, 0
  %v2829 = vsel %vm950, %v2693, 0
  %2831 = vmatpush.msra.mxu0 0.0
  %2832 = vmatpush.msra.mxu0 0.0
  %2833 = vmatpush.msra.mxu0 0.0
  %2834 = vmatpush.msra.mxu0 0.0
  %2835 = vmatpush.msra.mxu0 0.0
  %2836 = vmatpush.msra.mxu0 0.0
  %2837 = vmatpush.msra.mxu0 0.0
  %2838 = vmatpush.msra.mxu0 0.0
  %2839 = vmatpush.msra.mxu0 %v2418
  %2840 = vmatpush.msra.mxu0 %v2415
  %2841 = vmatpush.msra.mxu0 %v2412
  %2842 = vmatpush.msra.mxu0 %v2409
  %2843 = vmatpush.msra.mxu0 %v2406
  %2844 = vmatpush.msra.mxu0 %v2403
  %2845 = vmatpush.msra.mxu0 %v2400
  %2846 = vmatpush.msra.mxu0 %v2397
  %2847 = vmatmul.f32.gmra.mxu0 %v2808
  %v2848 = vpop.f32.mrf.mxu0
  %v2849 = vadd.f32 0.0, %v2848
  %2850 = vmatmul.f32.gmra.mxu0 %v2811
  %v2851 = vpop.f32.mrf.mxu0
  %v2852 = vadd.f32 0.0, %v2851
  %2853 = vmatmul.f32.gmra.mxu0 %v2814
  %v2854 = vpop.f32.mrf.mxu0
  %v2855 = vadd.f32 0.0, %v2854
  %2856 = vmatmul.f32.gmra.mxu0 %v2817
  %v2857 = vpop.f32.mrf.mxu0
  %v2858 = vadd.f32 0.0, %v2857
  %2859 = vmatmul.f32.gmra.mxu0 %v2820
  %v2860 = vpop.f32.mrf.mxu0
  %v2861 = vadd.f32 0.0, %v2860
  %2862 = vmatmul.f32.gmra.mxu0 %v2823
  %v2863 = vpop.f32.mrf.mxu0
  %v2864 = vadd.f32 0.0, %v2863
  %2865 = vmatmul.f32.gmra.mxu0 %v2826
  %v2866 = vpop.f32.mrf.mxu0
  %v2867 = vadd.f32 0.0, %v2866
  %2868 = vmatmul.f32.gmra.mxu0 %v2829
  %v2869 = vpop.f32.mrf.mxu0
  %v2870 = vadd.f32 0.0, %v2869
  %2871 = vdwg.mxu0
  %v2872 = vrcp.pop %v2696
  %v2873 = vrcp.pop %v2699
  %v2874 = vrcp.pop %v2702
  %v2875 = vrcp.pop %v2705
  %v2876 = vrcp.pop %v2708
  %v2877 = vrcp.pop %v2711
  %v2878 = vrcp.pop %v2714
  %v2879 = vrcp.pop %v2717
  %v2880 = vrcp.pop %v2720
  %v2881 = vrcp.pop %v2723
  %v2882 = vrcp.pop %v2726
  %v2883 = vrcp.pop %v2729
  %v2884 = vrcp.pop %v2732
  %v2885 = vrcp.pop %v2735
  %v2886 = vrcp.pop %v2738
  %v2887 = vrcp.pop %v2741
  %v2888 = vmul.f32 %v2784, %v2872
  %v2889 = vmul.f32 %v2787, %v2873
  %v2890 = vmul.f32 %v2790, %v2874
  %v2891 = vmul.f32 %v2793, %v2875
  %v2892 = vmul.f32 %v2796, %v2876
  %v2893 = vmul.f32 %v2799, %v2877
  %v2894 = vmul.f32 %v2802, %v2878
  %v2895 = vmul.f32 %v2805, %v2879
  %v2896 = vmul.f32 %v2849, %v2880
  %v2897 = vmul.f32 %v2852, %v2881
  %v2898 = vmul.f32 %v2855, %v2882
  %v2899 = vmul.f32 %v2858, %v2883
  %v2900 = vmul.f32 %v2861, %v2884
  %v2901 = vmul.f32 %v2864, %v2885
  %v2902 = vmul.f32 %v2867, %v2886
  %v2903 = vmul.f32 %v2870, %v2887
  %s2904 = scalar_lea.vmem %s9, 16
  %v2905 = vld [vmem:[%s2904] sm:$0xff]
  %v2907 = vsel %vm771, %v2888, 0
  %v2910 = vsel %vm771, %v2889, 0
  %v2913 = vsel %vm771, %v2890, 0
  %v2916 = vsel %vm771, %v2891, 0
  %v2919 = vsel %vm771, %v2892, 0
  %v2922 = vsel %vm771, %v2893, 0
  %v2925 = vsel %vm771, %v2894, 0
  %v2928 = vsel %vm771, %v2895, 0
  %v2931 = vsel %vm771, %v2896, 0
  %v2934 = vsel %vm771, %v2897, 0
  %v2937 = vsel %vm771, %v2898, 0
  %v2940 = vsel %vm771, %v2899, 0
  %v2943 = vsel %vm771, %v2900, 0
  %v2946 = vsel %vm771, %v2901, 0
  %v2949 = vsel %vm771, %v2902, 0
  %v2952 = vsel %vm771, %v2903, 0
  %2954 = vmatpush.msra.mxu0 0.0
  %2955 = vmatpush.msra.mxu0 0.0
  %2956 = vmatpush.msra.mxu0 0.0
  %2957 = vmatpush.msra.mxu0 0.0
  %2958 = vmatpush.msra.mxu0 0.0
  %2959 = vmatpush.msra.mxu0 0.0
  %2960 = vmatpush.msra.mxu0 0.0
  %2961 = vmatpush.msra.mxu0 0.0
  %2962 = vmatpush.msra.mxu0 0.0
  %2963 = vmatpush.msra.mxu0 0.0
  %2964 = vmatpush.msra.mxu0 0.0
  %2965 = vmatpush.msra.mxu0 0.0
  %2966 = vmatpush.msra.mxu0 0.0
  %2967 = vmatpush.msra.mxu0 0.0
  %2968 = vmatpush.msra.mxu0 0.0
  %2969 = vmatpush.msra.mxu0 %v2905
  %2970 = vmatmul.f32.gmra.mxu0 %v2907
  %v2971 = vpop.f32.mrf.mxu0
  %v2972 = vadd.f32 0.0, %v2971
  %2973 = vmatmul.f32.gmra.mxu0 %v2910
  %v2974 = vpop.f32.mrf.mxu0
  %v2975 = vadd.f32 0.0, %v2974
  %2976 = vmatmul.f32.gmra.mxu0 %v2913
  %v2977 = vpop.f32.mrf.mxu0
  %v2978 = vadd.f32 0.0, %v2977
  %2979 = vmatmul.f32.gmra.mxu0 %v2916
  %v2980 = vpop.f32.mrf.mxu0
  %v2981 = vadd.f32 0.0, %v2980
  %2982 = vmatmul.f32.gmra.mxu0 %v2919
  %v2983 = vpop.f32.mrf.mxu0
  %v2984 = vadd.f32 0.0, %v2983
  %2985 = vmatmul.f32.gmra.mxu0 %v2922
  %v2986 = vpop.f32.mrf.mxu0
  %v2987 = vadd.f32 0.0, %v2986
  %2988 = vmatmul.f32.gmra.mxu0 %v2925
  %v2989 = vpop.f32.mrf.mxu0
  %v2990 = vadd.f32 0.0, %v2989
  %2991 = vmatmul.f32.gmra.mxu0 %v2928
  %v2992 = vpop.f32.mrf.mxu0
  %v2993 = vadd.f32 0.0, %v2992
  %2994 = vmatmul.f32.gmra.mxu0 %v2931
  %v2995 = vpop.f32.mrf.mxu0
  %v2996 = vadd.f32 0.0, %v2995
  %2997 = vmatmul.f32.gmra.mxu0 %v2934
  %v2998 = vpop.f32.mrf.mxu0
  %v2999 = vadd.f32 0.0, %v2998
  %3000 = vmatmul.f32.gmra.mxu0 %v2937
  %v3001 = vpop.f32.mrf.mxu0
  %v3002 = vadd.f32 0.0, %v3001
  %3003 = vmatmul.f32.gmra.mxu0 %v2940
  %v3004 = vpop.f32.mrf.mxu0
  %v3005 = vadd.f32 0.0, %v3004
  %3006 = vmatmul.f32.gmra.mxu0 %v2943
  %v3007 = vpop.f32.mrf.mxu0
  %v3008 = vadd.f32 0.0, %v3007
  %3009 = vmatmul.f32.gmra.mxu0 %v2946
  %v3010 = vpop.f32.mrf.mxu0
  %v3011 = vadd.f32 0.0, %v3010
  %3012 = vmatmul.f32.gmra.mxu0 %v2949
  %v3013 = vpop.f32.mrf.mxu0
  %v3014 = vadd.f32 0.0, %v3013
  %3015 = vmatmul.f32.gmra.mxu0 %v2952
  %v3016 = vpop.f32.mrf.mxu0
  %v3017 = vadd.f32 0.0, %v3016
  %3018 = vdwg.mxu0
  %v3019 = vadd.f32 %v2148, %v2972
  %v3020 = vadd.f32 %v2151, %v2975
  %v3021 = vadd.f32 %v2154, %v2978
  %v3022 = vadd.f32 %v2157, %v2981
  %v3023 = vadd.f32 %v2160, %v2984
  %v3024 = vadd.f32 %v2163, %v2987
  %v3025 = vadd.f32 %v2166, %v2990
  %v3026 = vadd.f32 %v2169, %v2993
  %v3027 = vadd.f32 %v2172, %v2996
  %v3028 = vadd.f32 %v2175, %v2999
  %v3029 = vadd.f32 %v2178, %v3002
  %v3030 = vadd.f32 %v2181, %v3005
  %v3031 = vadd.f32 %v2184, %v3008
  %v3032 = vadd.f32 %v2187, %v3011
  %v3033 = vadd.f32 %v2190, %v3014
  %v3034 = vadd.f32 %v2193, %v3017
  %s3035 = scalar_lea.vmem %s3, 96
  %v3036 = vld [vmem:[%s3035] sm:$0xff]
  %v3037 = vld [vmem:[%s3035 + $0x8] sm:$0xff]
  %v3038 = vld [vmem:[%s3035 + $0x10] sm:$0xff]
  %v3039 = vld [vmem:[%s3035 + $0x18] sm:$0xff]
  %s3040 = scalar_lea.vmem %s4, 3
  %v3041 = vld [vmem:[%s3040] sm:$0x1]
  %v3043 = vperm.slane %v3041, 0
  %3045 = vmatpush.msra.mxu0 0.0
  %3046 = vmatpush.msra.mxu0 0.0
  %3047 = vmatpush.msra.mxu0 0.0
  %3048 = vmatpush.msra.mxu0 0.0
  %3049 = vmatpush.msra.mxu0 0.0
  %3050 = vmatpush.msra.mxu0 0.0
  %3051 = vmatpush.msra.mxu0 0.0
  %3052 = vmatpush.msra.mxu0 0.0
  %3053 = vmatpush.msra.mxu0 0.0
  %3054 = vmatpush.msra.mxu0 0.0
  %3055 = vmatpush.msra.mxu0 0.0
  %3056 = vmatpush.msra.mxu0 0.0
  %3057 = vmatpush.msra.mxu0 %v3039
  %3058 = vmatpush.msra.mxu0 %v3038
  %3059 = vmatpush.msra.mxu0 %v3037
  %3060 = vmatpush.msra.mxu0 %v3036
  %3061 = vmatmul.f32.gmra.mxu0 %v513
  %v3062 = vpop.f32.mrf.mxu0
  %v3063 = vadd.f32 %v3043, %v3062
  %3064 = vmatmul.f32.gmra.mxu0 %v516
  %v3065 = vpop.f32.mrf.mxu0
  %v3066 = vadd.f32 %v3043, %v3065
  %3067 = vmatmul.f32.gmra.mxu0 %v519
  %v3068 = vpop.f32.mrf.mxu0
  %v3069 = vadd.f32 %v3043, %v3068
  %3070 = vmatmul.f32.gmra.mxu0 %v522
  %v3071 = vpop.f32.mrf.mxu0
  %v3072 = vadd.f32 %v3043, %v3071
  %3073 = vmatmul.f32.gmra.mxu0 %v525
  %v3074 = vpop.f32.mrf.mxu0
  %v3075 = vadd.f32 %v3043, %v3074
  %3076 = vmatmul.f32.gmra.mxu0 %v528
  %v3077 = vpop.f32.mrf.mxu0
  %v3078 = vadd.f32 %v3043, %v3077
  %3079 = vmatmul.f32.gmra.mxu0 %v531
  %v3080 = vpop.f32.mrf.mxu0
  %v3081 = vadd.f32 %v3043, %v3080
  %3082 = vmatmul.f32.gmra.mxu0 %v534
  %v3083 = vpop.f32.mrf.mxu0
  %v3084 = vadd.f32 %v3043, %v3083
  %3085 = vmatmul.f32.gmra.mxu0 %v537
  %v3086 = vpop.f32.mrf.mxu0
  %v3087 = vadd.f32 %v3043, %v3086
  %3088 = vmatmul.f32.gmra.mxu0 %v540
  %v3089 = vpop.f32.mrf.mxu0
  %v3090 = vadd.f32 %v3043, %v3089
  %3091 = vmatmul.f32.gmra.mxu0 %v543
  %v3092 = vpop.f32.mrf.mxu0
  %v3093 = vadd.f32 %v3043, %v3092
  %3094 = vmatmul.f32.gmra.mxu0 %v546
  %v3095 = vpop.f32.mrf.mxu0
  %v3096 = vadd.f32 %v3043, %v3095
  %3097 = vmatmul.f32.gmra.mxu0 %v549
  %v3098 = vpop.f32.mrf.mxu0
  %v3099 = vadd.f32 %v3043, %v3098
  %3100 = vmatmul.f32.gmra.mxu0 %v552
  %v3101 = vpop.f32.mrf.mxu0
  %v3102 = vadd.f32 %v3043, %v3101
  %3103 = vmatmul.f32.gmra.mxu0 %v555
  %v3104 = vpop.f32.mrf.mxu0
  %v3105 = vadd.f32 %v3043, %v3104
  %3106 = vmatmul.f32.gmra.mxu0 %v558
  %v3107 = vpop.f32.mrf.mxu0
  %v3108 = vadd.f32 %v3043, %v3107
  %3109 = vdwg.mxu0
  %s3110 = scalar_lea.vmem %s5, 96
  %v3111 = vld [vmem:[%s3110] sm:$0xff]
  %v3112 = vld [vmem:[%s3110 + $0x8] sm:$0xff]
  %v3113 = vld [vmem:[%s3110 + $0x10] sm:$0xff]
  %v3114 = vld [vmem:[%s3110 + $0x18] sm:$0xff]
  %s3115 = scalar_lea.vmem %s6, 3
  %v3116 = vld [vmem:[%s3115] sm:$0x1]
  %v3118 = vperm.slane %v3116, 0
  %3120 = vmatpush.msra.mxu0 0.0
  %3121 = vmatpush.msra.mxu0 0.0
  %3122 = vmatpush.msra.mxu0 0.0
  %3123 = vmatpush.msra.mxu0 0.0
  %3124 = vmatpush.msra.mxu0 0.0
  %3125 = vmatpush.msra.mxu0 0.0
  %3126 = vmatpush.msra.mxu0 0.0
  %3127 = vmatpush.msra.mxu0 0.0
  %3128 = vmatpush.msra.mxu0 0.0
  %3129 = vmatpush.msra.mxu0 0.0
  %3130 = vmatpush.msra.mxu0 0.0
  %3131 = vmatpush.msra.mxu0 0.0
  %3132 = vmatpush.msra.mxu0 %v3114
  %3133 = vmatpush.msra.mxu0 %v3113
  %3134 = vmatpush.msra.mxu0 %v3112
  %3135 = vmatpush.msra.mxu0 %v3111
  %3136 = vmatmul.f32.gmra.mxu0 %v513
  %v3137 = vpop.f32.mrf.mxu0
  %v3138 = vadd.f32 %v3118, %v3137
  %3139 = vmatmul.f32.gmra.mxu0 %v516
  %v3140 = vpop.f32.mrf.mxu0
  %v3141 = vadd.f32 %v3118, %v3140
  %3142 = vmatmul.f32.gmra.mxu0 %v519
  %v3143 = vpop.f32.mrf.mxu0
  %v3144 = vadd.f32 %v3118, %v3143
  %3145 = vmatmul.f32.gmra.mxu0 %v522
  %v3146 = vpop.f32.mrf.mxu0
  %v3147 = vadd.f32 %v3118, %v3146
  %3148 = vmatmul.f32.gmra.mxu0 %v525
  %v3149 = vpop.f32.mrf.mxu0
  %v3150 = vadd.f32 %v3118, %v3149
  %3151 = vmatmul.f32.gmra.mxu0 %v528
  %v3152 = vpop.f32.mrf.mxu0
  %v3153 = vadd.f32 %v3118, %v3152
  %3154 = vmatmul.f32.gmra.mxu0 %v531
  %v3155 = vpop.f32.mrf.mxu0
  %v3156 = vadd.f32 %v3118, %v3155
  %3157 = vmatmul.f32.gmra.mxu0 %v534
  %v3158 = vpop.f32.mrf.mxu0
  %v3159 = vadd.f32 %v3118, %v3158
  %3160 = vmatmul.f32.gmra.mxu0 %v537
  %v3161 = vpop.f32.mrf.mxu0
  %v3162 = vadd.f32 %v3118, %v3161
  %3163 = vmatmul.f32.gmra.mxu0 %v540
  %v3164 = vpop.f32.mrf.mxu0
  %v3165 = vadd.f32 %v3118, %v3164
  %3166 = vmatmul.f32.gmra.mxu0 %v543
  %v3167 = vpop.f32.mrf.mxu0
  %v3168 = vadd.f32 %v3118, %v3167
  %3169 = vmatmul.f32.gmra.mxu0 %v546
  %v3170 = vpop.f32.mrf.mxu0
  %v3171 = vadd.f32 %v3118, %v3170
  %3172 = vmatmul.f32.gmra.mxu0 %v549
  %v3173 = vpop.f32.mrf.mxu0
  %v3174 = vadd.f32 %v3118, %v3173
  %3175 = vmatmul.f32.gmra.mxu0 %v552
  %v3176 = vpop.f32.mrf.mxu0
  %v3177 = vadd.f32 %v3118, %v3176
  %3178 = vmatmul.f32.gmra.mxu0 %v555
  %v3179 = vpop.f32.mrf.mxu0
  %v3180 = vadd.f32 %v3118, %v3179
  %3181 = vmatmul.f32.gmra.mxu0 %v558
  %v3182 = vpop.f32.mrf.mxu0
  %v3183 = vadd.f32 %v3118, %v3182
  %3184 = vdwg.mxu0
  %s3185 = scalar_lea.vmem %s7, 96
  %v3186 = vld [vmem:[%s3185] sm:$0xff]
  %v3187 = vld [vmem:[%s3185 + $0x8] sm:$0xff]
  %v3188 = vld [vmem:[%s3185 + $0x10] sm:$0xff]
  %v3189 = vld [vmem:[%s3185 + $0x18] sm:$0xff]
  %s3190 = scalar_lea.vmem %s8, 3
  %v3191 = vld [vmem:[%s3190] sm:$0x1]
  %v3193 = vperm.slane %v3191, 0
  %3195 = vmatpush.msra.mxu0 0.0
  %3196 = vmatpush.msra.mxu0 0.0
  %3197 = vmatpush.msra.mxu0 0.0
  %3198 = vmatpush.msra.mxu0 0.0
  %3199 = vmatpush.msra.mxu0 0.0
  %3200 = vmatpush.msra.mxu0 0.0
  %3201 = vmatpush.msra.mxu0 0.0
  %3202 = vmatpush.msra.mxu0 0.0
  %3203 = vmatpush.msra.mxu0 0.0
  %3204 = vmatpush.msra.mxu0 0.0
  %3205 = vmatpush.msra.mxu0 0.0
  %3206 = vmatpush.msra.mxu0 0.0
  %3207 = vmatpush.msra.mxu0 %v3189
  %3208 = vmatpush.msra.mxu0 %v3188
  %3209 = vmatpush.msra.mxu0 %v3187
  %3210 = vmatpush.msra.mxu0 %v3186
  %3211 = vmatmul.f32.gmra.mxu0 %v513
  %v3212 = vpop.f32.mrf.mxu0
  %v3213 = vadd.f32 %v3193, %v3212
  %3214 = vmatmul.f32.gmra.mxu0 %v516
  %v3215 = vpop.f32.mrf.mxu0
  %v3216 = vadd.f32 %v3193, %v3215
  %3217 = vmatmul.f32.gmra.mxu0 %v519
  %v3218 = vpop.f32.mrf.mxu0
  %v3219 = vadd.f32 %v3193, %v3218
  %3220 = vmatmul.f32.gmra.mxu0 %v522
  %v3221 = vpop.f32.mrf.mxu0
  %v3222 = vadd.f32 %v3193, %v3221
  %3223 = vmatmul.f32.gmra.mxu0 %v525
  %v3224 = vpop.f32.mrf.mxu0
  %v3225 = vadd.f32 %v3193, %v3224
  %3226 = vmatmul.f32.gmra.mxu0 %v528
  %v3227 = vpop.f32.mrf.mxu0
  %v3228 = vadd.f32 %v3193, %v3227
  %3229 = vmatmul.f32.gmra.mxu0 %v531
  %v3230 = vpop.f32.mrf.mxu0
  %v3231 = vadd.f32 %v3193, %v3230
  %3232 = vmatmul.f32.gmra.mxu0 %v534
  %v3233 = vpop.f32.mrf.mxu0
  %v3234 = vadd.f32 %v3193, %v3233
  %3235 = vmatmul.f32.gmra.mxu0 %v537
  %v3236 = vpop.f32.mrf.mxu0
  %v3237 = vadd.f32 %v3193, %v3236
  %3238 = vmatmul.f32.gmra.mxu0 %v540
  %v3239 = vpop.f32.mrf.mxu0
  %v3240 = vadd.f32 %v3193, %v3239
  %3241 = vmatmul.f32.gmra.mxu0 %v543
  %v3242 = vpop.f32.mrf.mxu0
  %v3243 = vadd.f32 %v3193, %v3242
  %3244 = vmatmul.f32.gmra.mxu0 %v546
  %v3245 = vpop.f32.mrf.mxu0
  %v3246 = vadd.f32 %v3193, %v3245
  %3247 = vmatmul.f32.gmra.mxu0 %v549
  %v3248 = vpop.f32.mrf.mxu0
  %v3249 = vadd.f32 %v3193, %v3248
  %3250 = vmatmul.f32.gmra.mxu0 %v552
  %v3251 = vpop.f32.mrf.mxu0
  %v3252 = vadd.f32 %v3193, %v3251
  %3253 = vmatmul.f32.gmra.mxu0 %v555
  %v3254 = vpop.f32.mrf.mxu0
  %v3255 = vadd.f32 %v3193, %v3254
  %3256 = vmatmul.f32.gmra.mxu0 %v558
  %v3257 = vpop.f32.mrf.mxu0
  %v3258 = vadd.f32 %v3193, %v3257
  %3259 = vdwg.mxu0
  %v3261 = vsel %vm771, %v3063, 0
  %v3264 = vsel %vm771, %v3066, 0
  %v3267 = vsel %vm771, %v3069, 0
  %v3270 = vsel %vm771, %v3072, 0
  %v3273 = vsel %vm771, %v3075, 0
  %v3276 = vsel %vm771, %v3078, 0
  %v3279 = vsel %vm771, %v3081, 0
  %v3282 = vsel %vm771, %v3084, 0
  %v3285 = vsel %vm771, %v3138, 0
  %v3288 = vsel %vm771, %v3141, 0
  %v3291 = vsel %vm771, %v3144, 0
  %v3294 = vsel %vm771, %v3147, 0
  %v3297 = vsel %vm771, %v3150, 0
  %v3300 = vsel %vm771, %v3153, 0
  %v3303 = vsel %vm771, %v3156, 0
  %v3306 = vsel %vm771, %v3159, 0
  %3308 = vmatpush.xpose.msra.mxu0 0.0
  %3309 = vmatpush.xpose.msra.mxu0 0.0
  %3310 = vmatpush.xpose.msra.mxu0 0.0
  %3311 = vmatpush.xpose.msra.mxu0 0.0
  %3312 = vmatpush.xpose.msra.mxu0 0.0
  %3313 = vmatpush.xpose.msra.mxu0 0.0
  %3314 = vmatpush.xpose.msra.mxu0 0.0
  %3315 = vmatpush.xpose.msra.mxu0 0.0
  %3316 = vmatpush.xpose.msra.mxu0 %v3306
  %3317 = vmatpush.xpose.msra.mxu0 %v3303
  %3318 = vmatpush.xpose.msra.mxu0 %v3300
  %3319 = vmatpush.xpose.msra.mxu0 %v3297
  %3320 = vmatpush.xpose.msra.mxu0 %v3294
  %3321 = vmatpush.xpose.msra.mxu0 %v3291
  %3322 = vmatpush.xpose.msra.mxu0 %v3288
  %3323 = vmatpush.xpose.msra.mxu0 %v3285
  %3324 = vmatmul.f32.gmra.mxu0 %v3261
  %v3325 = vpop.f32.mrf.mxu0
  %v3326 = vadd.f32 0.0, %v3325
  %3327 = vmatmul.f32.gmra.mxu0 %v3264
  %v3328 = vpop.f32.mrf.mxu0
  %v3329 = vadd.f32 0.0, %v3328
  %3330 = vmatmul.f32.gmra.mxu0 %v3267
  %v3331 = vpop.f32.mrf.mxu0
  %v3332 = vadd.f32 0.0, %v3331
  %3333 = vmatmul.f32.gmra.mxu0 %v3270
  %v3334 = vpop.f32.mrf.mxu0
  %v3335 = vadd.f32 0.0, %v3334
  %3336 = vmatmul.f32.gmra.mxu0 %v3273
  %v3337 = vpop.f32.mrf.mxu0
  %v3338 = vadd.f32 0.0, %v3337
  %3339 = vmatmul.f32.gmra.mxu0 %v3276
  %v3340 = vpop.f32.mrf.mxu0
  %v3341 = vadd.f32 0.0, %v3340
  %3342 = vmatmul.f32.gmra.mxu0 %v3279
  %v3343 = vpop.f32.mrf.mxu0
  %v3344 = vadd.f32 0.0, %v3343
  %3345 = vmatmul.f32.gmra.mxu0 %v3282
  %v3346 = vpop.f32.mrf.mxu0
  %v3347 = vadd.f32 0.0, %v3346
  %3348 = vdwg.mxu0
  %v3350 = vsel %vm771, %v3087, 0
  %v3353 = vsel %vm771, %v3090, 0
  %v3356 = vsel %vm771, %v3093, 0
  %v3359 = vsel %vm771, %v3096, 0
  %v3362 = vsel %vm771, %v3099, 0
  %v3365 = vsel %vm771, %v3102, 0
  %v3368 = vsel %vm771, %v3105, 0
  %v3371 = vsel %vm771, %v3108, 0
  %v3374 = vsel %vm771, %v3162, 0
  %v3377 = vsel %vm771, %v3165, 0
  %v3380 = vsel %vm771, %v3168, 0
  %v3383 = vsel %vm771, %v3171, 0
  %v3386 = vsel %vm771, %v3174, 0
  %v3389 = vsel %vm771, %v3177, 0
  %v3392 = vsel %vm771, %v3180, 0
  %v3395 = vsel %vm771, %v3183, 0
  %3397 = vmatpush.xpose.msra.mxu0 0.0
  %3398 = vmatpush.xpose.msra.mxu0 0.0
  %3399 = vmatpush.xpose.msra.mxu0 0.0
  %3400 = vmatpush.xpose.msra.mxu0 0.0
  %3401 = vmatpush.xpose.msra.mxu0 0.0
  %3402 = vmatpush.xpose.msra.mxu0 0.0
  %3403 = vmatpush.xpose.msra.mxu0 0.0
  %3404 = vmatpush.xpose.msra.mxu0 0.0
  %3405 = vmatpush.xpose.msra.mxu0 %v3395
  %3406 = vmatpush.xpose.msra.mxu0 %v3392
  %3407 = vmatpush.xpose.msra.mxu0 %v3389
  %3408 = vmatpush.xpose.msra.mxu0 %v3386
  %3409 = vmatpush.xpose.msra.mxu0 %v3383
  %3410 = vmatpush.xpose.msra.mxu0 %v3380
  %3411 = vmatpush.xpose.msra.mxu0 %v3377
  %3412 = vmatpush.xpose.msra.mxu0 %v3374
  %3413 = vmatmul.f32.gmra.mxu0 %v3350
  %v3414 = vpop.f32.mrf.mxu0
  %v3415 = vadd.f32 0.0, %v3414
  %3416 = vmatmul.f32.gmra.mxu0 %v3353
  %v3417 = vpop.f32.mrf.mxu0
  %v3418 = vadd.f32 0.0, %v3417
  %3419 = vmatmul.f32.gmra.mxu0 %v3356
  %v3420 = vpop.f32.mrf.mxu0
  %v3421 = vadd.f32 0.0, %v3420
  %3422 = vmatmul.f32.gmra.mxu0 %v3359
  %v3423 = vpop.f32.mrf.mxu0
  %v3424 = vadd.f32 0.0, %v3423
  %3425 = vmatmul.f32.gmra.mxu0 %v3362
  %v3426 = vpop.f32.mrf.mxu0
  %v3427 = vadd.f32 0.0, %v3426
  %3428 = vmatmul.f32.gmra.mxu0 %v3365
  %v3429 = vpop.f32.mrf.mxu0
  %v3430 = vadd.f32 0.0, %v3429
  %3431 = vmatmul.f32.gmra.mxu0 %v3368
  %v3432 = vpop.f32.mrf.mxu0
  %v3433 = vadd.f32 0.0, %v3432
  %3434 = vmatmul.f32.gmra.mxu0 %v3371
  %v3435 = vpop.f32.mrf.mxu0
  %v3436 = vadd.f32 0.0, %v3435
  %3437 = vdwg.mxu0
  %v3438 = vsel %vm950, %v3326, -inf
  %3439 = vmax.xlane.f32.xlu0 %v3438
  %v3440 = vpop.xlane.xlu0 %3439
  %v3441 = vsel %vm950, %v3329, -inf
  %3442 = vmax.xlane.f32.xlu0 %v3441
  %v3443 = vpop.xlane.xlu0 %3442
  %v3444 = vsel %vm950, %v3332, -inf
  %3445 = vmax.xlane.f32.xlu0 %v3444
  %v3446 = vpop.xlane.xlu0 %3445
  %v3447 = vsel %vm950, %v3335, -inf
  %3448 = vmax.xlane.f32.xlu0 %v3447
  %v3449 = vpop.xlane.xlu0 %3448
  %v3450 = vsel %vm950, %v3338, -inf
  %3451 = vmax.xlane.f32.xlu0 %v3450
  %v3452 = vpop.xlane.xlu0 %3451
  %v3453 = vsel %vm950, %v3341, -inf
  %3454 = vmax.xlane.f32.xlu0 %v3453
  %v3455 = vpop.xlane.xlu0 %3454
  %v3456 = vsel %vm950, %v3344, -inf
  %3457 = vmax.xlane.f32.xlu0 %v3456
  %v3458 = vpop.xlane.xlu0 %3457
  %v3459 = vsel %vm950, %v3347, -inf
  %3460 = vmax.xlane.f32.xlu0 %v3459
  %v3461 = vpop.xlane.xlu0 %3460
  %v3462 = vsel %vm950, %v3415, -inf
  %3463 = vmax.xlane.f32.xlu0 %v3462
  %v3464 = vpop.xlane.xlu0 %3463
  %v3465 = vsel %vm950, %v3418, -inf
  %3466 = vmax.xlane.f32.xlu0 %v3465
  %v3467 = vpop.xlane.xlu0 %3466
  %v3468 = vsel %vm950, %v3421, -inf
  %3469 = vmax.xlane.f32.xlu0 %v3468
  %v3470 = vpop.xlane.xlu0 %3469
  %v3471 = vsel %vm950, %v3424, -inf
  %3472 = vmax.xlane.f32.xlu0 %v3471
  %v3473 = vpop.xlane.xlu0 %3472
  %v3474 = vsel %vm950, %v3427, -inf
  %3475 = vmax.xlane.f32.xlu0 %v3474
  %v3476 = vpop.xlane.xlu0 %3475
  %v3477 = vsel %vm950, %v3430, -inf
  %3478 = vmax.xlane.f32.xlu0 %v3477
  %v3479 = vpop.xlane.xlu0 %3478
  %v3480 = vsel %vm950, %v3433, -inf
  %3481 = vmax.xlane.f32.xlu0 %v3480
  %v3482 = vpop.xlane.xlu0 %3481
  %v3483 = vsel %vm950, %v3436, -inf
  %3484 = vmax.xlane.f32.xlu0 %v3483
  %v3485 = vpop.xlane.xlu0 %3484
  %v3486 = vsub.f32 %v3326, %v3440
  %v3487 = vsub.f32 %v3329, %v3443
  %v3488 = vsub.f32 %v3332, %v3446
  %v3489 = vsub.f32 %v3335, %v3449
  %v3490 = vsub.f32 %v3338, %v3452
  %v3491 = vsub.f32 %v3341, %v3455
  %v3492 = vsub.f32 %v3344, %v3458
  %v3493 = vsub.f32 %v3347, %v3461
  %v3494 = vsub.f32 %v3415, %v3464
  %v3495 = vsub.f32 %v3418, %v3467
  %v3496 = vsub.f32 %v3421, %v3470
  %v3497 = vsub.f32 %v3424, %v3473
  %v3498 = vsub.f32 %v3427, %v3476
  %v3499 = vsub.f32 %v3430, %v3479
  %v3500 = vsub.f32 %v3433, %v3482
  %v3501 = vsub.f32 %v3436, %v3485
  %v3502 = vmul.f32 %v3486, 1.442695
  %v3503 = vpow.pop %v3502
  %v3504 = vmul.f32 %v3487, 1.442695
  %v3505 = vpow.pop %v3504
  %v3506 = vmul.f32 %v3488, 1.442695
  %v3507 = vpow.pop %v3506
  %v3508 = vmul.f32 %v3489, 1.442695
  %v3509 = vpow.pop %v3508
  %v3510 = vmul.f32 %v3490, 1.442695
  %v3511 = vpow.pop %v3510
  %v3512 = vmul.f32 %v3491, 1.442695
  %v3513 = vpow.pop %v3512
  %v3514 = vmul.f32 %v3492, 1.442695
  %v3515 = vpow.pop %v3514
  %v3516 = vmul.f32 %v3493, 1.442695
  %v3517 = vpow.pop %v3516
  %v3518 = vmul.f32 %v3494, 1.442695
  %v3519 = vpow.pop %v3518
  %v3520 = vmul.f32 %v3495, 1.442695
  %v3521 = vpow.pop %v3520
  %v3522 = vmul.f32 %v3496, 1.442695
  %v3523 = vpow.pop %v3522
  %v3524 = vmul.f32 %v3497, 1.442695
  %v3525 = vpow.pop %v3524
  %v3526 = vmul.f32 %v3498, 1.442695
  %v3527 = vpow.pop %v3526
  %v3528 = vmul.f32 %v3499, 1.442695
  %v3529 = vpow.pop %v3528
  %v3530 = vmul.f32 %v3500, 1.442695
  %v3531 = vpow.pop %v3530
  %v3532 = vmul.f32 %v3501, 1.442695
  %v3533 = vpow.pop %v3532
  %v3534 = vsel %vm950, %v3503, 0.0
  %3535 = vadd.xlane.f32.xlu0 %v3534
  %v3536 = vpop.xlane.xlu0 %3535
  %v3537 = vsel %vm950, %v3505, 0.0
  %3538 = vadd.xlane.f32.xlu0 %v3537
  %v3539 = vpop.xlane.xlu0 %3538
  %v3540 = vsel %vm950, %v3507, 0.0
  %3541 = vadd.xlane.f32.xlu0 %v3540
  %v3542 = vpop.xlane.xlu0 %3541
  %v3543 = vsel %vm950, %v3509, 0.0
  %3544 = vadd.xlane.f32.xlu0 %v3543
  %v3545 = vpop.xlane.xlu0 %3544
  %v3546 = vsel %vm950, %v3511, 0.0
  %3547 = vadd.xlane.f32.xlu0 %v3546
  %v3548 = vpop.xlane.xlu0 %3547
  %v3549 = vsel %vm950, %v3513, 0.0
  %3550 = vadd.xlane.f32.xlu0 %v3549
  %v3551 = vpop.xlane.xlu0 %3550
  %v3552 = vsel %vm950, %v3515, 0.0
  %3553 = vadd.xlane.f32.xlu0 %v3552
  %v3554 = vpop.xlane.xlu0 %3553
  %v3555 = vsel %vm950, %v3517, 0.0
  %3556 = vadd.xlane.f32.xlu0 %v3555
  %v3557 = vpop.xlane.xlu0 %3556
  %v3558 = vsel %vm950, %v3519, 0.0
  %3559 = vadd.xlane.f32.xlu0 %v3558
  %v3560 = vpop.xlane.xlu0 %3559
  %v3561 = vsel %vm950, %v3521, 0.0
  %3562 = vadd.xlane.f32.xlu0 %v3561
  %v3563 = vpop.xlane.xlu0 %3562
  %v3564 = vsel %vm950, %v3523, 0.0
  %3565 = vadd.xlane.f32.xlu0 %v3564
  %v3566 = vpop.xlane.xlu0 %3565
  %v3567 = vsel %vm950, %v3525, 0.0
  %3568 = vadd.xlane.f32.xlu0 %v3567
  %v3569 = vpop.xlane.xlu0 %3568
  %v3570 = vsel %vm950, %v3527, 0.0
  %3571 = vadd.xlane.f32.xlu0 %v3570
  %v3572 = vpop.xlane.xlu0 %3571
  %v3573 = vsel %vm950, %v3529, 0.0
  %3574 = vadd.xlane.f32.xlu0 %v3573
  %v3575 = vpop.xlane.xlu0 %3574
  %v3576 = vsel %vm950, %v3531, 0.0
  %3577 = vadd.xlane.f32.xlu0 %v3576
  %v3578 = vpop.xlane.xlu0 %3577
  %v3579 = vsel %vm950, %v3533, 0.0
  %3580 = vadd.xlane.f32.xlu0 %v3579
  %v3581 = vpop.xlane.xlu0 %3580
  %v3583 = vsel %vm950, %v3503, 0
  %v3586 = vsel %vm950, %v3505, 0
  %v3589 = vsel %vm950, %v3507, 0
  %v3592 = vsel %vm950, %v3509, 0
  %v3595 = vsel %vm950, %v3511, 0
  %v3598 = vsel %vm950, %v3513, 0
  %v3601 = vsel %vm950, %v3515, 0
  %v3604 = vsel %vm950, %v3517, 0
  %3606 = vmatpush.msra.mxu0 0.0
  %3607 = vmatpush.msra.mxu0 0.0
  %3608 = vmatpush.msra.mxu0 0.0
  %3609 = vmatpush.msra.mxu0 0.0
  %3610 = vmatpush.msra.mxu0 0.0
  %3611 = vmatpush.msra.mxu0 0.0
  %3612 = vmatpush.msra.mxu0 0.0
  %3613 = vmatpush.msra.mxu0 0.0
  %3614 = vmatpush.msra.mxu0 %v3234
  %3615 = vmatpush.msra.mxu0 %v3231
  %3616 = vmatpush.msra.mxu0 %v3228
  %3617 = vmatpush.msra.mxu0 %v3225
  %3618 = vmatpush.msra.mxu0 %v3222
  %3619 = vmatpush.msra.mxu0 %v3219
  %3620 = vmatpush.msra.mxu0 %v3216
  %3621 = vmatpush.msra.mxu0 %v3213
  %3622 = vmatmul.f32.gmra.mxu0 %v3583
  %v3623 = vpop.f32.mrf.mxu0
  %v3624 = vadd.f32 0.0, %v3623
  %3625 = vmatmul.f32.gmra.mxu0 %v3586
  %v3626 = vpop.f32.mrf.mxu0
  %v3627 = vadd.f32 0.0, %v3626
  %3628 = vmatmul.f32.gmra.mxu0 %v3589
  %v3629 = vpop.f32.mrf.mxu0
  %v3630 = vadd.f32 0.0, %v3629
  %3631 = vmatmul.f32.gmra.mxu0 %v3592
  %v3632 = vpop.f32.mrf.mxu0
  %v3633 = vadd.f32 0.0, %v3632
  %3634 = vmatmul.f32.gmra.mxu0 %v3595
  %v3635 = vpop.f32.mrf.mxu0
  %v3636 = vadd.f32 0.0, %v3635
  %3637 = vmatmul.f32.gmra.mxu0 %v3598
  %v3638 = vpop.f32.mrf.mxu0
  %v3639 = vadd.f32 0.0, %v3638
  %3640 = vmatmul.f32.gmra.mxu0 %v3601
  %v3641 = vpop.f32.mrf.mxu0
  %v3642 = vadd.f32 0.0, %v3641
  %3643 = vmatmul.f32.gmra.mxu0 %v3604
  %v3644 = vpop.f32.mrf.mxu0
  %v3645 = vadd.f32 0.0, %v3644
  %3646 = vdwg.mxu0
  %v3648 = vsel %vm950, %v3519, 0
  %v3651 = vsel %vm950, %v3521, 0
  %v3654 = vsel %vm950, %v3523, 0
  %v3657 = vsel %vm950, %v3525, 0
  %v3660 = vsel %vm950, %v3527, 0
  %v3663 = vsel %vm950, %v3529, 0
  %v3666 = vsel %vm950, %v3531, 0
  %v3669 = vsel %vm950, %v3533, 0
  %3671 = vmatpush.msra.mxu0 0.0
  %3672 = vmatpush.msra.mxu0 0.0
  %3673 = vmatpush.msra.mxu0 0.0
  %3674 = vmatpush.msra.mxu0 0.0
  %3675 = vmatpush.msra.mxu0 0.0
  %3676 = vmatpush.msra.mxu0 0.0
  %3677 = vmatpush.msra.mxu0 0.0
  %3678 = vmatpush.msra.mxu0 0.0
  %3679 = vmatpush.msra.mxu0 %v3258
  %3680 = vmatpush.msra.mxu0 %v3255
  %3681 = vmatpush.msra.mxu0 %v3252
  %3682 = vmatpush.msra.mxu0 %v3249
  %3683 = vmatpush.msra.mxu0 %v3246
  %3684 = vmatpush.msra.mxu0 %v3243
  %3685 = vmatpush.msra.mxu0 %v3240
  %3686 = vmatpush.msra.mxu0 %v3237
  %3687 = vmatmul.f32.gmra.mxu0 %v3648
  %v3688 = vpop.f32.mrf.mxu0
  %v3689 = vadd.f32 0.0, %v3688
  %3690 = vmatmul.f32.gmra.mxu0 %v3651
  %v3691 = vpop.f32.mrf.mxu0
  %v3692 = vadd.f32 0.0, %v3691
  %3693 = vmatmul.f32.gmra.mxu0 %v3654
  %v3694 = vpop.f32.mrf.mxu0
  %v3695 = vadd.f32 0.0, %v3694
  %3696 = vmatmul.f32.gmra.mxu0 %v3657
  %v3697 = vpop.f32.mrf.mxu0
  %v3698 = vadd.f32 0.0, %v3697
  %3699 = vmatmul.f32.gmra.mxu0 %v3660
  %v3700 = vpop.f32.mrf.mxu0
  %v3701 = vadd.f32 0.0, %v3700
  %3702 = vmatmul.f32.gmra.mxu0 %v3663
  %v3703 = vpop.f32.mrf.mxu0
  %v3704 = vadd.f32 0.0, %v3703
  %3705 = vmatmul.f32.gmra.mxu0 %v3666
  %v3706 = vpop.f32.mrf.mxu0
  %v3707 = vadd.f32 0.0, %v3706
  %3708 = vmatmul.f32.gmra.mxu0 %v3669
  %v3709 = vpop.f32.mrf.mxu0
  %v3710 = vadd.f32 0.0, %v3709
  %3711 = vdwg.mxu0
  %v3712 = vrcp.pop %v3536
  %v3713 = vrcp.pop %v3539
  %v3714 = vrcp.pop %v3542
  %v3715 = vrcp.pop %v3545
  %v3716 = vrcp.pop %v3548
  %v3717 = vrcp.pop %v3551
  %v3718 = vrcp.pop %v3554
  %v3719 = vrcp.pop %v3557
  %v3720 = vrcp.pop %v3560
  %v3721 = vrcp.pop %v3563
  %v3722 = vrcp.pop %v3566
  %v3723 = vrcp.pop %v3569
  %v3724 = vrcp.pop %v3572
  %v3725 = vrcp.pop %v3575
  %v3726 = vrcp.pop %v3578
  %v3727 = vrcp.pop %v3581
  %v3728 = vmul.f32 %v3624, %v3712
  %v3729 = vmul.f32 %v3627, %v3713
  %v3730 = vmul.f32 %v3630, %v3714
  %v3731 = vmul.f32 %v3633, %v3715
  %v3732 = vmul.f32 %v3636, %v3716
  %v3733 = vmul.f32 %v3639, %v3717
  %v3734 = vmul.f32 %v3642, %v3718
  %v3735 = vmul.f32 %v3645, %v3719
  %v3736 = vmul.f32 %v3689, %v3720
  %v3737 = vmul.f32 %v3692, %v3721
  %v3738 = vmul.f32 %v3695, %v3722
  %v3739 = vmul.f32 %v3698, %v3723
  %v3740 = vmul.f32 %v3701, %v3724
  %v3741 = vmul.f32 %v3704, %v3725
  %v3742 = vmul.f32 %v3707, %v3726
  %v3743 = vmul.f32 %v3710, %v3727
  %s3744 = scalar_lea.vmem %s9, 24
  %v3745 = vld [vmem:[%s3744] sm:$0xff]
  %v3747 = vsel %vm771, %v3728, 0
  %v3750 = vsel %vm771, %v3729, 0
  %v3753 = vsel %vm771, %v3730, 0
  %v3756 = vsel %vm771, %v3731, 0
  %v3759 = vsel %vm771, %v3732, 0
  %v3762 = vsel %vm771, %v3733, 0
  %v3765 = vsel %vm771, %v3734, 0
  %v3768 = vsel %vm771, %v3735, 0
  %v3771 = vsel %vm771, %v3736, 0
  %v3774 = vsel %vm771, %v3737, 0
  %v3777 = vsel %vm771, %v3738, 0
  %v3780 = vsel %vm771, %v3739, 0
  %v3783 = vsel %vm771, %v3740, 0
  %v3786 = vsel %vm771, %v3741, 0
  %v3789 = vsel %vm771, %v3742, 0
  %v3792 = vsel %vm771, %v3743, 0
  %3794 = vmatpush.msra.mxu0 0.0
  %3795 = vmatpush.msra.mxu0 0.0
  %3796 = vmatpush.msra.mxu0 0.0
  %3797 = vmatpush.msra.mxu0 0.0
  %3798 = vmatpush.msra.mxu0 0.0
  %3799 = vmatpush.msra.mxu0 0.0
  %3800 = vmatpush.msra.mxu0 0.0
  %3801 = vmatpush.msra.mxu0 0.0
  %3802 = vmatpush.msra.mxu0 0.0
  %3803 = vmatpush.msra.mxu0 0.0
  %3804 = vmatpush.msra.mxu0 0.0
  %3805 = vmatpush.msra.mxu0 0.0
  %3806 = vmatpush.msra.mxu0 0.0
  %3807 = vmatpush.msra.mxu0 0.0
  %3808 = vmatpush.msra.mxu0 0.0
  %3809 = vmatpush.msra.mxu0 %v3745
  %3810 = vmatmul.f32.gmra.mxu0 %v3747
  %v3811 = vpop.f32.mrf.mxu0
  %v3812 = vadd.f32 0.0, %v3811
  %3813 = vmatmul.f32.gmra.mxu0 %v3750
  %v3814 = vpop.f32.mrf.mxu0
  %v3815 = vadd.f32 0.0, %v3814
  %3816 = vmatmul.f32.gmra.mxu0 %v3753
  %v3817 = vpop.f32.mrf.mxu0
  %v3818 = vadd.f32 0.0, %v3817
  %3819 = vmatmul.f32.gmra.mxu0 %v3756
  %v3820 = vpop.f32.mrf.mxu0
  %v3821 = vadd.f32 0.0, %v3820
  %3822 = vmatmul.f32.gmra.mxu0 %v3759
  %v3823 = vpop.f32.mrf.mxu0
  %v3824 = vadd.f32 0.0, %v3823
  %3825 = vmatmul.f32.gmra.mxu0 %v3762
  %v3826 = vpop.f32.mrf.mxu0
  %v3827 = vadd.f32 0.0, %v3826
  %3828 = vmatmul.f32.gmra.mxu0 %v3765
  %v3829 = vpop.f32.mrf.mxu0
  %v3830 = vadd.f32 0.0, %v3829
  %3831 = vmatmul.f32.gmra.mxu0 %v3768
  %v3832 = vpop.f32.mrf.mxu0
  %v3833 = vadd.f32 0.0, %v3832
  %3834 = vmatmul.f32.gmra.mxu0 %v3771
  %v3835 = vpop.f32.mrf.mxu0
  %v3836 = vadd.f32 0.0, %v3835
  %3837 = vmatmul.f32.gmra.mxu0 %v3774
  %v3838 = vpop.f32.mrf.mxu0
  %v3839 = vadd.f32 0.0, %v3838
  %3840 = vmatmul.f32.gmra.mxu0 %v3777
  %v3841 = vpop.f32.mrf.mxu0
  %v3842 = vadd.f32 0.0, %v3841
  %3843 = vmatmul.f32.gmra.mxu0 %v3780
  %v3844 = vpop.f32.mrf.mxu0
  %v3845 = vadd.f32 0.0, %v3844
  %3846 = vmatmul.f32.gmra.mxu0 %v3783
  %v3847 = vpop.f32.mrf.mxu0
  %v3848 = vadd.f32 0.0, %v3847
  %3849 = vmatmul.f32.gmra.mxu0 %v3786
  %v3850 = vpop.f32.mrf.mxu0
  %v3851 = vadd.f32 0.0, %v3850
  %3852 = vmatmul.f32.gmra.mxu0 %v3789
  %v3853 = vpop.f32.mrf.mxu0
  %v3854 = vadd.f32 0.0, %v3853
  %3855 = vmatmul.f32.gmra.mxu0 %v3792
  %v3856 = vpop.f32.mrf.mxu0
  %v3857 = vadd.f32 0.0, %v3856
  %3858 = vdwg.mxu0
  %v3859 = vadd.f32 %v3019, %v3812
  %v3860 = vadd.f32 %v3020, %v3815
  %v3861 = vadd.f32 %v3021, %v3818
  %v3862 = vadd.f32 %v3022, %v3821
  %v3863 = vadd.f32 %v3023, %v3824
  %v3864 = vadd.f32 %v3024, %v3827
  %v3865 = vadd.f32 %v3025, %v3830
  %v3866 = vadd.f32 %v3026, %v3833
  %v3867 = vadd.f32 %v3027, %v3836
  %v3868 = vadd.f32 %v3028, %v3839
  %v3869 = vadd.f32 %v3029, %v3842
  %v3870 = vadd.f32 %v3030, %v3845
  %v3871 = vadd.f32 %v3031, %v3848
  %v3872 = vadd.f32 %v3032, %v3851
  %v3873 = vadd.f32 %v3033, %v3854
  %v3874 = vadd.f32 %v3034, %v3857
  %v3875 = vld [vmem:[%s10] sm:$0x1]
  %v3877 = vperm.slane %v3875, 0
  %v3879 = vadd.f32 %v3859, %v3877
  %v3880 = vadd.f32 %v3860, %v3877
  %v3881 = vadd.f32 %v3861, %v3877
  %v3882 = vadd.f32 %v3862, %v3877
  %v3883 = vadd.f32 %v3863, %v3877
  %v3884 = vadd.f32 %v3864, %v3877
  %v3885 = vadd.f32 %v3865, %v3877
  %v3886 = vadd.f32 %v3866, %v3877
  %v3887 = vadd.f32 %v3867, %v3877
  %v3888 = vadd.f32 %v3868, %v3877
  %v3889 = vadd.f32 %v3869, %v3877
  %v3890 = vadd.f32 %v3870, %v3877
  %v3891 = vadd.f32 %v3871, %v3877
  %v3892 = vadd.f32 %v3872, %v3877
  %v3893 = vadd.f32 %v3873, %v3877
  %v3894 = vadd.f32 %v3874, %v3877
  %v3895 = vadd.f32 %v3879, %v56
  %v3896 = vadd.f32 %v3880, %v57
  %v3897 = vadd.f32 %v3881, %v58
  %v3898 = vadd.f32 %v3882, %v59
  %v3899 = vadd.f32 %v3883, %v60
  %v3900 = vadd.f32 %v3884, %v61
  %v3901 = vadd.f32 %v3885, %v62
  %v3902 = vadd.f32 %v3886, %v63
  %v3903 = vadd.f32 %v3887, %v64
  %v3904 = vadd.f32 %v3888, %v65
  %v3905 = vadd.f32 %v3889, %v66
  %v3906 = vadd.f32 %v3890, %v67
  %v3907 = vadd.f32 %v3891, %v68
  %v3908 = vadd.f32 %v3892, %v69
  %v3909 = vadd.f32 %v3893, %v70
  %v3910 = vadd.f32 %v3894, %v71
  %v3911 = vld [vmem:[%s11] sm:$0x1]
  %v3912 = vld [vmem:[%s12] sm:$0x1]
  %v3913 = vsel %vm74, %v3895, 0.0
  %3914 = vadd.xlane.f32.xlu0 %v3913
  %v3915 = vpop.xlane.xlu0 %3914
  %v3916 = vsel %vm74, %v3896, 0.0
  %3917 = vadd.xlane.f32.xlu0 %v3916
  %v3918 = vpop.xlane.xlu0 %3917
  %v3919 = vsel %vm74, %v3897, 0.0
  %3920 = vadd.xlane.f32.xlu0 %v3919
  %v3921 = vpop.xlane.xlu0 %3920
  %v3922 = vsel %vm74, %v3898, 0.0
  %3923 = vadd.xlane.f32.xlu0 %v3922
  %v3924 = vpop.xlane.xlu0 %3923
  %v3925 = vsel %vm74, %v3899, 0.0
  %3926 = vadd.xlane.f32.xlu0 %v3925
  %v3927 = vpop.xlane.xlu0 %3926
  %v3928 = vsel %vm74, %v3900, 0.0
  %3929 = vadd.xlane.f32.xlu0 %v3928
  %v3930 = vpop.xlane.xlu0 %3929
  %v3931 = vsel %vm74, %v3901, 0.0
  %3932 = vadd.xlane.f32.xlu0 %v3931
  %v3933 = vpop.xlane.xlu0 %3932
  %v3934 = vsel %vm74, %v3902, 0.0
  %3935 = vadd.xlane.f32.xlu0 %v3934
  %v3936 = vpop.xlane.xlu0 %3935
  %v3937 = vsel %vm74, %v3903, 0.0
  %3938 = vadd.xlane.f32.xlu0 %v3937
  %v3939 = vpop.xlane.xlu0 %3938
  %v3940 = vsel %vm74, %v3904, 0.0
  %3941 = vadd.xlane.f32.xlu0 %v3940
  %v3942 = vpop.xlane.xlu0 %3941
  %v3943 = vsel %vm74, %v3905, 0.0
  %3944 = vadd.xlane.f32.xlu0 %v3943
  %v3945 = vpop.xlane.xlu0 %3944
  %v3946 = vsel %vm74, %v3906, 0.0
  %3947 = vadd.xlane.f32.xlu0 %v3946
  %v3948 = vpop.xlane.xlu0 %3947
  %v3949 = vsel %vm74, %v3907, 0.0
  %3950 = vadd.xlane.f32.xlu0 %v3949
  %v3951 = vpop.xlane.xlu0 %3950
  %v3952 = vsel %vm74, %v3908, 0.0
  %3953 = vadd.xlane.f32.xlu0 %v3952
  %v3954 = vpop.xlane.xlu0 %3953
  %v3955 = vsel %vm74, %v3909, 0.0
  %3956 = vadd.xlane.f32.xlu0 %v3955
  %v3957 = vpop.xlane.xlu0 %3956
  %v3958 = vsel %vm74, %v3910, 0.0
  %3959 = vadd.xlane.f32.xlu0 %v3958
  %v3960 = vpop.xlane.xlu0 %3959
  %v3961 = vmul.f32 %v3915, %v129
  %v3962 = vmul.f32 %v3918, %v129
  %v3963 = vmul.f32 %v3921, %v129
  %v3964 = vmul.f32 %v3924, %v129
  %v3965 = vmul.f32 %v3927, %v129
  %v3966 = vmul.f32 %v3930, %v129
  %v3967 = vmul.f32 %v3933, %v129
  %v3968 = vmul.f32 %v3936, %v129
  %v3969 = vmul.f32 %v3939, %v129
  %v3970 = vmul.f32 %v3942, %v129
  %v3971 = vmul.f32 %v3945, %v129
  %v3972 = vmul.f32 %v3948, %v129
  %v3973 = vmul.f32 %v3951, %v129
  %v3974 = vmul.f32 %v3954, %v129
  %v3975 = vmul.f32 %v3957, %v129
  %v3976 = vmul.f32 %v3960, %v129
  %v3977 = vmul.f32 %v3895, %v3895
  %v3978 = vmul.f32 %v3896, %v3896
  %v3979 = vmul.f32 %v3897, %v3897
  %v3980 = vmul.f32 %v3898, %v3898
  %v3981 = vmul.f32 %v3899, %v3899
  %v3982 = vmul.f32 %v3900, %v3900
  %v3983 = vmul.f32 %v3901, %v3901
  %v3984 = vmul.f32 %v3902, %v3902
  %v3985 = vmul.f32 %v3903, %v3903
  %v3986 = vmul.f32 %v3904, %v3904
  %v3987 = vmul.f32 %v3905, %v3905
  %v3988 = vmul.f32 %v3906, %v3906
  %v3989 = vmul.f32 %v3907, %v3907
  %v3990 = vmul.f32 %v3908, %v3908
  %v3991 = vmul.f32 %v3909, %v3909
  %v3992 = vmul.f32 %v3910, %v3910
  %v3993 = vsel %vm74, %v3977, 0.0
  %3994 = vadd.xlane.f32.xlu0 %v3993
  %v3995 = vpop.xlane.xlu0 %3994
  %v3996 = vsel %vm74, %v3978, 0.0
  %3997 = vadd.xlane.f32.xlu0 %v3996
  %v3998 = vpop.xlane.xlu0 %3997
  %v3999 = vsel %vm74, %v3979, 0.0
  %4000 = vadd.xlane.f32.xlu0 %v3999
  %v4001 = vpop.xlane.xlu0 %4000
  %v4002 = vsel %vm74, %v3980, 0.0
  %4003 = vadd.xlane.f32.xlu0 %v4002
  %v4004 = vpop.xlane.xlu0 %4003
  %v4005 = vsel %vm74, %v3981, 0.0
  %4006 = vadd.xlane.f32.xlu0 %v4005
  %v4007 = vpop.xlane.xlu0 %4006
  %v4008 = vsel %vm74, %v3982, 0.0
  %4009 = vadd.xlane.f32.xlu0 %v4008
  %v4010 = vpop.xlane.xlu0 %4009
  %v4011 = vsel %vm74, %v3983, 0.0
  %4012 = vadd.xlane.f32.xlu0 %v4011
  %v4013 = vpop.xlane.xlu0 %4012
  %v4014 = vsel %vm74, %v3984, 0.0
  %4015 = vadd.xlane.f32.xlu0 %v4014
  %v4016 = vpop.xlane.xlu0 %4015
  %v4017 = vsel %vm74, %v3985, 0.0
  %4018 = vadd.xlane.f32.xlu0 %v4017
  %v4019 = vpop.xlane.xlu0 %4018
  %v4020 = vsel %vm74, %v3986, 0.0
  %4021 = vadd.xlane.f32.xlu0 %v4020
  %v4022 = vpop.xlane.xlu0 %4021
  %v4023 = vsel %vm74, %v3987, 0.0
  %4024 = vadd.xlane.f32.xlu0 %v4023
  %v4025 = vpop.xlane.xlu0 %4024
  %v4026 = vsel %vm74, %v3988, 0.0
  %4027 = vadd.xlane.f32.xlu0 %v4026
  %v4028 = vpop.xlane.xlu0 %4027
  %v4029 = vsel %vm74, %v3989, 0.0
  %4030 = vadd.xlane.f32.xlu0 %v4029
  %v4031 = vpop.xlane.xlu0 %4030
  %v4032 = vsel %vm74, %v3990, 0.0
  %4033 = vadd.xlane.f32.xlu0 %v4032
  %v4034 = vpop.xlane.xlu0 %4033
  %v4035 = vsel %vm74, %v3991, 0.0
  %4036 = vadd.xlane.f32.xlu0 %v4035
  %v4037 = vpop.xlane.xlu0 %4036
  %v4038 = vsel %vm74, %v3992, 0.0
  %4039 = vadd.xlane.f32.xlu0 %v4038
  %v4040 = vpop.xlane.xlu0 %4039
  %v4041 = vmul.f32 %v3995, %v129
  %v4042 = vmul.f32 %v3998, %v129
  %v4043 = vmul.f32 %v4001, %v129
  %v4044 = vmul.f32 %v4004, %v129
  %v4045 = vmul.f32 %v4007, %v129
  %v4046 = vmul.f32 %v4010, %v129
  %v4047 = vmul.f32 %v4013, %v129
  %v4048 = vmul.f32 %v4016, %v129
  %v4049 = vmul.f32 %v4019, %v129
  %v4050 = vmul.f32 %v4022, %v129
  %v4051 = vmul.f32 %v4025, %v129
  %v4052 = vmul.f32 %v4028, %v129
  %v4053 = vmul.f32 %v4031, %v129
  %v4054 = vmul.f32 %v4034, %v129
  %v4055 = vmul.f32 %v4037, %v129
  %v4056 = vmul.f32 %v4040, %v129
  %v4057 = vmul.f32 %v3961, %v3961
  %v4058 = vmul.f32 %v3962, %v3962
  %v4059 = vmul.f32 %v3963, %v3963
  %v4060 = vmul.f32 %v3964, %v3964
  %v4061 = vmul.f32 %v3965, %v3965
  %v4062 = vmul.f32 %v3966, %v3966
  %v4063 = vmul.f32 %v3967, %v3967
  %v4064 = vmul.f32 %v3968, %v3968
  %v4065 = vmul.f32 %v3969, %v3969
  %v4066 = vmul.f32 %v3970, %v3970
  %v4067 = vmul.f32 %v3971, %v3971
  %v4068 = vmul.f32 %v3972, %v3972
  %v4069 = vmul.f32 %v3973, %v3973
  %v4070 = vmul.f32 %v3974, %v3974
  %v4071 = vmul.f32 %v3975, %v3975
  %v4072 = vmul.f32 %v3976, %v3976
  %v4073 = vsub.f32 %v4041, %v4057
  %v4074 = vsub.f32 %v4042, %v4058
  %v4075 = vsub.f32 %v4043, %v4059
  %v4076 = vsub.f32 %v4044, %v4060
  %v4077 = vsub.f32 %v4045, %v4061
  %v4078 = vsub.f32 %v4046, %v4062
  %v4079 = vsub.f32 %v4047, %v4063
  %v4080 = vsub.f32 %v4048, %v4064
  %v4081 = vsub.f32 %v4049, %v4065
  %v4082 = vsub.f32 %v4050, %v4066
  %v4083 = vsub.f32 %v4051, %v4067
  %v4084 = vsub.f32 %v4052, %v4068
  %v4085 = vsub.f32 %v4053, %v4069
  %v4086 = vsub.f32 %v4054, %v4070
  %v4087 = vsub.f32 %v4055, %v4071
  %v4088 = vsub.f32 %v4056, %v4072
  %v4089 = vsub.f32 %v3895, %v3961
  %v4090 = vsub.f32 %v3896, %v3962
  %v4091 = vsub.f32 %v3897, %v3963
  %v4092 = vsub.f32 %v3898, %v3964
  %v4093 = vsub.f32 %v3899, %v3965
  %v4094 = vsub.f32 %v3900, %v3966
  %v4095 = vsub.f32 %v3901, %v3967
  %v4096 = vsub.f32 %v3902, %v3968
  %v4097 = vsub.f32 %v3903, %v3969
  %v4098 = vsub.f32 %v3904, %v3970
  %v4099 = vsub.f32 %v3905, %v3971
  %v4100 = vsub.f32 %v3906, %v3972
  %v4101 = vsub.f32 %v3907, %v3973
  %v4102 = vsub.f32 %v3908, %v3974
  %v4103 = vsub.f32 %v3909, %v3975
  %v4104 = vsub.f32 %v3910, %v3976
  %v4105 = vadd.f32 %v4073, 1e-05
  %v4106 = vadd.f32 %v4074, 1e-05
  %v4107 = vadd.f32 %v4075, 1e-05
  %v4108 = vadd.f32 %v4076, 1e-05
  %v4109 = vadd.f32 %v4077, 1e-05
  %v4110 = vadd.f32 %v4078, 1e-05
  %v4111 = vadd.f32 %v4079, 1e-05
  %v4112 = vadd.f32 %v4080, 1e-05
  %v4113 = vadd.f32 %v4081, 1e-05
  %v4114 = vadd.f32 %v4082, 1e-05
  %v4115 = vadd.f32 %v4083, 1e-05
  %v4116 = vadd.f32 %v4084, 1e-05
  %v4117 = vadd.f32 %v4085, 1e-05
  %v4118 = vadd.f32 %v4086, 1e-05
  %v4119 = vadd.f32 %v4087, 1e-05
  %v4120 = vadd.f32 %v4088, 1e-05
  %v4121 = vrsqrt.pop %v4105
  %v4122 = vmul.f32 %v4121, %v4105
  %v4123 = vmul.f32 %v4122, %v4121
  %v4124 = vmul.f32 0.5, %v4123
  %v4125 = vsub.f32 1.5, %v4124
  %v4126 = vmul.f32 %v4121, %v4125
  %vm4127 = vweird.f32 %v4105
  %vm4128 = vweird.f32 %v4121
  %vm4129 = vmor %vm4127, %vm4128
  %v4130 = vsel %vm4129, %v4121, %v4126
  %v4131 = vrsqrt.pop %v4106
  %v4132 = vmul.f32 %v4131, %v4106
  %v4133 = vmul.f32 %v4132, %v4131
  %v4134 = vmul.f32 0.5, %v4133
  %v4135 = vsub.f32 1.5, %v4134
  %v4136 = vmul.f32 %v4131, %v4135
  %vm4137 = vweird.f32 %v4106
  %vm4138 = vweird.f32 %v4131
  %vm4139 = vmor %vm4137, %vm4138
  %v4140 = vsel %vm4139, %v4131, %v4136
  %v4141 = vrsqrt.pop %v4107
  %v4142 = vmul.f32 %v4141, %v4107
  %v4143 = vmul.f32 %v4142, %v4141
  %v4144 = vmul.f32 0.5, %v4143
  %v4145 = vsub.f32 1.5, %v4144
  %v4146 = vmul.f32 %v4141, %v4145
  %vm4147 = vweird.f32 %v4107
  %vm4148 = vweird.f32 %v4141
  %vm4149 = vmor %vm4147, %vm4148
  %v4150 = vsel %vm4149, %v4141, %v4146
  %v4151 = vrsqrt.pop %v4108
  %v4152 = vmul.f32 %v4151, %v4108
  %v4153 = vmul.f32 %v4152, %v4151
  %v4154 = vmul.f32 0.5, %v4153
  %v4155 = vsub.f32 1.5, %v4154
  %v4156 = vmul.f32 %v4151, %v4155
  %vm4157 = vweird.f32 %v4108
  %vm4158 = vweird.f32 %v4151
  %vm4159 = vmor %vm4157, %vm4158
  %v4160 = vsel %vm4159, %v4151, %v4156
  %v4161 = vrsqrt.pop %v4109
  %v4162 = vmul.f32 %v4161, %v4109
  %v4163 = vmul.f32 %v4162, %v4161
  %v4164 = vmul.f32 0.5, %v4163
  %v4165 = vsub.f32 1.5, %v4164
  %v4166 = vmul.f32 %v4161, %v4165
  %vm4167 = vweird.f32 %v4109
  %vm4168 = vweird.f32 %v4161
  %vm4169 = vmor %vm4167, %vm4168
  %v4170 = vsel %vm4169, %v4161, %v4166
  %v4171 = vrsqrt.pop %v4110
  %v4172 = vmul.f32 %v4171, %v4110
  %v4173 = vmul.f32 %v4172, %v4171
  %v4174 = vmul.f32 0.5, %v4173
  %v4175 = vsub.f32 1.5, %v4174
  %v4176 = vmul.f32 %v4171, %v4175
  %vm4177 = vweird.f32 %v4110
  %vm4178 = vweird.f32 %v4171
  %vm4179 = vmor %vm4177, %vm4178
  %v4180 = vsel %vm4179, %v4171, %v4176
  %v4181 = vrsqrt.pop %v4111
  %v4182 = vmul.f32 %v4181, %v4111
  %v4183 = vmul.f32 %v4182, %v4181
  %v4184 = vmul.f32 0.5, %v4183
  %v4185 = vsub.f32 1.5, %v4184
  %v4186 = vmul.f32 %v4181, %v4185
  %vm4187 = vweird.f32 %v4111
  %vm4188 = vweird.f32 %v4181
  %vm4189 = vmor %vm4187, %vm4188
  %v4190 = vsel %vm4189, %v4181, %v4186
  %v4191 = vrsqrt.pop %v4112
  %v4192 = vmul.f32 %v4191, %v4112
  %v4193 = vmul.f32 %v4192, %v4191
  %v4194 = vmul.f32 0.5, %v4193
  %v4195 = vsub.f32 1.5, %v4194
  %v4196 = vmul.f32 %v4191, %v4195
  %vm4197 = vweird.f32 %v4112
  %vm4198 = vweird.f32 %v4191
  %vm4199 = vmor %vm4197, %vm4198
  %v4200 = vsel %vm4199, %v4191, %v4196
  %v4201 = vrsqrt.pop %v4113
  %v4202 = vmul.f32 %v4201, %v4113
  %v4203 = vmul.f32 %v4202, %v4201
  %v4204 = vmul.f32 0.5, %v4203
  %v4205 = vsub.f32 1.5, %v4204
  %v4206 = vmul.f32 %v4201, %v4205
  %vm4207 = vweird.f32 %v4113
  %vm4208 = vweird.f32 %v4201
  %vm4209 = vmor %vm4207, %vm4208
  %v4210 = vsel %vm4209, %v4201, %v4206
  %v4211 = vrsqrt.pop %v4114
  %v4212 = vmul.f32 %v4211, %v4114
  %v4213 = vmul.f32 %v4212, %v4211
  %v4214 = vmul.f32 0.5, %v4213
  %v4215 = vsub.f32 1.5, %v4214
  %v4216 = vmul.f32 %v4211, %v4215
  %vm4217 = vweird.f32 %v4114
  %vm4218 = vweird.f32 %v4211
  %vm4219 = vmor %vm4217, %vm4218
  %v4220 = vsel %vm4219, %v4211, %v4216
  %v4221 = vrsqrt.pop %v4115
  %v4222 = vmul.f32 %v4221, %v4115
  %v4223 = vmul.f32 %v4222, %v4221
  %v4224 = vmul.f32 0.5, %v4223
  %v4225 = vsub.f32 1.5, %v4224
  %v4226 = vmul.f32 %v4221, %v4225
  %vm4227 = vweird.f32 %v4115
  %vm4228 = vweird.f32 %v4221
  %vm4229 = vmor %vm4227, %vm4228
  %v4230 = vsel %vm4229, %v4221, %v4226
  %v4231 = vrsqrt.pop %v4116
  %v4232 = vmul.f32 %v4231, %v4116
  %v4233 = vmul.f32 %v4232, %v4231
  %v4234 = vmul.f32 0.5, %v4233
  %v4235 = vsub.f32 1.5, %v4234
  %v4236 = vmul.f32 %v4231, %v4235
  %vm4237 = vweird.f32 %v4116
  %vm4238 = vweird.f32 %v4231
  %vm4239 = vmor %vm4237, %vm4238
  %v4240 = vsel %vm4239, %v4231, %v4236
  %v4241 = vrsqrt.pop %v4117
  %v4242 = vmul.f32 %v4241, %v4117
  %v4243 = vmul.f32 %v4242, %v4241
  %v4244 = vmul.f32 0.5, %v4243
  %v4245 = vsub.f32 1.5, %v4244
  %v4246 = vmul.f32 %v4241, %v4245
  %vm4247 = vweird.f32 %v4117
  %vm4248 = vweird.f32 %v4241
  %vm4249 = vmor %vm4247, %vm4248
  %v4250 = vsel %vm4249, %v4241, %v4246
  %v4251 = vrsqrt.pop %v4118
  %v4252 = vmul.f32 %v4251, %v4118
  %v4253 = vmul.f32 %v4252, %v4251
  %v4254 = vmul.f32 0.5, %v4253
  %v4255 = vsub.f32 1.5, %v4254
  %v4256 = vmul.f32 %v4251, %v4255
  %vm4257 = vweird.f32 %v4118
  %vm4258 = vweird.f32 %v4251
  %vm4259 = vmor %vm4257, %vm4258
  %v4260 = vsel %vm4259, %v4251, %v4256
  %v4261 = vrsqrt.pop %v4119
  %v4262 = vmul.f32 %v4261, %v4119
  %v4263 = vmul.f32 %v4262, %v4261
  %v4264 = vmul.f32 0.5, %v4263
  %v4265 = vsub.f32 1.5, %v4264
  %v4266 = vmul.f32 %v4261, %v4265
  %vm4267 = vweird.f32 %v4119
  %vm4268 = vweird.f32 %v4261
  %vm4269 = vmor %vm4267, %vm4268
  %v4270 = vsel %vm4269, %v4261, %v4266
  %v4271 = vrsqrt.pop %v4120
  %v4272 = vmul.f32 %v4271, %v4120
  %v4273 = vmul.f32 %v4272, %v4271
  %v4274 = vmul.f32 0.5, %v4273
  %v4275 = vsub.f32 1.5, %v4274
  %v4276 = vmul.f32 %v4271, %v4275
  %vm4277 = vweird.f32 %v4120
  %vm4278 = vweird.f32 %v4271
  %vm4279 = vmor %vm4277, %vm4278
  %v4280 = vsel %vm4279, %v4271, %v4276
  %v4281 = vmul.f32 %v4089, %v4130
  %v4282 = vmul.f32 %v4090, %v4140
  %v4283 = vmul.f32 %v4091, %v4150
  %v4284 = vmul.f32 %v4092, %v4160
  %v4285 = vmul.f32 %v4093, %v4170
  %v4286 = vmul.f32 %v4094, %v4180
  %v4287 = vmul.f32 %v4095, %v4190
  %v4288 = vmul.f32 %v4096, %v4200
  %v4289 = vmul.f32 %v4097, %v4210
  %v4290 = vmul.f32 %v4098, %v4220
  %v4291 = vmul.f32 %v4099, %v4230
  %v4292 = vmul.f32 %v4100, %v4240
  %v4293 = vmul.f32 %v4101, %v4250
  %v4294 = vmul.f32 %v4102, %v4260
  %v4295 = vmul.f32 %v4103, %v4270
  %v4296 = vmul.f32 %v4104, %v4280
  %v4298 = vperm.slane %v3911, 0
  %v4300 = vmul.f32 %v4281, %v4298
  %v4301 = vmul.f32 %v4282, %v4298
  %v4302 = vmul.f32 %v4283, %v4298
  %v4303 = vmul.f32 %v4284, %v4298
  %v4304 = vmul.f32 %v4285, %v4298
  %v4305 = vmul.f32 %v4286, %v4298
  %v4306 = vmul.f32 %v4287, %v4298
  %v4307 = vmul.f32 %v4288, %v4298
  %v4308 = vmul.f32 %v4289, %v4298
  %v4309 = vmul.f32 %v4290, %v4298
  %v4310 = vmul.f32 %v4291, %v4298
  %v4311 = vmul.f32 %v4292, %v4298
  %v4312 = vmul.f32 %v4293, %v4298
  %v4313 = vmul.f32 %v4294, %v4298
  %v4314 = vmul.f32 %v4295, %v4298
  %v4315 = vmul.f32 %v4296, %v4298
  %v4317 = vperm.slane %v3912, 0
  %v4319 = vadd.f32 %v4300, %v4317
  %v4320 = vadd.f32 %v4301, %v4317
  %v4321 = vadd.f32 %v4302, %v4317
  %v4322 = vadd.f32 %v4303, %v4317
  %v4323 = vadd.f32 %v4304, %v4317
  %v4324 = vadd.f32 %v4305, %v4317
  %v4325 = vadd.f32 %v4306, %v4317
  %v4326 = vadd.f32 %v4307, %v4317
  %v4327 = vadd.f32 %v4308, %v4317
  %v4328 = vadd.f32 %v4309, %v4317
  %v4329 = vadd.f32 %v4310, %v4317
  %v4330 = vadd.f32 %v4311, %v4317
  %v4331 = vadd.f32 %v4312, %v4317
  %v4332 = vadd.f32 %v4313, %v4317
  %v4333 = vadd.f32 %v4314, %v4317
  %v4334 = vadd.f32 %v4315, %v4317
  %v4335 = vld [vmem:[%s13] sm:$0xff]
  %v4336 = vld [vmem:[%s13 + $0x8] sm:$0xff]
  %v4337 = vld [vmem:[%s13 + $0x10] sm:$0xff]
  %v4338 = vld [vmem:[%s13 + $0x18] sm:$0xff]
  %v4339 = vld [vmem:[%s14] sm:$0x1]
  %v4341 = vperm.slane %v4339, 0
  %v4344 = vsel %vm74, %v4319, 0
  %v4347 = vsel %vm74, %v4320, 0
  %v4350 = vsel %vm74, %v4321, 0
  %v4353 = vsel %vm74, %v4322, 0
  %v4356 = vsel %vm74, %v4323, 0
  %v4359 = vsel %vm74, %v4324, 0
  %v4362 = vsel %vm74, %v4325, 0
  %v4365 = vsel %vm74, %v4326, 0
  %v4368 = vsel %vm74, %v4327, 0
  %v4371 = vsel %vm74, %v4328, 0
  %v4374 = vsel %vm74, %v4329, 0
  %v4377 = vsel %vm74, %v4330, 0
  %v4380 = vsel %vm74, %v4331, 0
  %v4383 = vsel %vm74, %v4332, 0
  %v4386 = vsel %vm74, %v4333, 0
  %v4389 = vsel %vm74, %v4334, 0
  %4391 = vmatpush.msra.mxu0 0.0
  %4392 = vmatpush.msra.mxu0 0.0
  %4393 = vmatpush.msra.mxu0 0.0
  %4394 = vmatpush.msra.mxu0 0.0
  %4395 = vmatpush.msra.mxu0 0.0
  %4396 = vmatpush.msra.mxu0 0.0
  %4397 = vmatpush.msra.mxu0 0.0
  %4398 = vmatpush.msra.mxu0 0.0
  %4399 = vmatpush.msra.mxu0 0.0
  %4400 = vmatpush.msra.mxu0 0.0
  %4401 = vmatpush.msra.mxu0 0.0
  %4402 = vmatpush.msra.mxu0 0.0
  %4403 = vmatpush.msra.mxu0 %v4338
  %4404 = vmatpush.msra.mxu0 %v4337
  %4405 = vmatpush.msra.mxu0 %v4336
  %4406 = vmatpush.msra.mxu0 %v4335
  %4407 = vmatmul.f32.gmra.mxu0 %v4344
  %v4408 = vpop.f32.mrf.mxu0
  %v4409 = vadd.f32 %v4341, %v4408
  %4410 = vmatmul.f32.gmra.mxu0 %v4347
  %v4411 = vpop.f32.mrf.mxu0
  %v4412 = vadd.f32 %v4341, %v4411
  %4413 = vmatmul.f32.gmra.mxu0 %v4350
  %v4414 = vpop.f32.mrf.mxu0
  %v4415 = vadd.f32 %v4341, %v4414
  %4416 = vmatmul.f32.gmra.mxu0 %v4353
  %v4417 = vpop.f32.mrf.mxu0
  %v4418 = vadd.f32 %v4341, %v4417
  %4419 = vmatmul.f32.gmra.mxu0 %v4356
  %v4420 = vpop.f32.mrf.mxu0
  %v4421 = vadd.f32 %v4341, %v4420
  %4422 = vmatmul.f32.gmra.mxu0 %v4359
  %v4423 = vpop.f32.mrf.mxu0
  %v4424 = vadd.f32 %v4341, %v4423
  %4425 = vmatmul.f32.gmra.mxu0 %v4362
  %v4426 = vpop.f32.mrf.mxu0
  %v4427 = vadd.f32 %v4341, %v4426
  %4428 = vmatmul.f32.gmra.mxu0 %v4365
  %v4429 = vpop.f32.mrf.mxu0
  %v4430 = vadd.f32 %v4341, %v4429
  %4431 = vmatmul.f32.gmra.mxu0 %v4368
  %v4432 = vpop.f32.mrf.mxu0
  %v4433 = vadd.f32 %v4341, %v4432
  %4434 = vmatmul.f32.gmra.mxu0 %v4371
  %v4435 = vpop.f32.mrf.mxu0
  %v4436 = vadd.f32 %v4341, %v4435
  %4437 = vmatmul.f32.gmra.mxu0 %v4374
  %v4438 = vpop.f32.mrf.mxu0
  %v4439 = vadd.f32 %v4341, %v4438
  %4440 = vmatmul.f32.gmra.mxu0 %v4377
  %v4441 = vpop.f32.mrf.mxu0
  %v4442 = vadd.f32 %v4341, %v4441
  %4443 = vmatmul.f32.gmra.mxu0 %v4380
  %v4444 = vpop.f32.mrf.mxu0
  %v4445 = vadd.f32 %v4341, %v4444
  %4446 = vmatmul.f32.gmra.mxu0 %v4383
  %v4447 = vpop.f32.mrf.mxu0
  %v4448 = vadd.f32 %v4341, %v4447
  %4449 = vmatmul.f32.gmra.mxu0 %v4386
  %v4450 = vpop.f32.mrf.mxu0
  %v4451 = vadd.f32 %v4341, %v4450
  %4452 = vmatmul.f32.gmra.mxu0 %v4389
  %v4453 = vpop.f32.mrf.mxu0
  %v4454 = vadd.f32 %v4341, %v4453
  %4455 = vdwg.mxu0
  %v4456 = vmul.f32 %v4409, 0.5
  %v4457 = vmul.f32 %v4412, 0.5
  %v4458 = vmul.f32 %v4415, 0.5
  %v4459 = vmul.f32 %v4418, 0.5
  %v4460 = vmul.f32 %v4421, 0.5
  %v4461 = vmul.f32 %v4424, 0.5
  %v4462 = vmul.f32 %v4427, 0.5
  %v4463 = vmul.f32 %v4430, 0.5
  %v4464 = vmul.f32 %v4433, 0.5
  %v4465 = vmul.f32 %v4436, 0.5
  %v4466 = vmul.f32 %v4439, 0.5
  %v4467 = vmul.f32 %v4442, 0.5
  %v4468 = vmul.f32 %v4445, 0.5
  %v4469 = vmul.f32 %v4448, 0.5
  %v4470 = vmul.f32 %v4451, 0.5
  %v4471 = vmul.f32 %v4454, 0.5
  %v4472 = vrcp.pop 1.4142135
  %v4473 = vmul.f32 1.4142135, %v4472
  %v4474 = vsub.f32 1.0, %v4473
  %v4475 = vmul.f32 %v4472, %v4474
  %v4476 = vadd.f32 %v4472, %v4475
  %vm4477 = vweird.f32 %v4472
  %v4478 = vsel %vm4477, %v4472, %v4476
  %v4479 = vmul.f32 %v4409, %v4478
  %v4480 = vmul.f32 %v4412, %v4478
  %v4481 = vmul.f32 %v4415, %v4478
  %v4482 = vmul.f32 %v4418, %v4478
  %v4483 = vmul.f32 %v4421, %v4478
  %v4484 = vmul.f32 %v4424, %v4478
  %v4485 = vmul.f32 %v4427, %v4478
  %v4486 = vmul.f32 %v4430, %v4478
  %v4487 = vmul.f32 %v4433, %v4478
  %v4488 = vmul.f32 %v4436, %v4478
  %v4489 = vmul.f32 %v4439, %v4478
  %v4490 = vmul.f32 %v4442, %v4478
  %v4491 = vmul.f32 %v4445, %v4478
  %v4492 = vmul.f32 %v4448, %v4478
  %v4493 = vmul.f32 %v4451, %v4478
  %v4494 = vmul.f32 %v4454, %v4478
  %v4495 = vmul.f32 %v4479, %v4479
  %v4496 = vmin.f32 16.0, %v4495
  %v4497 = vmul.f32 %v4496, 2.1237322e-06
  %v4498 = vadd.f32 %v4497, 0.00028619796
  %v4499 = vmul.f32 %v4496, %v4498
  %v4500 = vadd.f32 %v4499, 0.0036580483
  %v4501 = vmul.f32 %v4496, %v4500
  %v4502 = vadd.f32 %v4501, 0.05243302
  %v4503 = vmul.f32 %v4496, %v4502
  %v4504 = vadd.f32 %v4503, 0.18741608
  %v4505 = vmul.f32 %v4496, %v4504
  %v4506 = vadd.f32 %v4505, 1.1283791
  %v4507 = vmul.f32 %v4479, %v4506
  %v4508 = vmul.f32 %v4496, 3.8918573e-05
  %v4509 = vadd.f32 %v4508, 0.001143296
  %v4510 = vmul.f32 %v4496, %v4509
  %v4511 = vadd.f32 %v4510, 0.014752088
  %v4512 = vmul.f32 %v4496, %v4511
  %v4513 = vadd.f32 %v4512, 0.112945676
  %v4514 = vmul.f32 %v4496, %v4513
  %v4515 = vadd.f32 %v4514, 0.4994258
  %v4516 = vmul.f32 %v4496, %v4515
  %v4517 = vadd.f32 %v4516, 1.0
  %v4518 = vrcp.pop %v4517
  %v4519 = vmul.f32 %v4517, %v4518
  %v4520 = vsub.f32 1.0, %v4519
  %v4521 = vmul.f32 %v4518, %v4520
  %v4522 = vadd.f32 %v4518, %v4521
  %vm4523 = vweird.f32 %v4517
  %vm4524 = vweird.f32 %v4518
  %vm4525 = vmor %vm4523, %vm4524
  %v4526 = vsel %vm4525, %v4518, %v4522
  %v4527 = vand.u32 2147483647, %v4517
  %vm4528 = vcmp.eq.f32.partialorder %v4527, 8.507059e+37
  %v4529 = vand.u32 %v4517, 2147483648
  %v4530 = vor.u32 1.1754944e-38, %v4529
  %v4531 = vsel %vm4528, %v4530, %v4526
  %v4532 = vmul.f32 %v4507, %v4531
  %v4533 = vmin.f32 %v4532, 1.0
  %v4534 = vmax.f32 %v4533, -1.0
  %v4535 = vmul.f32 %v4480, %v4480
  %v4536 = vmin.f32 16.0, %v4535
  %v4537 = vmul.f32 %v4536, 2.1237322e-06
  %v4538 = vadd.f32 %v4537, 0.00028619796
  %v4539 = vmul.f32 %v4536, %v4538
  %v4540 = vadd.f32 %v4539, 0.0036580483
  %v4541 = vmul.f32 %v4536, %v4540
  %v4542 = vadd.f32 %v4541, 0.05243302
  %v4543 = vmul.f32 %v4536, %v4542
  %v4544 = vadd.f32 %v4543, 0.18741608
  %v4545 = vmul.f32 %v4536, %v4544
  %v4546 = vadd.f32 %v4545, 1.1283791
  %v4547 = vmul.f32 %v4480, %v4546
  %v4548 = vmul.f32 %v4536, 3.8918573e-05
  %v4549 = vadd.f32 %v4548, 0.001143296
  %v4550 = vmul.f32 %v4536, %v4549
  %v4551 = vadd.f32 %v4550, 0.014752088
  %v4552 = vmul.f32 %v4536, %v4551
  %v4553 = vadd.f32 %v4552, 0.112945676
  %v4554 = vmul.f32 %v4536, %v4553
  %v4555 = vadd.f32 %v4554, 0.4994258
  %v4556 = vmul.f32 %v4536, %v4555
  %v4557 = vadd.f32 %v4556, 1.0
  %v4558 = vrcp.pop %v4557
  %v4559 = vmul.f32 %v4557, %v4558
  %v4560 = vsub.f32 1.0, %v4559
  %v4561 = vmul.f32 %v4558, %v4560
  %v4562 = vadd.f32 %v4558, %v4561
  %vm4563 = vweird.f32 %v4557
  %vm4564 = vweird.f32 %v4558
  %vm4565 = vmor %vm4563, %vm4564
  %v4566 = vsel %vm4565, %v4558, %v4562
  %v4567 = vand.u32 2147483647, %v4557
  %vm4568 = vcmp.eq.f32.partialorder %v4567, 8.507059e+37
  %v4569 = vand.u32 %v4557, 2147483648
  %v4570 = vor.u32 1.1754944e-38, %v4569
  %v4571 = vsel %vm4568, %v4570, %v4566
  %v4572 = vmul.f32 %v4547, %v4571
  %v4573 = vmin.f32 %v4572, 1.0
  %v4574 = vmax.f32 %v4573, -1.0
  %v4575 = vmul.f32 %v4481, %v4481
  %v4576 = vmin.f32 16.0, %v4575
  %v4577 = vmul.f32 %v4576, 2.1237322e-06
  %v4578 = vadd.f32 %v4577, 0.00028619796
  %v4579 = vmul.f32 %v4576, %v4578
  %v4580 = vadd.f32 %v4579, 0.0036580483
  %v4581 = vmul.f32 %v4576, %v4580
  %v4582 = vadd.f32 %v4581, 0.05243302
  %v4583 = vmul.f32 %v4576, %v4582
  %v4584 = vadd.f32 %v4583, 0.18741608
  %v4585 = vmul.f32 %v4576, %v4584
  %v4586 = vadd.f32 %v4585, 1.1283791
  %v4587 = vmul.f32 %v4481, %v4586
  %v4588 = vmul.f32 %v4576, 3.8918573e-05
  %v4589 = vadd.f32 %v4588, 0.001143296
  %v4590 = vmul.f32 %v4576, %v4589
  %v4591 = vadd.f32 %v4590, 0.014752088
  %v4592 = vmul.f32 %v4576, %v4591
  %v4593 = vadd.f32 %v4592, 0.112945676
  %v4594 = vmul.f32 %v4576, %v4593
  %v4595 = vadd.f32 %v4594, 0.4994258
  %v4596 = vmul.f32 %v4576, %v4595
  %v4597 = vadd.f32 %v4596, 1.0
  %v4598 = vrcp.pop %v4597
  %v4599 = vmul.f32 %v4597, %v4598
  %v4600 = vsub.f32 1.0, %v4599
  %v4601 = vmul.f32 %v4598, %v4600
  %v4602 = vadd.f32 %v4598, %v4601
  %vm4603 = vweird.f32 %v4597
  %vm4604 = vweird.f32 %v4598
  %vm4605 = vmor %vm4603, %vm4604
  %v4606 = vsel %vm4605, %v4598, %v4602
  %v4607 = vand.u32 2147483647, %v4597
  %vm4608 = vcmp.eq.f32.partialorder %v4607, 8.507059e+37
  %v4609 = vand.u32 %v4597, 2147483648
  %v4610 = vor.u32 1.1754944e-38, %v4609
  %v4611 = vsel %vm4608, %v4610, %v4606
  %v4612 = vmul.f32 %v4587, %v4611
  %v4613 = vmin.f32 %v4612, 1.0
  %v4614 = vmax.f32 %v4613, -1.0
  %v4615 = vmul.f32 %v4482, %v4482
  %v4616 = vmin.f32 16.0, %v4615
  %v4617 = vmul.f32 %v4616, 2.1237322e-06
  %v4618 = vadd.f32 %v4617, 0.00028619796
  %v4619 = vmul.f32 %v4616, %v4618
  %v4620 = vadd.f32 %v4619, 0.0036580483
  %v4621 = vmul.f32 %v4616, %v4620
  %v4622 = vadd.f32 %v4621, 0.05243302
  %v4623 = vmul.f32 %v4616, %v4622
  %v4624 = vadd.f32 %v4623, 0.18741608
  %v4625 = vmul.f32 %v4616, %v4624
  %v4626 = vadd.f32 %v4625, 1.1283791
  %v4627 = vmul.f32 %v4482, %v4626
  %v4628 = vmul.f32 %v4616, 3.8918573e-05
  %v4629 = vadd.f32 %v4628, 0.001143296
  %v4630 = vmul.f32 %v4616, %v4629
  %v4631 = vadd.f32 %v4630, 0.014752088
  %v4632 = vmul.f32 %v4616, %v4631
  %v4633 = vadd.f32 %v4632, 0.112945676
  %v4634 = vmul.f32 %v4616, %v4633
  %v4635 = vadd.f32 %v4634, 0.4994258
  %v4636 = vmul.f32 %v4616, %v4635
  %v4637 = vadd.f32 %v4636, 1.0
  %v4638 = vrcp.pop %v4637
  %v4639 = vmul.f32 %v4637, %v4638
  %v4640 = vsub.f32 1.0, %v4639
  %v4641 = vmul.f32 %v4638, %v4640
  %v4642 = vadd.f32 %v4638, %v4641
  %vm4643 = vweird.f32 %v4637
  %vm4644 = vweird.f32 %v4638
  %vm4645 = vmor %vm4643, %vm4644
  %v4646 = vsel %vm4645, %v4638, %v4642
  %v4647 = vand.u32 2147483647, %v4637
  %vm4648 = vcmp.eq.f32.partialorder %v4647, 8.507059e+37
  %v4649 = vand.u32 %v4637, 2147483648
  %v4650 = vor.u32 1.1754944e-38, %v4649
  %v4651 = vsel %vm4648, %v4650, %v4646
  %v4652 = vmul.f32 %v4627, %v4651
  %v4653 = vmin.f32 %v4652, 1.0
  %v4654 = vmax.f32 %v4653, -1.0
  %v4655 = vmul.f32 %v4483, %v4483
  %v4656 = vmin.f32 16.0, %v4655
  %v4657 = vmul.f32 %v4656, 2.1237322e-06
  %v4658 = vadd.f32 %v4657, 0.00028619796
  %v4659 = vmul.f32 %v4656, %v4658
  %v4660 = vadd.f32 %v4659, 0.0036580483
  %v4661 = vmul.f32 %v4656, %v4660
  %v4662 = vadd.f32 %v4661, 0.05243302
  %v4663 = vmul.f32 %v4656, %v4662
  %v4664 = vadd.f32 %v4663, 0.18741608
  %v4665 = vmul.f32 %v4656, %v4664
  %v4666 = vadd.f32 %v4665, 1.1283791
  %v4667 = vmul.f32 %v4483, %v4666
  %v4668 = vmul.f32 %v4656, 3.8918573e-05
  %v4669 = vadd.f32 %v4668, 0.001143296
  %v4670 = vmul.f32 %v4656, %v4669
  %v4671 = vadd.f32 %v4670, 0.014752088
  %v4672 = vmul.f32 %v4656, %v4671
  %v4673 = vadd.f32 %v4672, 0.112945676
  %v4674 = vmul.f32 %v4656, %v4673
  %v4675 = vadd.f32 %v4674, 0.4994258
  %v4676 = vmul.f32 %v4656, %v4675
  %v4677 = vadd.f32 %v4676, 1.0
  %v4678 = vrcp.pop %v4677
  %v4679 = vmul.f32 %v4677, %v4678
  %v4680 = vsub.f32 1.0, %v4679
  %v4681 = vmul.f32 %v4678, %v4680
  %v4682 = vadd.f32 %v4678, %v4681
  %vm4683 = vweird.f32 %v4677
  %vm4684 = vweird.f32 %v4678
  %vm4685 = vmor %vm4683, %vm4684
  %v4686 = vsel %vm4685, %v4678, %v4682
  %v4687 = vand.u32 2147483647, %v4677
  %vm4688 = vcmp.eq.f32.partialorder %v4687, 8.507059e+37
  %v4689 = vand.u32 %v4677, 2147483648
  %v4690 = vor.u32 1.1754944e-38, %v4689
  %v4691 = vsel %vm4688, %v4690, %v4686
  %v4692 = vmul.f32 %v4667, %v4691
  %v4693 = vmin.f32 %v4692, 1.0
  %v4694 = vmax.f32 %v4693, -1.0
  %v4695 = vmul.f32 %v4484, %v4484
  %v4696 = vmin.f32 16.0, %v4695
  %v4697 = vmul.f32 %v4696, 2.1237322e-06
  %v4698 = vadd.f32 %v4697, 0.00028619796
  %v4699 = vmul.f32 %v4696, %v4698
  %v4700 = vadd.f32 %v4699, 0.0036580483
  %v4701 = vmul.f32 %v4696, %v4700
  %v4702 = vadd.f32 %v4701, 0.05243302
  %v4703 = vmul.f32 %v4696, %v4702
  %v4704 = vadd.f32 %v4703, 0.18741608
  %v4705 = vmul.f32 %v4696, %v4704
  %v4706 = vadd.f32 %v4705, 1.1283791
  %v4707 = vmul.f32 %v4484, %v4706
  %v4708 = vmul.f32 %v4696, 3.8918573e-05
  %v4709 = vadd.f32 %v4708, 0.001143296
  %v4710 = vmul.f32 %v4696, %v4709
  %v4711 = vadd.f32 %v4710, 0.014752088
  %v4712 = vmul.f32 %v4696, %v4711
  %v4713 = vadd.f32 %v4712, 0.112945676
  %v4714 = vmul.f32 %v4696, %v4713
  %v4715 = vadd.f32 %v4714, 0.4994258
  %v4716 = vmul.f32 %v4696, %v4715
  %v4717 = vadd.f32 %v4716, 1.0
  %v4718 = vrcp.pop %v4717
  %v4719 = vmul.f32 %v4717, %v4718
  %v4720 = vsub.f32 1.0, %v4719
  %v4721 = vmul.f32 %v4718, %v4720
  %v4722 = vadd.f32 %v4718, %v4721
  %vm4723 = vweird.f32 %v4717
  %vm4724 = vweird.f32 %v4718
  %vm4725 = vmor %vm4723, %vm4724
  %v4726 = vsel %vm4725, %v4718, %v4722
  %v4727 = vand.u32 2147483647, %v4717
  %vm4728 = vcmp.eq.f32.partialorder %v4727, 8.507059e+37
  %v4729 = vand.u32 %v4717, 2147483648
  %v4730 = vor.u32 1.1754944e-38, %v4729
  %v4731 = vsel %vm4728, %v4730, %v4726
  %v4732 = vmul.f32 %v4707, %v4731
  %v4733 = vmin.f32 %v4732, 1.0
  %v4734 = vmax.f32 %v4733, -1.0
  %v4735 = vmul.f32 %v4485, %v4485
  %v4736 = vmin.f32 16.0, %v4735
  %v4737 = vmul.f32 %v4736, 2.1237322e-06
  %v4738 = vadd.f32 %v4737, 0.00028619796
  %v4739 = vmul.f32 %v4736, %v4738
  %v4740 = vadd.f32 %v4739, 0.0036580483
  %v4741 = vmul.f32 %v4736, %v4740
  %v4742 = vadd.f32 %v4741, 0.05243302
  %v4743 = vmul.f32 %v4736, %v4742
  %v4744 = vadd.f32 %v4743, 0.18741608
  %v4745 = vmul.f32 %v4736, %v4744
  %v4746 = vadd.f32 %v4745, 1.1283791
  %v4747 = vmul.f32 %v4485, %v4746
  %v4748 = vmul.f32 %v4736, 3.8918573e-05
  %v4749 = vadd.f32 %v4748, 0.001143296
  %v4750 = vmul.f32 %v4736, %v4749
  %v4751 = vadd.f32 %v4750, 0.014752088
  %v4752 = vmul.f32 %v4736, %v4751
  %v4753 = vadd.f32 %v4752, 0.112945676
  %v4754 = vmul.f32 %v4736, %v4753
  %v4755 = vadd.f32 %v4754, 0.4994258
  %v4756 = vmul.f32 %v4736, %v4755
  %v4757 = vadd.f32 %v4756, 1.0
  %v4758 = vrcp.pop %v4757
  %v4759 = vmul.f32 %v4757, %v4758
  %v4760 = vsub.f32 1.0, %v4759
  %v4761 = vmul.f32 %v4758, %v4760
  %v4762 = vadd.f32 %v4758, %v4761
  %vm4763 = vweird.f32 %v4757
  %vm4764 = vweird.f32 %v4758
  %vm4765 = vmor %vm4763, %vm4764
  %v4766 = vsel %vm4765, %v4758, %v4762
  %v4767 = vand.u32 2147483647, %v4757
  %vm4768 = vcmp.eq.f32.partialorder %v4767, 8.507059e+37
  %v4769 = vand.u32 %v4757, 2147483648
  %v4770 = vor.u32 1.1754944e-38, %v4769
  %v4771 = vsel %vm4768, %v4770, %v4766
  %v4772 = vmul.f32 %v4747, %v4771
  %v4773 = vmin.f32 %v4772, 1.0
  %v4774 = vmax.f32 %v4773, -1.0
  %v4775 = vmul.f32 %v4486, %v4486
  %v4776 = vmin.f32 16.0, %v4775
  %v4777 = vmul.f32 %v4776, 2.1237322e-06
  %v4778 = vadd.f32 %v4777, 0.00028619796
  %v4779 = vmul.f32 %v4776, %v4778
  %v4780 = vadd.f32 %v4779, 0.0036580483
  %v4781 = vmul.f32 %v4776, %v4780
  %v4782 = vadd.f32 %v4781, 0.05243302
  %v4783 = vmul.f32 %v4776, %v4782
  %v4784 = vadd.f32 %v4783, 0.18741608
  %v4785 = vmul.f32 %v4776, %v4784
  %v4786 = vadd.f32 %v4785, 1.1283791
  %v4787 = vmul.f32 %v4486, %v4786
  %v4788 = vmul.f32 %v4776, 3.8918573e-05
  %v4789 = vadd.f32 %v4788, 0.001143296
  %v4790 = vmul.f32 %v4776, %v4789
  %v4791 = vadd.f32 %v4790, 0.014752088
  %v4792 = vmul.f32 %v4776, %v4791
  %v4793 = vadd.f32 %v4792, 0.112945676
  %v4794 = vmul.f32 %v4776, %v4793
  %v4795 = vadd.f32 %v4794, 0.4994258
  %v4796 = vmul.f32 %v4776, %v4795
  %v4797 = vadd.f32 %v4796, 1.0
  %v4798 = vrcp.pop %v4797
  %v4799 = vmul.f32 %v4797, %v4798
  %v4800 = vsub.f32 1.0, %v4799
  %v4801 = vmul.f32 %v4798, %v4800
  %v4802 = vadd.f32 %v4798, %v4801
  %vm4803 = vweird.f32 %v4797
  %vm4804 = vweird.f32 %v4798
  %vm4805 = vmor %vm4803, %vm4804
  %v4806 = vsel %vm4805, %v4798, %v4802
  %v4807 = vand.u32 2147483647, %v4797
  %vm4808 = vcmp.eq.f32.partialorder %v4807, 8.507059e+37
  %v4809 = vand.u32 %v4797, 2147483648
  %v4810 = vor.u32 1.1754944e-38, %v4809
  %v4811 = vsel %vm4808, %v4810, %v4806
  %v4812 = vmul.f32 %v4787, %v4811
  %v4813 = vmin.f32 %v4812, 1.0
  %v4814 = vmax.f32 %v4813, -1.0
  %v4815 = vmul.f32 %v4487, %v4487
  %v4816 = vmin.f32 16.0, %v4815
  %v4817 = vmul.f32 %v4816, 2.1237322e-06
  %v4818 = vadd.f32 %v4817, 0.00028619796
  %v4819 = vmul.f32 %v4816, %v4818
  %v4820 = vadd.f32 %v4819, 0.0036580483
  %v4821 = vmul.f32 %v4816, %v4820
  %v4822 = vadd.f32 %v4821, 0.05243302
  %v4823 = vmul.f32 %v4816, %v4822
  %v4824 = vadd.f32 %v4823, 0.18741608
  %v4825 = vmul.f32 %v4816, %v4824
  %v4826 = vadd.f32 %v4825, 1.1283791
  %v4827 = vmul.f32 %v4487, %v4826
  %v4828 = vmul.f32 %v4816, 3.8918573e-05
  %v4829 = vadd.f32 %v4828, 0.001143296
  %v4830 = vmul.f32 %v4816, %v4829
  %v4831 = vadd.f32 %v4830, 0.014752088
  %v4832 = vmul.f32 %v4816, %v4831
  %v4833 = vadd.f32 %v4832, 0.112945676
  %v4834 = vmul.f32 %v4816, %v4833
  %v4835 = vadd.f32 %v4834, 0.4994258
  %v4836 = vmul.f32 %v4816, %v4835
  %v4837 = vadd.f32 %v4836, 1.0
  %v4838 = vrcp.pop %v4837
  %v4839 = vmul.f32 %v4837, %v4838
  %v4840 = vsub.f32 1.0, %v4839
  %v4841 = vmul.f32 %v4838, %v4840
  %v4842 = vadd.f32 %v4838, %v4841
  %vm4843 = vweird.f32 %v4837
  %vm4844 = vweird.f32 %v4838
  %vm4845 = vmor %vm4843, %vm4844
  %v4846 = vsel %vm4845, %v4838, %v4842
  %v4847 = vand.u32 2147483647, %v4837
  %vm4848 = vcmp.eq.f32.partialorder %v4847, 8.507059e+37
  %v4849 = vand.u32 %v4837, 2147483648
  %v4850 = vor.u32 1.1754944e-38, %v4849
  %v4851 = vsel %vm4848, %v4850, %v4846
  %v4852 = vmul.f32 %v4827, %v4851
  %v4853 = vmin.f32 %v4852, 1.0
  %v4854 = vmax.f32 %v4853, -1.0
  %v4855 = vmul.f32 %v4488, %v4488
  %v4856 = vmin.f32 16.0, %v4855
  %v4857 = vmul.f32 %v4856, 2.1237322e-06
  %v4858 = vadd.f32 %v4857, 0.00028619796
  %v4859 = vmul.f32 %v4856, %v4858
  %v4860 = vadd.f32 %v4859, 0.0036580483
  %v4861 = vmul.f32 %v4856, %v4860
  %v4862 = vadd.f32 %v4861, 0.05243302
  %v4863 = vmul.f32 %v4856, %v4862
  %v4864 = vadd.f32 %v4863, 0.18741608
  %v4865 = vmul.f32 %v4856, %v4864
  %v4866 = vadd.f32 %v4865, 1.1283791
  %v4867 = vmul.f32 %v4488, %v4866
  %v4868 = vmul.f32 %v4856, 3.8918573e-05
  %v4869 = vadd.f32 %v4868, 0.001143296
  %v4870 = vmul.f32 %v4856, %v4869
  %v4871 = vadd.f32 %v4870, 0.014752088
  %v4872 = vmul.f32 %v4856, %v4871
  %v4873 = vadd.f32 %v4872, 0.112945676
  %v4874 = vmul.f32 %v4856, %v4873
  %v4875 = vadd.f32 %v4874, 0.4994258
  %v4876 = vmul.f32 %v4856, %v4875
  %v4877 = vadd.f32 %v4876, 1.0
  %v4878 = vrcp.pop %v4877
  %v4879 = vmul.f32 %v4877, %v4878
  %v4880 = vsub.f32 1.0, %v4879
  %v4881 = vmul.f32 %v4878, %v4880
  %v4882 = vadd.f32 %v4878, %v4881
  %vm4883 = vweird.f32 %v4877
  %vm4884 = vweird.f32 %v4878
  %vm4885 = vmor %vm4883, %vm4884
  %v4886 = vsel %vm4885, %v4878, %v4882
  %v4887 = vand.u32 2147483647, %v4877
  %vm4888 = vcmp.eq.f32.partialorder %v4887, 8.507059e+37
  %v4889 = vand.u32 %v4877, 2147483648
  %v4890 = vor.u32 1.1754944e-38, %v4889
  %v4891 = vsel %vm4888, %v4890, %v4886
  %v4892 = vmul.f32 %v4867, %v4891
  %v4893 = vmin.f32 %v4892, 1.0
  %v4894 = vmax.f32 %v4893, -1.0
  %v4895 = vmul.f32 %v4489, %v4489
  %v4896 = vmin.f32 16.0, %v4895
  %v4897 = vmul.f32 %v4896, 2.1237322e-06
  %v4898 = vadd.f32 %v4897, 0.00028619796
  %v4899 = vmul.f32 %v4896, %v4898
  %v4900 = vadd.f32 %v4899, 0.0036580483
  %v4901 = vmul.f32 %v4896, %v4900
  %v4902 = vadd.f32 %v4901, 0.05243302
  %v4903 = vmul.f32 %v4896, %v4902
  %v4904 = vadd.f32 %v4903, 0.18741608
  %v4905 = vmul.f32 %v4896, %v4904
  %v4906 = vadd.f32 %v4905, 1.1283791
  %v4907 = vmul.f32 %v4489, %v4906
  %v4908 = vmul.f32 %v4896, 3.8918573e-05
  %v4909 = vadd.f32 %v4908, 0.001143296
  %v4910 = vmul.f32 %v4896, %v4909
  %v4911 = vadd.f32 %v4910, 0.014752088
  %v4912 = vmul.f32 %v4896, %v4911
  %v4913 = vadd.f32 %v4912, 0.112945676
  %v4914 = vmul.f32 %v4896, %v4913
  %v4915 = vadd.f32 %v4914, 0.4994258
  %v4916 = vmul.f32 %v4896, %v4915
  %v4917 = vadd.f32 %v4916, 1.0
  %v4918 = vrcp.pop %v4917
  %v4919 = vmul.f32 %v4917, %v4918
  %v4920 = vsub.f32 1.0, %v4919
  %v4921 = vmul.f32 %v4918, %v4920
  %v4922 = vadd.f32 %v4918, %v4921
  %vm4923 = vweird.f32 %v4917
  %vm4924 = vweird.f32 %v4918
  %vm4925 = vmor %vm4923, %vm4924
  %v4926 = vsel %vm4925, %v4918, %v4922
  %v4927 = vand.u32 2147483647, %v4917
  %vm4928 = vcmp.eq.f32.partialorder %v4927, 8.507059e+37
  %v4929 = vand.u32 %v4917, 2147483648
  %v4930 = vor.u32 1.1754944e-38, %v4929
  %v4931 = vsel %vm4928, %v4930, %v4926
  %v4932 = vmul.f32 %v4907, %v4931
  %v4933 = vmin.f32 %v4932, 1.0
  %v4934 = vmax.f32 %v4933, -1.0
  %v4935 = vmul.f32 %v4490, %v4490
  %v4936 = vmin.f32 16.0, %v4935
  %v4937 = vmul.f32 %v4936, 2.1237322e-06
  %v4938 = vadd.f32 %v4937, 0.00028619796
  %v4939 = vmul.f32 %v4936, %v4938
  %v4940 = vadd.f32 %v4939, 0.0036580483
  %v4941 = vmul.f32 %v4936, %v4940
  %v4942 = vadd.f32 %v4941, 0.05243302
  %v4943 = vmul.f32 %v4936, %v4942
  %v4944 = vadd.f32 %v4943, 0.18741608
  %v4945 = vmul.f32 %v4936, %v4944
  %v4946 = vadd.f32 %v4945, 1.1283791
  %v4947 = vmul.f32 %v4490, %v4946
  %v4948 = vmul.f32 %v4936, 3.8918573e-05
  %v4949 = vadd.f32 %v4948, 0.001143296
  %v4950 = vmul.f32 %v4936, %v4949
  %v4951 = vadd.f32 %v4950, 0.014752088
  %v4952 = vmul.f32 %v4936, %v4951
  %v4953 = vadd.f32 %v4952, 0.112945676
  %v4954 = vmul.f32 %v4936, %v4953
  %v4955 = vadd.f32 %v4954, 0.4994258
  %v4956 = vmul.f32 %v4936, %v4955
  %v4957 = vadd.f32 %v4956, 1.0
  %v4958 = vrcp.pop %v4957
  %v4959 = vmul.f32 %v4957, %v4958
  %v4960 = vsub.f32 1.0, %v4959
  %v4961 = vmul.f32 %v4958, %v4960
  %v4962 = vadd.f32 %v4958, %v4961
  %vm4963 = vweird.f32 %v4957
  %vm4964 = vweird.f32 %v4958
  %vm4965 = vmor %vm4963, %vm4964
  %v4966 = vsel %vm4965, %v4958, %v4962
  %v4967 = vand.u32 2147483647, %v4957
  %vm4968 = vcmp.eq.f32.partialorder %v4967, 8.507059e+37
  %v4969 = vand.u32 %v4957, 2147483648
  %v4970 = vor.u32 1.1754944e-38, %v4969
  %v4971 = vsel %vm4968, %v4970, %v4966
  %v4972 = vmul.f32 %v4947, %v4971
  %v4973 = vmin.f32 %v4972, 1.0
  %v4974 = vmax.f32 %v4973, -1.0
  %v4975 = vmul.f32 %v4491, %v4491
  %v4976 = vmin.f32 16.0, %v4975
  %v4977 = vmul.f32 %v4976, 2.1237322e-06
  %v4978 = vadd.f32 %v4977, 0.00028619796
  %v4979 = vmul.f32 %v4976, %v4978
  %v4980 = vadd.f32 %v4979, 0.0036580483
  %v4981 = vmul.f32 %v4976, %v4980
  %v4982 = vadd.f32 %v4981, 0.05243302
  %v4983 = vmul.f32 %v4976, %v4982
  %v4984 = vadd.f32 %v4983, 0.18741608
  %v4985 = vmul.f32 %v4976, %v4984
  %v4986 = vadd.f32 %v4985, 1.1283791
  %v4987 = vmul.f32 %v4491, %v4986
  %v4988 = vmul.f32 %v4976, 3.8918573e-05
  %v4989 = vadd.f32 %v4988, 0.001143296
  %v4990 = vmul.f32 %v4976, %v4989
  %v4991 = vadd.f32 %v4990, 0.014752088
  %v4992 = vmul.f32 %v4976, %v4991
  %v4993 = vadd.f32 %v4992, 0.112945676
  %v4994 = vmul.f32 %v4976, %v4993
  %v4995 = vadd.f32 %v4994, 0.4994258
  %v4996 = vmul.f32 %v4976, %v4995
  %v4997 = vadd.f32 %v4996, 1.0
  %v4998 = vrcp.pop %v4997
  %v4999 = vmul.f32 %v4997, %v4998
  %v5000 = vsub.f32 1.0, %v4999
  %v5001 = vmul.f32 %v4998, %v5000
  %v5002 = vadd.f32 %v4998, %v5001
  %vm5003 = vweird.f32 %v4997
  %vm5004 = vweird.f32 %v4998
  %vm5005 = vmor %vm5003, %vm5004
  %v5006 = vsel %vm5005, %v4998, %v5002
  %v5007 = vand.u32 2147483647, %v4997
  %vm5008 = vcmp.eq.f32.partialorder %v5007, 8.507059e+37
  %v5009 = vand.u32 %v4997, 2147483648
  %v5010 = vor.u32 1.1754944e-38, %v5009
  %v5011 = vsel %vm5008, %v5010, %v5006
  %v5012 = vmul.f32 %v4987, %v5011
  %v5013 = vmin.f32 %v5012, 1.0
  %v5014 = vmax.f32 %v5013, -1.0
  %v5015 = vmul.f32 %v4492, %v4492
  %v5016 = vmin.f32 16.0, %v5015
  %v5017 = vmul.f32 %v5016, 2.1237322e-06
  %v5018 = vadd.f32 %v5017, 0.00028619796
  %v5019 = vmul.f32 %v5016, %v5018
  %v5020 = vadd.f32 %v5019, 0.0036580483
  %v5021 = vmul.f32 %v5016, %v5020
  %v5022 = vadd.f32 %v5021, 0.05243302
  %v5023 = vmul.f32 %v5016, %v5022
  %v5024 = vadd.f32 %v5023, 0.18741608
  %v5025 = vmul.f32 %v5016, %v5024
  %v5026 = vadd.f32 %v5025, 1.1283791
  %v5027 = vmul.f32 %v4492, %v5026
  %v5028 = vmul.f32 %v5016, 3.8918573e-05
  %v5029 = vadd.f32 %v5028, 0.001143296
  %v5030 = vmul.f32 %v5016, %v5029
  %v5031 = vadd.f32 %v5030, 0.014752088
  %v5032 = vmul.f32 %v5016, %v5031
  %v5033 = vadd.f32 %v5032, 0.112945676
  %v5034 = vmul.f32 %v5016, %v5033
  %v5035 = vadd.f32 %v5034, 0.4994258
  %v5036 = vmul.f32 %v5016, %v5035
  %v5037 = vadd.f32 %v5036, 1.0
  %v5038 = vrcp.pop %v5037
  %v5039 = vmul.f32 %v5037, %v5038
  %v5040 = vsub.f32 1.0, %v5039
  %v5041 = vmul.f32 %v5038, %v5040
  %v5042 = vadd.f32 %v5038, %v5041
  %vm5043 = vweird.f32 %v5037
  %vm5044 = vweird.f32 %v5038
  %vm5045 = vmor %vm5043, %vm5044
  %v5046 = vsel %vm5045, %v5038, %v5042
  %v5047 = vand.u32 2147483647, %v5037
  %vm5048 = vcmp.eq.f32.partialorder %v5047, 8.507059e+37
  %v5049 = vand.u32 %v5037, 2147483648
  %v5050 = vor.u32 1.1754944e-38, %v5049
  %v5051 = vsel %vm5048, %v5050, %v5046
  %v5052 = vmul.f32 %v5027, %v5051
  %v5053 = vmin.f32 %v5052, 1.0
  %v5054 = vmax.f32 %v5053, -1.0
  %v5055 = vmul.f32 %v4493, %v4493
  %v5056 = vmin.f32 16.0, %v5055
  %v5057 = vmul.f32 %v5056, 2.1237322e-06
  %v5058 = vadd.f32 %v5057, 0.00028619796
  %v5059 = vmul.f32 %v5056, %v5058
  %v5060 = vadd.f32 %v5059, 0.0036580483
  %v5061 = vmul.f32 %v5056, %v5060
  %v5062 = vadd.f32 %v5061, 0.05243302
  %v5063 = vmul.f32 %v5056, %v5062
  %v5064 = vadd.f32 %v5063, 0.18741608
  %v5065 = vmul.f32 %v5056, %v5064
  %v5066 = vadd.f32 %v5065, 1.1283791
  %v5067 = vmul.f32 %v4493, %v5066
  %v5068 = vmul.f32 %v5056, 3.8918573e-05
  %v5069 = vadd.f32 %v5068, 0.001143296
  %v5070 = vmul.f32 %v5056, %v5069
  %v5071 = vadd.f32 %v5070, 0.014752088
  %v5072 = vmul.f32 %v5056, %v5071
  %v5073 = vadd.f32 %v5072, 0.112945676
  %v5074 = vmul.f32 %v5056, %v5073
  %v5075 = vadd.f32 %v5074, 0.4994258
  %v5076 = vmul.f32 %v5056, %v5075
  %v5077 = vadd.f32 %v5076, 1.0
  %v5078 = vrcp.pop %v5077
  %v5079 = vmul.f32 %v5077, %v5078
  %v5080 = vsub.f32 1.0, %v5079
  %v5081 = vmul.f32 %v5078, %v5080
  %v5082 = vadd.f32 %v5078, %v5081
  %vm5083 = vweird.f32 %v5077
  %vm5084 = vweird.f32 %v5078
  %vm5085 = vmor %vm5083, %vm5084
  %v5086 = vsel %vm5085, %v5078, %v5082
  %v5087 = vand.u32 2147483647, %v5077
  %vm5088 = vcmp.eq.f32.partialorder %v5087, 8.507059e+37
  %v5089 = vand.u32 %v5077, 2147483648
  %v5090 = vor.u32 1.1754944e-38, %v5089
  %v5091 = vsel %vm5088, %v5090, %v5086
  %v5092 = vmul.f32 %v5067, %v5091
  %v5093 = vmin.f32 %v5092, 1.0
  %v5094 = vmax.f32 %v5093, -1.0
  %v5095 = vmul.f32 %v4494, %v4494
  %v5096 = vmin.f32 16.0, %v5095
  %v5097 = vmul.f32 %v5096, 2.1237322e-06
  %v5098 = vadd.f32 %v5097, 0.00028619796
  %v5099 = vmul.f32 %v5096, %v5098
  %v5100 = vadd.f32 %v5099, 0.0036580483
  %v5101 = vmul.f32 %v5096, %v5100
  %v5102 = vadd.f32 %v5101, 0.05243302
  %v5103 = vmul.f32 %v5096, %v5102
  %v5104 = vadd.f32 %v5103, 0.18741608
  %v5105 = vmul.f32 %v5096, %v5104
  %v5106 = vadd.f32 %v5105, 1.1283791
  %v5107 = vmul.f32 %v4494, %v5106
  %v5108 = vmul.f32 %v5096, 3.8918573e-05
  %v5109 = vadd.f32 %v5108, 0.001143296
  %v5110 = vmul.f32 %v5096, %v5109
  %v5111 = vadd.f32 %v5110, 0.014752088
  %v5112 = vmul.f32 %v5096, %v5111
  %v5113 = vadd.f32 %v5112, 0.112945676
  %v5114 = vmul.f32 %v5096, %v5113
  %v5115 = vadd.f32 %v5114, 0.4994258
  %v5116 = vmul.f32 %v5096, %v5115
  %v5117 = vadd.f32 %v5116, 1.0
  %v5118 = vrcp.pop %v5117
  %v5119 = vmul.f32 %v5117, %v5118
  %v5120 = vsub.f32 1.0, %v5119
  %v5121 = vmul.f32 %v5118, %v5120
  %v5122 = vadd.f32 %v5118, %v5121
  %vm5123 = vweird.f32 %v5117
  %vm5124 = vweird.f32 %v5118
  %vm5125 = vmor %vm5123, %vm5124
  %v5126 = vsel %vm5125, %v5118, %v5122
  %v5127 = vand.u32 2147483647, %v5117
  %vm5128 = vcmp.eq.f32.partialorder %v5127, 8.507059e+37
  %v5129 = vand.u32 %v5117, 2147483648
  %v5130 = vor.u32 1.1754944e-38, %v5129
  %v5131 = vsel %vm5128, %v5130, %v5126
  %v5132 = vmul.f32 %v5107, %v5131
  %v5133 = vmin.f32 %v5132, 1.0
  %v5134 = vmax.f32 %v5133, -1.0
  %v5135 = vadd.f32 %v4534, 1.0
  %v5136 = vadd.f32 %v4574, 1.0
  %v5137 = vadd.f32 %v4614, 1.0
  %v5138 = vadd.f32 %v4654, 1.0
  %v5139 = vadd.f32 %v4694, 1.0
  %v5140 = vadd.f32 %v4734, 1.0
  %v5141 = vadd.f32 %v4774, 1.0
  %v5142 = vadd.f32 %v4814, 1.0
  %v5143 = vadd.f32 %v4854, 1.0
  %v5144 = vadd.f32 %v4894, 1.0
  %v5145 = vadd.f32 %v4934, 1.0
  %v5146 = vadd.f32 %v4974, 1.0
  %v5147 = vadd.f32 %v5014, 1.0
  %v5148 = vadd.f32 %v5054, 1.0
  %v5149 = vadd.f32 %v5094, 1.0
  %v5150 = vadd.f32 %v5134, 1.0
  %v5151 = vmul.f32 %v4456, %v5135
  %v5152 = vmul.f32 %v4457, %v5136
  %v5153 = vmul.f32 %v4458, %v5137
  %v5154 = vmul.f32 %v4459, %v5138
  %v5155 = vmul.f32 %v4460, %v5139
  %v5156 = vmul.f32 %v4461, %v5140
  %v5157 = vmul.f32 %v4462, %v5141
  %v5158 = vmul.f32 %v4463, %v5142
  %v5159 = vmul.f32 %v4464, %v5143
  %v5160 = vmul.f32 %v4465, %v5144
  %v5161 = vmul.f32 %v4466, %v5145
  %v5162 = vmul.f32 %v4467, %v5146
  %v5163 = vmul.f32 %v4468, %v5147
  %v5164 = vmul.f32 %v4469, %v5148
  %v5165 = vmul.f32 %v4470, %v5149
  %v5166 = vmul.f32 %v4471, %v5150
  %v5167 = vld [vmem:[%s15] sm:$0xff]
  %v5168 = vld [vmem:[%s15 + $0x8] sm:$0xff]
  %v5169 = vld [vmem:[%s15 + $0x10] sm:$0xff]
  %v5170 = vld [vmem:[%s15 + $0x18] sm:$0xff]
  %v5171 = vld [vmem:[%s16] sm:$0x1]
  %v5173 = vperm.slane %v5171, 0
  %v5176 = vsel %vm74, %v5151, 0
  %v5179 = vsel %vm74, %v5152, 0
  %v5182 = vsel %vm74, %v5153, 0
  %v5185 = vsel %vm74, %v5154, 0
  %v5188 = vsel %vm74, %v5155, 0
  %v5191 = vsel %vm74, %v5156, 0
  %v5194 = vsel %vm74, %v5157, 0
  %v5197 = vsel %vm74, %v5158, 0
  %v5200 = vsel %vm74, %v5159, 0
  %v5203 = vsel %vm74, %v5160, 0
  %v5206 = vsel %vm74, %v5161, 0
  %v5209 = vsel %vm74, %v5162, 0
  %v5212 = vsel %vm74, %v5163, 0
  %v5215 = vsel %vm74, %v5164, 0
  %v5218 = vsel %vm74, %v5165, 0
  %v5221 = vsel %vm74, %v5166, 0
  %5223 = vmatpush.msra.mxu0 0.0
  %5224 = vmatpush.msra.mxu0 0.0
  %5225 = vmatpush.msra.mxu0 0.0
  %5226 = vmatpush.msra.mxu0 0.0
  %5227 = vmatpush.msra.mxu0 0.0
  %5228 = vmatpush.msra.mxu0 0.0
  %5229 = vmatpush.msra.mxu0 0.0
  %5230 = vmatpush.msra.mxu0 0.0
  %5231 = vmatpush.msra.mxu0 0.0
  %5232 = vmatpush.msra.mxu0 0.0
  %5233 = vmatpush.msra.mxu0 0.0
  %5234 = vmatpush.msra.mxu0 0.0
  %5235 = vmatpush.msra.mxu0 %v5170
  %5236 = vmatpush.msra.mxu0 %v5169
  %5237 = vmatpush.msra.mxu0 %v5168
  %5238 = vmatpush.msra.mxu0 %v5167
  %5239 = vmatmul.f32.gmra.mxu0 %v5176
  %v5240 = vpop.f32.mrf.mxu0
  %v5241 = vadd.f32 %v5173, %v5240
  %5242 = vmatmul.f32.gmra.mxu0 %v5179
  %v5243 = vpop.f32.mrf.mxu0
  %v5244 = vadd.f32 %v5173, %v5243
  %5245 = vmatmul.f32.gmra.mxu0 %v5182
  %v5246 = vpop.f32.mrf.mxu0
  %v5247 = vadd.f32 %v5173, %v5246
  %5248 = vmatmul.f32.gmra.mxu0 %v5185
  %v5249 = vpop.f32.mrf.mxu0
  %v5250 = vadd.f32 %v5173, %v5249
  %5251 = vmatmul.f32.gmra.mxu0 %v5188
  %v5252 = vpop.f32.mrf.mxu0
  %v5253 = vadd.f32 %v5173, %v5252
  %5254 = vmatmul.f32.gmra.mxu0 %v5191
  %v5255 = vpop.f32.mrf.mxu0
  %v5256 = vadd.f32 %v5173, %v5255
  %5257 = vmatmul.f32.gmra.mxu0 %v5194
  %v5258 = vpop.f32.mrf.mxu0
  %v5259 = vadd.f32 %v5173, %v5258
  %5260 = vmatmul.f32.gmra.mxu0 %v5197
  %v5261 = vpop.f32.mrf.mxu0
  %v5262 = vadd.f32 %v5173, %v5261
  %5263 = vmatmul.f32.gmra.mxu0 %v5200
  %v5264 = vpop.f32.mrf.mxu0
  %v5265 = vadd.f32 %v5173, %v5264
  %5266 = vmatmul.f32.gmra.mxu0 %v5203
  %v5267 = vpop.f32.mrf.mxu0
  %v5268 = vadd.f32 %v5173, %v5267
  %5269 = vmatmul.f32.gmra.mxu0 %v5206
  %v5270 = vpop.f32.mrf.mxu0
  %v5271 = vadd.f32 %v5173, %v5270
  %5272 = vmatmul.f32.gmra.mxu0 %v5209
  %v5273 = vpop.f32.mrf.mxu0
  %v5274 = vadd.f32 %v5173, %v5273
  %5275 = vmatmul.f32.gmra.mxu0 %v5212
  %v5276 = vpop.f32.mrf.mxu0
  %v5277 = vadd.f32 %v5173, %v5276
  %5278 = vmatmul.f32.gmra.mxu0 %v5215
  %v5279 = vpop.f32.mrf.mxu0
  %v5280 = vadd.f32 %v5173, %v5279
  %5281 = vmatmul.f32.gmra.mxu0 %v5218
  %v5282 = vpop.f32.mrf.mxu0
  %v5283 = vadd.f32 %v5173, %v5282
  %5284 = vmatmul.f32.gmra.mxu0 %v5221
  %v5285 = vpop.f32.mrf.mxu0
  %v5286 = vadd.f32 %v5173, %v5285
  %5287 = vdwg.mxu0
  %v5288 = vadd.f32 %v5241, %v3895
  %v5289 = vadd.f32 %v5244, %v3896
  %v5290 = vadd.f32 %v5247, %v3897
  %v5291 = vadd.f32 %v5250, %v3898
  %v5292 = vadd.f32 %v5253, %v3899
  %v5293 = vadd.f32 %v5256, %v3900
  %v5294 = vadd.f32 %v5259, %v3901
  %v5295 = vadd.f32 %v5262, %v3902
  %v5296 = vadd.f32 %v5265, %v3903
  %v5297 = vadd.f32 %v5268, %v3904
  %v5298 = vadd.f32 %v5271, %v3905
  %v5299 = vadd.f32 %v5274, %v3906
  %v5300 = vadd.f32 %v5277, %v3907
  %v5301 = vadd.f32 %v5280, %v3908
  %v5302 = vadd.f32 %v5283, %v3909
  %v5303 = vadd.f32 %v5286, %v3910
  %5304 = vst.msk [vmem:[%s17] sm:$0xff] %vm74, %v5288
  %5305 = vst.msk [vmem:[%s17 + $0x8] sm:$0xff] %vm74, %v5289
  %5306 = vst.msk [vmem:[%s17 + $0x10] sm:$0xff] %vm74, %v5290
  %5307 = vst.msk [vmem:[%s17 + $0x18] sm:$0xff] %vm74, %v5291
  %5308 = vst.msk [vmem:[%s17 + $0x20] sm:$0xff] %vm74, %v5292
  %5309 = vst.msk [vmem:[%s17 + $0x28] sm:$0xff] %vm74, %v5293
  %5310 = vst.msk [vmem:[%s17 + $0x30] sm:$0xff] %vm74, %v5294
  %5311 = vst.msk [vmem:[%s17 + $0x38] sm:$0xff] %vm74, %v5295
  %5312 = vst.msk [vmem:[%s17 + $0x40] sm:$0xff] %vm74, %v5296
  %5313 = vst.msk [vmem:[%s17 + $0x48] sm:$0xff] %vm74, %v5297
  %5314 = vst.msk [vmem:[%s17 + $0x50] sm:$0xff] %vm74, %v5298
  %5315 = vst.msk [vmem:[%s17 + $0x58] sm:$0xff] %vm74, %v5299
  %5316 = vst.msk [vmem:[%s17 + $0x60] sm:$0xff] %vm74, %v5300
  %5317 = vst.msk [vmem:[%s17 + $0x68] sm:$0xff] %vm74, %v5301
  %5318 = vst.msk [vmem:[%s17 + $0x70] sm:$0xff] %vm74, %v5302
  %5319 = vst.msk [vmem:[%s17 + $0x78] sm:$0xff] %vm74, %v5303
  // Predicated region
  $region70: #{tpu_custom_call.1} parent=0 // pred_check
    _
  $region71: #{tpu_custom_call.1} parent=0 // pred_check_branch
    %5321 = sbr.rel (0) target = $region73
  $region72: #{tpu_custom_call.1} parent=0 // pred_region
    _
  $region73: #{tpu_custom_call.1} parent=0 // pred_fallthru
    _
  // Predicated region
  $region74: #{tpu_custom_call.1} parent=0 // pred_check
    _
  $region75: #{tpu_custom_call.1} parent=0 // pred_check_branch
    %5323 = sbr.rel (0) target = $region77
  $region76: #{tpu_custom_call.1} parent=0 // pred_region
    _
  $region77: #{tpu_custom_call.1} parent=0 // pred_fallthru
    _

</llo_original>
